<compile_context>
chip_gen: v7x
topology: tpu7x:2x2x1
jax: 0.10.0
libtpu: 0.0.40
codegen_flags: <defaults>
</compile_context>

<pallas_src>
import functools

import jax
import jax.numpy as jnp
from jax.experimental import pallas as pl
from jax.experimental.pallas import tpu as pltpu

EPS = 1e-5                       # nn.BatchNorm2d default eps


def _round_up(x, m):
    return ((x + m - 1) // m) * m


def _vmem_budget_bytes():
    """Target double-buffered working-set budget, generation aware."""
    try:
        cap = pltpu.get_tpu_info().vmem_capacity_bytes
    except Exception:
        cap = 64 * 1024 * 1024
    # ~16 MiB on 128-MiB-VMEM parts (v5e/v6e), ~8 MiB on 64-MiB-per-TC parts (v7x).
    return 16 * 1024 * 1024 if cap >= 100 * 1024 * 1024 else 8 * 1024 * 1024


def _row_bytes(f_g, f_l, h):
    """Conservative per-row VMEM bytes across the three passes (incl. in-kernel
    f32 temporaries of pass 2 and the f32 output of pass 3)."""
    return max(2 * (f_g + f_l) + 8 * h,          # pass 1: bf16 g,x + f32 a,b temps
               2 * (f_g + f_l) + 20 * h + 8,     # pass 2: + g1,x1,r temps + p
               2 * f_l + 4 * f_l + 8)            # pass 3: bf16 x + f32 out + p


def _auto_block_m(m, f_g, f_l, h):
    rb = _row_bytes(f_g, f_l, h)
    tm = _vmem_budget_bytes() // (2 * rb)        # /2 for double buffering
    tm = max(256, min(tm, 8192))
    tm = (tm // 256) * 256
    mp8 = _round_up(m, 8)
    return mp8 if tm >= mp8 else tm


def _vmem_limit(tm, f_g, f_l, h):
    ws = 2 * tm * _row_bytes(f_g, f_l, h)        # double-buffered working set
    return int(min(max(3 * ws, 32 * 1024 * 1024), 48 * 1024 * 1024))


# ---------------------------------------------------------------------------
# Pallas kernels
# ---------------------------------------------------------------------------
def _stats_kernel(g_ref, x_ref, wg_ref, wx_ref, stats_ref):
    """Per-tile BN statistics of a = g@Wg and b = x@Wx (a/b never hit HBM).
    Zero-padded rows contribute zero to every sum, so no masking is needed."""
    a = jnp.dot(g_ref[...], wg_ref[...], preferred_element_type=jnp.float32)
    b = jnp.dot(x_ref[...], wx_ref[...], preferred_element_type=jnp.float32)
    stats_ref[0, 0:1, :] = jnp.sum(a, axis=0, keepdims=True)
    stats_ref[0, 1:2, :] = jnp.sum(a * a, axis=0, keepdims=True)
    stats_ref[0, 2:3, :] = jnp.sum(b, axis=0, keepdims=True)
    stats_ref[0, 3:4, :] = jnp.sum(b * b, axis=0, keepdims=True)


def _psi_kernel(g_ref, x_ref, wg_ref, wx_ref, aff_ref, wpsi_ref,
                p_ref, pstats_ref, *, m_true, block_m, padded):
    """Recompute a/b in VMEM, apply BN affines + relu + psi 1x1 conv (lane
    reduction); write the pre-BN psi scalar p and per-tile psi stats partials.
    Padded-row masking only runs on the last grid step."""
    i = pl.program_id(0)
    a = jnp.dot(g_ref[...], wg_ref[...], preferred_element_type=jnp.float32)
    b = jnp.dot(x_ref[...], wx_ref[...], preferred_element_type=jnp.float32)
    aff = aff_ref[...]                                      # rows: sa, ta, sb, tb
    g1 = a * aff[0:1, :] + aff[1:2, :]
    x1 = b * aff[2:3, :] + aff[3:4, :]
    r = jnp.maximum(g1 + x1, 0.0)
    p = jnp.sum(r * wpsi_ref[...], axis=1, keepdims=True)   # (block_m, 1) pre-BN psi
    p_ref[...] = p
    pstats_ref[0, 0:1, :] = jnp.sum(p, axis=0, keepdims=True)
    pstats_ref[0, 1:2, :] = jnp.sum(p * p, axis=0, keepdims=True)

    if padded:  # static: only the last tile contains zero-padded rows
        @pl.when(i == pl.num_programs(0) - 1)
        def _():
            rows = jax.lax.broadcasted_iota(jnp.int32, p.shape, 0) + i * block_m
            pm = jnp.where(rows < m_true, p, 0.0)
            pstats_ref[0, 0:1, :] = jnp.sum(pm, axis=0, keepdims=True)
            pstats_ref[0, 1:2, :] = jnp.sum(pm * pm, axis=0, keepdims=True)


def _gate_kernel(x_ref, p_ref, pbn_ref, o_ref):
    """out = x * sigmoid(p * psc + psh);  psc/psh are SMEM scalars (BN(1) fold)."""
    p = p_ref[...] * pbn_ref[0] + pbn_ref[1]
    o_ref[...] = x_ref[...].astype(jnp.float32) * jax.nn.sigmoid(p)


# ---------------------------------------------------------------------------
# Forward pass
# ---------------------------------------------------------------------------
def attention_block_forward(g, x, params, *, block_m=None):
    """AttentionBlock.forward(g, x) — NCHW float32 in, NCHW float32 out."""
    n, f_g, hh, ww = g.shape
    f_l = x.shape[1]
    # The PyTorch module applies Conv2d(F_l, H) to g and Conv2d(F_g, H) to x, which is
    # only consistent when F_g == F_l (true for every call site in attunet.py).
    assert f_g == f_l, "AttentionBlock wiring (as in the PyTorch spec) requires F_g == F_l"
    h = params["wg"].shape[1]
    m = n * hh * ww

    tm = block_m if block_m is not None else _auto_block_m(m, f_g, f_l, h)
    assert tm % 8 == 0
    mp = _round_up(m, tm)
    pad = mp - m
    n_tiles = mp // tm
    grid = (n_tiles,)
    vlim = _vmem_limit(tm, f_g, f_l, h)

    # NHWC rows; cast to bf16 *before* padding (cheaper wrapper prep).
    gf = jnp.transpose(g, (0, 2, 3, 1)).reshape(m, f_g).astype(jnp.bfloat16)
    xf = jnp.transpose(x, (0, 2, 3, 1)).reshape(m, f_l).astype(jnp.bfloat16)
    g_bf = jnp.pad(gf, ((0, pad), (0, 0)))
    x_bf = jnp.pad(xf, ((0, pad), (0, 0)))

    wg = params["wg"].astype(jnp.bfloat16)   # Conv2d(F_l, H) weight (applied to g)
    wx = params["wx"].astype(jnp.bfloat16)   # Conv2d(F_g, H) weight (applied to x)
    # NOTE: bg/bx/bpsi are skipped in-kernel — a bias before train-mode BN is
    # exactly cancelled by the mean subtraction.

    row_spec = lambda c: pl.BlockSpec((tm, c), lambda i: (i, 0))
    const_spec = lambda r, c: pl.BlockSpec((r, c), lambda i: (0, 0))
    tile_spec = lambda r, c: pl.BlockSpec((1, r, c), lambda i: (i, 0, 0))

    # ---- pass 1: per-tile BN statistics (no a/b writeback; "parallel" grid) ----
    stats = pl.pallas_call(
        _stats_kernel,
        grid=grid,
        in_specs=[row_spec(f_g), row_spec(f_l), const_spec(f_l, h), const_spec(f_g, h)],
        out_specs=tile_spec(4, h),
        out_shape=jax.ShapeDtypeStruct((n_tiles, 4, h), jnp.float32),
        compiler_params=pltpu.CompilerParams(
            dimension_semantics=("parallel",), vmem_limit_bytes=vlim),
    )(g_bf, x_bf, wg, wx)
    stats = jnp.sum(stats, axis=0)                         # (4, H)

    inv_m = 1.0 / m                                        # static python constant
    mean_a = stats[0] * inv_m
    var_a = jnp.maximum(stats[1] * inv_m - mean_a * mean_a, 0.0)
    mean_b = stats[2] * inv_m
    var_b = jnp.maximum(stats[3] * inv_m - mean_b * mean_b, 0.0)
    scale_a = params["gamma_g"] * jax.lax.rsqrt(var_a + EPS)
    shift_a = params["beta_g"] - mean_a * scale_a
    scale_b = params["gamma_x"] * jax.lax.rsqrt(var_b + EPS)
    shift_b = params["beta_x"] - mean_b * scale_b
    affine = jnp.stack([scale_a, shift_a, scale_b, shift_b], axis=0)   # (4, H)

    wpsi_row = jnp.transpose(params["wpsi"]).astype(jnp.float32)       # (1, H)

    # ---- pass 2: recompute a/b in VMEM, write pre-BN psi scalar + psi stats ----
    p, pstats = pl.pallas_call(
        functools.partial(_psi_kernel, m_true=m, block_m=tm, padded=pad > 0),
        grid=grid,
        in_specs=[row_spec(f_g), row_spec(f_l), const_spec(f_l, h), const_spec(f_g, h),
                  const_spec(4, h), const_spec(1, h)],
        out_specs=(row_spec(1), tile_spec(2, 1)),
        out_shape=(jax.ShapeDtypeStruct((mp, 1), jnp.float32),
                   jax.ShapeDtypeStruct((n_tiles, 2, 1), jnp.float32)),
        compiler_params=pltpu.CompilerParams(
            dimension_semantics=("parallel",), vmem_limit_bytes=vlim),
    )(g_bf, x_bf, wg, wx, affine, wpsi_row)
    pstats = jnp.sum(pstats, axis=0)                       # (2, 1)

    mean_p = pstats[0, 0] * inv_m
    var_p = jnp.maximum(pstats[1, 0] * inv_m - mean_p * mean_p, 0.0)
    psc = params["gamma_psi"][0] * jax.lax.rsqrt(var_p + EPS)
    psh = params["beta_psi"][0] - mean_p * psc
    pbn = jnp.stack([psc, psh]).astype(jnp.float32)        # (2,) SMEM scalars

    # ---- pass 3: fused BN(1) + sigmoid + gating multiply (reads bf16 x) --------
    out = pl.pallas_call(
        _gate_kernel,
        grid=grid,
        in_specs=[row_spec(f_l), row_spec(1),
                  pl.BlockSpec(memory_space=pltpu.MemorySpace.SMEM)],
        out_specs=row_spec(f_l),
        out_shape=jax.ShapeDtypeStruct((mp, f_l), jnp.float32),
        compiler_params=pltpu.CompilerParams(
            dimension_semantics=("parallel",), vmem_limit_bytes=vlim),
    )(x_bf, p, pbn)

    out = out[:m].reshape(n, hh, ww, f_l)
    return jnp.transpose(out, (0, 3, 1, 2))


# ---------------------------------------------------------------------------
# Parameters (deterministic, synthetic) and pure-JAX reference
# ---------------------------------------------------------------------------
def init_params(key, f_g, f_l, h):
    ks = jax.random.split(key, 12)
    nrm = lambda k, shape, s=0.1: s * jax.random.normal(k, shape, jnp.float32)
    return {
        # W_g = Conv2d(F_l, H, 1, bias=True) + BN(H)   (applied to g, as in the spec)
        "wg": nrm(ks[0], (f_l, h)), "bg": nrm(ks[1], (h,)),
        "gamma_g": 1.0 + nrm(ks[2], (h,)), "beta_g": nrm(ks[3], (h,)),
        # W_x = Conv2d(F_g, H, 1, bias=True) + BN(H)   (applied to x)
        "wx": nrm(ks[4], (f_g, h)), "bx": nrm(ks[5], (h,)),
        "gamma_x": 1.0 + nrm(ks[6], (h,)), "beta_x": nrm(ks[7], (h,)),
        # psi = Conv2d(H, 1, 1, bias=True) + BN(1) + Sigmoid
        "wpsi": nrm(ks[8], (h, 1)), "bpsi": nrm(ks[9], (1,)),
        "gamma_psi": 1.0 + nrm(ks[10], (1,)), "beta_psi": nrm(ks[11], (1,)),
    }


def _reference(g, x, params, *, cast_bf16):
    """Pure-jnp AttentionBlock forward (train-mode BN, includes the conv biases).
    cast_bf16=True mirrors the kernel's bf16 matmul / bf16-x-gating precision."""
    n, c, hh, ww = x.shape
    gf = jnp.transpose(g, (0, 2, 3, 1)).reshape(-1, g.shape[1]).astype(jnp.float32)
    xf = jnp.transpose(x, (0, 2, 3, 1)).reshape(-1, c).astype(jnp.float32)

    def proj(inp, w):
        if cast_bf16:
            return jnp.dot(inp.astype(jnp.bfloat16), w.astype(jnp.bfloat16),
                           preferred_element_type=jnp.float32)
        return jnp.dot(inp, w)

    def bn(y, gamma, beta):
        mu = jnp.mean(y, axis=0)
        var = jnp.mean((y - mu) ** 2, axis=0)
        return (y - mu) * (gamma * jax.lax.rsqrt(var + EPS)) + beta

    g1 = bn(proj(gf, params["wg"]) + params["bg"], params["gamma_g"], params["beta_g"])
    x1 = bn(proj(xf, params["wx"]) + params["bx"], params["gamma_x"], params["beta_x"])
    r = jnp.maximum(g1 + x1, 0.0)
    p = bn(jnp.dot(r, params["wpsi"]) + params["bpsi"],
           params["gamma_psi"], params["beta_psi"])
    xg = xf.astype(jnp.bfloat16).astype(jnp.float32) if cast_bf16 else xf
    out = xg * jax.nn.sigmoid(p)
    return jnp.transpose(out.reshape(n, hh, ww, c), (0, 3, 1, 2))


# ---------------------------------------------------------------------------
if __name__ == "__main__":
    key = jax.random.PRNGKey(0)
    kg, kx, kp = jax.random.split(key, 3)

    n, f_g, f_l, h, s = 2, 8, 8, 4, 16
    params = init_params(kp, f_g, f_l, h)
    g = jax.random.normal(kg, (n, f_g, s, s), jnp.float32)
    x = jax.random.normal(kx, (n, f_l, s, s), jnp.float32)

    ref_bf16 = _reference(g, x, params, cast_bf16=True)   # same precision as kernel
    ref_f32 = _reference(g, x, params, cast_bf16=False)   # full-f32 PyTorch-style semantics

    # block_m=None: auto tile sizing (single tile here).  block_m=128: M (=512)
    # tiles evenly.  block_m=96: exercises the padded-M / masked-psi-stats path
    # (M padded to 576 with zero rows).
    for block_m in (None, 128, 96):
        fwd = jax.jit(functools.partial(attention_block_forward, block_m=block_m))
        y = fwd(g, x, params)
        jax.block_until_ready(y)
        assert y.shape == (n, f_l, s, s), y.shape
        assert bool(jnp.all(jnp.isfinite(y)))
        err_plumbing = float(jnp.max(jnp.abs(y - ref_bf16)))
        err_semantics = float(jnp.max(jnp.abs(y - ref_f32)))
        assert err_plumbing < 5e-3, (block_m, err_plumbing)
        assert err_semantics < 2e-1, (block_m, err_semantics)

    print("KERNEL_OK")
</pallas_src>

<mosaic_0001>
module attributes {stable_mosaic.version = 11 : i64} {
  func.func @_stats_kernel(%arg0: i32, %arg1: memref<512x8xbf16, #tpu.memory_space<vmem>>, %arg2: memref<512x8xbf16, #tpu.memory_space<vmem>>, %arg3: memref<8x4xbf16, #tpu.memory_space<vmem>>, %arg4: memref<8x4xbf16, #tpu.memory_space<vmem>>, %arg5: memref<1x4x4xf32, #tpu.memory_space<vmem>>) attributes {dimension_semantics = [#tpu.dimension_semantics<parallel>], iteration_bounds = array<i64: 1>, scalar_prefetch = 0 : i64, scratch_operands = 0 : i64, tpu.core_type = #tpu.core_type<tc>, window_params = [{transform_indices = @transform_0, window_bounds = array<i64: 512, 8>}, {transform_indices = @transform_1, window_bounds = array<i64: 512, 8>}, {pipeline_mode = #tpu.pipeline_mode<synchronous>, transform_indices = @transform_2, window_bounds = array<i64: 8, 4>}, {pipeline_mode = #tpu.pipeline_mode<synchronous>, transform_indices = @transform_3, window_bounds = array<i64: 8, 4>}, {transform_indices = @transform_4, window_bounds = array<i64: 1, 4, 4>}]} {
    %c0 = arith.constant 0 : index
    %c0_0 = arith.constant 0 : index
    %0 = vector.load %arg1[%c0, %c0_0] : memref<512x8xbf16, #tpu.memory_space<vmem>>, vector<512x8xbf16>
    %c0_1 = arith.constant 0 : index
    %c0_2 = arith.constant 0 : index
    %1 = vector.load %arg3[%c0_1, %c0_2] : memref<8x4xbf16, #tpu.memory_space<vmem>>, vector<8x4xbf16>
    %cst = arith.constant dense<0.000000e+00> : vector<512x4xf32>
    %2 = tpu.matmul %0, %1, %cst {dimension_numbers = #tpu.dot_dimension_numbers<[1], [0], [0], [1], [0, 0, 1, 1], [], []>} : vector<512x8xbf16>, vector<8x4xbf16>, vector<512x4xf32> -> vector<512x4xf32>
    %c0_3 = arith.constant 0 : index
    %c0_4 = arith.constant 0 : index
    %3 = vector.load %arg2[%c0_3, %c0_4] : memref<512x8xbf16, #tpu.memory_space<vmem>>, vector<512x8xbf16>
    %c0_5 = arith.constant 0 : index
    %c0_6 = arith.constant 0 : index
    %4 = vector.load %arg4[%c0_5, %c0_6] : memref<8x4xbf16, #tpu.memory_space<vmem>>, vector<8x4xbf16>
    %cst_7 = arith.constant dense<0.000000e+00> : vector<512x4xf32>
    %5 = tpu.matmul %3, %4, %cst_7 {dimension_numbers = #tpu.dot_dimension_numbers<[1], [0], [0], [1], [0, 0, 1, 1], [], []>} : vector<512x8xbf16>, vector<8x4xbf16>, vector<512x4xf32> -> vector<512x4xf32>
    %cst_8 = arith.constant dense<0.000000e+00> : vector<4xf32>
    %6 = vector.multi_reduction <add>, %2, %cst_8 [0] : vector<512x4xf32> to vector<4xf32>
    %7 = vector.shape_cast %6 : vector<4xf32> to vector<1x4xf32>
    %c0_9 = arith.constant 0 : index
    %c0_10 = arith.constant 0 : index
    %c0_11 = arith.constant 0 : index
    %8 = vector.load %arg5[%c0_9, %c0_10, %c0_11] : memref<1x4x4xf32, #tpu.memory_space<vmem>>, vector<1x1x4xf32>
    %9 = vector.shape_cast %8 : vector<1x1x4xf32> to vector<1x4xf32>
    %10 = vector.shape_cast %7 : vector<1x4xf32> to vector<1x1x4xf32>
    tpu.vector_store %arg5[%c0_9, %c0_10, %c0_11], %10 {strides = array<i32>} : memref<1x4x4xf32, #tpu.memory_space<vmem>>, vector<1x1x4xf32>,
    %11 = arith.mulf %2, %2 : vector<512x4xf32>
    %cst_12 = arith.constant dense<0.000000e+00> : vector<4xf32>
    %12 = vector.multi_reduction <add>, %11, %cst_12 [0] : vector<512x4xf32> to vector<4xf32>
    %13 = vector.shape_cast %12 : vector<4xf32> to vector<1x4xf32>
    %c0_13 = arith.constant 0 : index
    %c1 = arith.constant 1 : index
    %c0_14 = arith.constant 0 : index
    %14 = vector.load %arg5[%c0_13, %c1, %c0_14] : memref<1x4x4xf32, #tpu.memory_space<vmem>>, vector<1x1x4xf32>
    %15 = vector.shape_cast %14 : vector<1x1x4xf32> to vector<1x4xf32>
    %16 = vector.shape_cast %13 : vector<1x4xf32> to vector<1x1x4xf32>
    tpu.vector_store %arg5[%c0_13, %c1, %c0_14], %16 {strides = array<i32>} : memref<1x4x4xf32, #tpu.memory_space<vmem>>, vector<1x1x4xf32>,
    %cst_15 = arith.constant dense<0.000000e+00> : vector<4xf32>
    %17 = vector.multi_reduction <add>, %5, %cst_15 [0] : vector<512x4xf32> to vector<4xf32>
    %18 = vector.shape_cast %17 : vector<4xf32> to vector<1x4xf32>
    %c0_16 = arith.constant 0 : index
    %c2 = arith.constant 2 : index
    %c0_17 = arith.constant 0 : index
    %19 = vector.load %arg5[%c0_16, %c2, %c0_17] : memref<1x4x4xf32, #tpu.memory_space<vmem>>, vector<1x1x4xf32>
    %20 = vector.shape_cast %19 : vector<1x1x4xf32> to vector<1x4xf32>
    %21 = vector.shape_cast %18 : vector<1x4xf32> to vector<1x1x4xf32>
    tpu.vector_store %arg5[%c0_16, %c2, %c0_17], %21 {strides = array<i32>} : memref<1x4x4xf32, #tpu.memory_space<vmem>>, vector<1x1x4xf32>,
    %22 = arith.mulf %5, %5 : vector<512x4xf32>
    %cst_18 = arith.constant dense<0.000000e+00> : vector<4xf32>
    %23 = vector.multi_reduction <add>, %22, %cst_18 [0] : vector<512x4xf32> to vector<4xf32>
    %24 = vector.shape_cast %23 : vector<4xf32> to vector<1x4xf32>
    %c0_19 = arith.constant 0 : index
    %c3 = arith.constant 3 : index
    %c0_20 = arith.constant 0 : index
    %25 = vector.load %arg5[%c0_19, %c3, %c0_20] : memref<1x4x4xf32, #tpu.memory_space<vmem>>, vector<1x1x4xf32>
    %26 = vector.shape_cast %25 : vector<1x1x4xf32> to vector<1x4xf32>
    %27 = vector.shape_cast %24 : vector<1x4xf32> to vector<1x1x4xf32>
    tpu.vector_store %arg5[%c0_19, %c3, %c0_20], %27 {strides = array<i32>} : memref<1x4x4xf32, #tpu.memory_space<vmem>>, vector<1x1x4xf32>,
    return
  }
  func.func @transform_0(%arg0: i32) -> (i32, i32) {
    %c0_i32 = arith.constant 0 : i32
    %c0_i32_0 = arith.constant 0 : i32
    return %arg0, %c0_i32 : i32, i32
  }
  func.func @transform_1(%arg0: i32) -> (i32, i32) {
    %c0_i32 = arith.constant 0 : i32
    %c0_i32_0 = arith.constant 0 : i32
    return %arg0, %c0_i32 : i32, i32
  }
  func.func @transform_2(%arg0: i32) -> (i32, i32) {
    %c0_i32 = arith.constant 0 : i32
    %c0_i32_0 = arith.constant 0 : i32
    %c0_i32_1 = arith.constant 0 : i32
    return %c0_i32, %c0_i32_0 : i32, i32
  }
  func.func @transform_3(%arg0: i32) -> (i32, i32) {
    %c0_i32 = arith.constant 0 : i32
    %c0_i32_0 = arith.constant 0 : i32
    %c0_i32_1 = arith.constant 0 : i32
    return %c0_i32, %c0_i32_0 : i32, i32
  }
  func.func @transform_4(%arg0: i32) -> (i32, i32, i32) {
    %c0_i32 = arith.constant 0 : i32
    %c0_i32_0 = arith.constant 0 : i32
    %c0_i32_1 = arith.constant 0 : i32
    return %arg0, %c0_i32, %c0_i32_0 : i32, i32, i32
  }
}

module attributes {stable_mosaic.version = 11 : i64} {
  func.func @_psi_kernel(%arg0: i32, %arg1: memref<512x8xbf16, #tpu.memory_space<vmem>>, %arg2: memref<512x8xbf16, #tpu.memory_space<vmem>>, %arg3: memref<8x4xbf16, #tpu.memory_space<vmem>>, %arg4: memref<8x4xbf16, #tpu.memory_space<vmem>>, %arg5: memref<4x4xf32, #tpu.memory_space<vmem>>, %arg6: memref<1x4xf32, #tpu.memory_space<vmem>>, %arg7: memref<512x1xf32, #tpu.memory_space<vmem>>, %arg8: memref<1x2x1xf32, #tpu.memory_space<vmem>>) attributes {dimension_semantics = [#tpu.dimension_semantics<parallel>], iteration_bounds = array<i64: 1>, scalar_prefetch = 0 : i64, scratch_operands = 0 : i64, tpu.core_type = #tpu.core_type<tc>, window_params = [{transform_indices = @transform_0, window_bounds = array<i64: 512, 8>}, {transform_indices = @transform_1, window_bounds = array<i64: 512, 8>}, {pipeline_mode = #tpu.pipeline_mode<synchronous>, transform_indices = @transform_2, window_bounds = array<i64: 8, 4>}, {pipeline_mode = #tpu.pipeline_mode<synchronous>, transform_indices = @transform_3, window_bounds = array<i64: 8, 4>}, {pipeline_mode = #tpu.pipeline_mode<synchronous>, transform_indices = @transform_4, window_bounds = array<i64: 4, 4>}, {pipeline_mode = #tpu.pipeline_mode<synchronous>, transform_indices = @transform_5, window_bounds = array<i64: 1, 4>}, {transform_indices = @transform_6, window_bounds = array<i64: 512, 1>}, {transform_indices = @transform_7, window_bounds = array<i64: 1, 2, 1>}]} {
    %c0 = arith.constant 0 : index
    %c0_0 = arith.constant 0 : index
    %0 = vector.load %arg1[%c0, %c0_0] : memref<512x8xbf16, #tpu.memory_space<vmem>>, vector<512x8xbf16>
    %c0_1 = arith.constant 0 : index
    %c0_2 = arith.constant 0 : index
    %1 = vector.load %arg3[%c0_1, %c0_2] : memref<8x4xbf16, #tpu.memory_space<vmem>>, vector<8x4xbf16>
    %cst = arith.constant dense<0.000000e+00> : vector<512x4xf32>
    %2 = tpu.matmul %0, %1, %cst {dimension_numbers = #tpu.dot_dimension_numbers<[1], [0], [0], [1], [0, 0, 1, 1], [], []>} : vector<512x8xbf16>, vector<8x4xbf16>, vector<512x4xf32> -> vector<512x4xf32>
    %c0_3 = arith.constant 0 : index
    %c0_4 = arith.constant 0 : index
    %3 = vector.load %arg2[%c0_3, %c0_4] : memref<512x8xbf16, #tpu.memory_space<vmem>>, vector<512x8xbf16>
    %c0_5 = arith.constant 0 : index
    %c0_6 = arith.constant 0 : index
    %4 = vector.load %arg4[%c0_5, %c0_6] : memref<8x4xbf16, #tpu.memory_space<vmem>>, vector<8x4xbf16>
    %cst_7 = arith.constant dense<0.000000e+00> : vector<512x4xf32>
    %5 = tpu.matmul %3, %4, %cst_7 {dimension_numbers = #tpu.dot_dimension_numbers<[1], [0], [0], [1], [0, 0, 1, 1], [], []>} : vector<512x8xbf16>, vector<8x4xbf16>, vector<512x4xf32> -> vector<512x4xf32>
    %c0_8 = arith.constant 0 : index
    %c0_9 = arith.constant 0 : index
    %6 = vector.load %arg5[%c0_8, %c0_9] : memref<4x4xf32, #tpu.memory_space<vmem>>, vector<4x4xf32>
    %7 = vector.extract_strided_slice %6 {offsets = [0, 0], sizes = [1, 4], strides = [1, 1]} : vector<4x4xf32> to vector<1x4xf32>
    %8 = vector.broadcast %7 : vector<1x4xf32> to vector<512x4xf32>
    %9 = arith.mulf %2, %8 : vector<512x4xf32>
    %10 = vector.extract_strided_slice %6 {offsets = [1, 0], sizes = [1, 4], strides = [1, 1]} : vector<4x4xf32> to vector<1x4xf32>
    %11 = vector.broadcast %10 : vector<1x4xf32> to vector<512x4xf32>
    %12 = arith.addf %9, %11 : vector<512x4xf32>
    %13 = vector.extract_strided_slice %6 {offsets = [2, 0], sizes = [1, 4], strides = [1, 1]} : vector<4x4xf32> to vector<1x4xf32>
    %14 = vector.broadcast %13 : vector<1x4xf32> to vector<512x4xf32>
    %15 = arith.mulf %5, %14 : vector<512x4xf32>
    %16 = vector.extract_strided_slice %6 {offsets = [3, 0], sizes = [1, 4], strides = [1, 1]} : vector<4x4xf32> to vector<1x4xf32>
    %17 = vector.broadcast %16 : vector<1x4xf32> to vector<512x4xf32>
    %18 = arith.addf %15, %17 : vector<512x4xf32>
    %19 = arith.addf %12, %18 : vector<512x4xf32>
    %cst_10 = arith.constant 0.000000e+00 : f32
    %20 = vector.broadcast %cst_10 : f32 to vector<512x4xf32>
    %21 = arith.maximumf %19, %20 : vector<512x4xf32>
    %c0_11 = arith.constant 0 : index
    %c0_12 = arith.constant 0 : index
    %22 = vector.load %arg6[%c0_11, %c0_12] : memref<1x4xf32, #tpu.memory_space<vmem>>, vector<1x4xf32>
    %23 = vector.broadcast %22 : vector<1x4xf32> to vector<512x4xf32>
    %24 = arith.mulf %21, %23 : vector<512x4xf32>
    %cst_13 = arith.constant dense<0.000000e+00> : vector<512xf32>
    %25 = vector.multi_reduction <add>, %24, %cst_13 [1] : vector<512x4xf32> to vector<512xf32>
    %26 = vector.shape_cast %25 : vector<512xf32> to vector<512x1xf32>
    %c0_14 = arith.constant 0 : index
    %c0_15 = arith.constant 0 : index
    %27 = vector.load %arg7[%c0_14, %c0_15] : memref<512x1xf32, #tpu.memory_space<vmem>>, vector<512x1xf32>
    tpu.vector_store %arg7[%c0_14, %c0_15], %26 {strides = array<i32>} : memref<512x1xf32, #tpu.memory_space<vmem>>, vector<512x1xf32>,
    %cst_16 = arith.constant dense<0.000000e+00> : vector<1xf32>
    %28 = vector.multi_reduction <add>, %26, %cst_16 [0] : vector<512x1xf32> to vector<1xf32>
    %29 = vector.shape_cast %28 : vector<1xf32> to vector<1x1xf32>
    %c0_17 = arith.constant 0 : index
    %c0_18 = arith.constant 0 : index
    %c0_19 = arith.constant 0 : index
    %30 = vector.load %arg8[%c0_17, %c0_18, %c0_19] : memref<1x2x1xf32, #tpu.memory_space<vmem>>, vector<1x1x1xf32>
    %31 = vector.shape_cast %30 : vector<1x1x1xf32> to vector<1x1xf32>
    %32 = vector.shape_cast %29 : vector<1x1xf32> to vector<1x1x1xf32>
    tpu.vector_store %arg8[%c0_17, %c0_18, %c0_19], %32 {strides = array<i32>} : memref<1x2x1xf32, #tpu.memory_space<vmem>>, vector<1x1x1xf32>,
    %33 = arith.mulf %26, %26 : vector<512x1xf32>
    %cst_20 = arith.constant dense<0.000000e+00> : vector<1xf32>
    %34 = vector.multi_reduction <add>, %33, %cst_20 [0] : vector<512x1xf32> to vector<1xf32>
    %35 = vector.shape_cast %34 : vector<1xf32> to vector<1x1xf32>
    %c0_21 = arith.constant 0 : index
    %c1 = arith.constant 1 : index
    %c0_22 = arith.constant 0 : index
    %36 = vector.load %arg8[%c0_21, %c1, %c0_22] : memref<1x2x1xf32, #tpu.memory_space<vmem>>, vector<1x1x1xf32>
    %37 = vector.shape_cast %36 : vector<1x1x1xf32> to vector<1x1xf32>
    %38 = vector.shape_cast %35 : vector<1x1xf32> to vector<1x1x1xf32>
    tpu.vector_store %arg8[%c0_21, %c1, %c0_22], %38 {strides = array<i32>} : memref<1x2x1xf32, #tpu.memory_space<vmem>>, vector<1x1x1xf32>,
    return
  }
  func.func @transform_0(%arg0: i32) -> (i32, i32) {
    %c0_i32 = arith.constant 0 : i32
    %c0_i32_0 = arith.constant 0 : i32
    return %arg0, %c0_i32 : i32, i32
  }
  func.func @transform_1(%arg0: i32) -> (i32, i32) {
    %c0_i32 = arith.constant 0 : i32
    %c0_i32_0 = arith.constant 0 : i32
    return %arg0, %c0_i32 : i32, i32
  }
  func.func @transform_2(%arg0: i32) -> (i32, i32) {
    %c0_i32 = arith.constant 0 : i32
    %c0_i32_0 = arith.constant 0 : i32
    %c0_i32_1 = arith.constant 0 : i32
    return %c0_i32, %c0_i32_0 : i32, i32
  }
  func.func @transform_3(%arg0: i32) -> (i32, i32) {
    %c0_i32 = arith.constant 0 : i32
    %c0_i32_0 = arith.constant 0 : i32
    %c0_i32_1 = arith.constant 0 : i32
    return %c0_i32, %c0_i32_0 : i32, i32
  }
  func.func @transform_4(%arg0: i32) -> (i32, i32) {
    %c0_i32 = arith.constant 0 : i32
    %c0_i32_0 = arith.constant 0 : i32
    %c0_i32_1 = arith.constant 0 : i32
    return %c0_i32, %c0_i32_0 : i32, i32
  }
  func.func @transform_5(%arg0: i32) -> (i32, i32) {
    %c0_i32 = arith.constant 0 : i32
    %c0_i32_0 = arith.constant 0 : i32
    %c0_i32_1 = arith.constant 0 : i32
    return %c0_i32, %c0_i32_0 : i32, i32
  }
  func.func @transform_6(%arg0: i32) -> (i32, i32) {
    %c0_i32 = arith.constant 0 : i32
    %c0_i32_0 = arith.constant 0 : i32
    return %arg0, %c0_i32 : i32, i32
  }
  func.func @transform_7(%arg0: i32) -> (i32, i32, i32) {
    %c0_i32 = arith.constant 0 : i32
    %c0_i32_0 = arith.constant 0 : i32
    %c0_i32_1 = arith.constant 0 : i32
    return %arg0, %c0_i32, %c0_i32_0 : i32, i32, i32
  }
}

module attributes {stable_mosaic.version = 11 : i64} {
  func.func @_gate_kernel(%arg0: i32, %arg1: memref<512x8xbf16, #tpu.memory_space<vmem>>, %arg2: memref<512x1xf32, #tpu.memory_space<vmem>>, %arg3: memref<2xf32, #tpu.memory_space<smem>>, %arg4: memref<512x8xf32, #tpu.memory_space<vmem>>) attributes {dimension_semantics = [#tpu.dimension_semantics<parallel>], iteration_bounds = array<i64: 1>, scalar_prefetch = 0 : i64, scratch_operands = 0 : i64, tpu.core_type = #tpu.core_type<tc>, window_params = [{transform_indices = @transform_0, window_bounds = array<i64: 512, 8>}, {transform_indices = @transform_1, window_bounds = array<i64: 512, 1>}, {transform_indices = @transform_2, window_bounds = array<i64: 2>}, {transform_indices = @transform_3, window_bounds = array<i64: 512, 8>}]} {
    %c0 = arith.constant 0 : index
    %c0_0 = arith.constant 0 : index
    %0 = vector.load %arg2[%c0, %c0_0] : memref<512x1xf32, #tpu.memory_space<vmem>>, vector<512x1xf32>
    %c0_1 = arith.constant 0 : index
    %1 = memref.load %arg3[%c0_1] : memref<2xf32, #tpu.memory_space<smem>>
    %2 = vector.broadcast %1 : f32 to vector<512x1xf32>
    %3 = arith.mulf %0, %2 : vector<512x1xf32>
    %c1 = arith.constant 1 : index
    %4 = memref.load %arg3[%c1] : memref<2xf32, #tpu.memory_space<smem>>
    %5 = vector.broadcast %4 : f32 to vector<512x1xf32>
    %6 = arith.addf %3, %5 : vector<512x1xf32>
    %c0_2 = arith.constant 0 : index
    %c0_3 = arith.constant 0 : index
    %7 = vector.load %arg1[%c0_2, %c0_3] : memref<512x8xbf16, #tpu.memory_space<vmem>>, vector<512x8xbf16>
    %8 = arith.extf %7 : vector<512x8xbf16> to vector<512x8xf32>
    %9 = arith.negf %6 : vector<512x1xf32>
    %10 = math.exp %9 : vector<512x1xf32>
    %cst = arith.constant 1.000000e+00 : f32
    %11 = vector.broadcast %cst : f32 to vector<512x1xf32>
    %12 = arith.addf %11, %10 : vector<512x1xf32>
    %13 = arith.divf %11, %12 : vector<512x1xf32>
    %14 = vector.broadcast %13 : vector<512x1xf32> to vector<512x8xf32>
    %15 = arith.mulf %8, %14 : vector<512x8xf32>
    %c0_4 = arith.constant 0 : index
    %c0_5 = arith.constant 0 : index
    %16 = vector.load %arg4[%c0_4, %c0_5] : memref<512x8xf32, #tpu.memory_space<vmem>>, vector<512x8xf32>
    tpu.vector_store %arg4[%c0_4, %c0_5], %15 {strides = array<i32>} : memref<512x8xf32, #tpu.memory_space<vmem>>, vector<512x8xf32>,
    return
  }
  func.func @transform_0(%arg0: i32) -> (i32, i32) {
    %c0_i32 = arith.constant 0 : i32
    %c0_i32_0 = arith.constant 0 : i32
    return %arg0, %c0_i32 : i32, i32
  }
  func.func @transform_1(%arg0: i32) -> (i32, i32) {
    %c0_i32 = arith.constant 0 : i32
    %c0_i32_0 = arith.constant 0 : i32
    return %arg0, %c0_i32 : i32, i32
  }
  func.func @transform_2(%arg0: i32) -> i32 {
    %c0_i32 = arith.constant 0 : i32
    %c0_i32_0 = arith.constant 0 : i32
    return %c0_i32 : i32
  }
  func.func @transform_3(%arg0: i32) -> (i32, i32) {
    %c0_i32 = arith.constant 0 : i32
    %c0_i32_0 = arith.constant 0 : i32
    return %arg0, %c0_i32 : i32, i32
  }
}

</mosaic_0001>

<llo_original>
// kernel: attention_block_forward.5
$region0: #{attention_block_forward.5}
  #allocation0 [shape = 'u32[]', space=smem, size = 0x4, offset = 0x4, fixed_abs, tag = 'smem constant byte address 0x4 - core index']
  #allocation1 [shape = 'u32[144,128]{1,0:T(1,128)}', space=vmem, size = 0x12000, scoped, tag = 'internal scratch']
  %s0 = inlined_call_operand.vmem [shape: bf16[512,8], index: 0, kind: input, shape index: {}]
  %s1 = inlined_call_operand.vmem [shape: f32[512,1], index: 1, kind: input, shape index: {}]
  %s2 = inlined_call_operand.vmem [shape: f32[2], index: 2, kind: input, shape index: {}]
  %s3 = inlined_call_operand.vmem [shape: f32[512,8], index: 3, kind: output, shape index: {}]
  %s4 = sld [smem:[#allocation0]]
  $region26: #{attention_block_forward.5} parent=0
    _
  %s6 = ssub.s32 1, %s4
  %s7 = scalar_select 0, %s6, %s4
  $region1: #{attention_block_forward.5} parent=0
    #allocation2 [shape = 'u8[512]{0}', space=smem, size = 0x200, scoped, tag = 'input window, operand 2, single buffered']
    #allocation3 [shape = 's32[1]{0}', space=sflag, size = 0x4, scoped, tag = 'scoped memory for attention_block_forward.5']
    %8 = vsyncpa [#allocation3], 0
    // Predicated region
    $region2: #{attention_block_forward.5} parent=1 // pred_check
      _
    $region3: #{attention_block_forward.5} parent=1 // pred_check_branch
      %10 = sbr.rel (0) target = $region5
    $region4: #{attention_block_forward.5} parent=1 // pred_region
      _
    $region5: #{attention_block_forward.5} parent=1 // pred_fallthru
      _
    // Predicated region
    $region6: #{attention_block_forward.5} parent=1 // pred_check
      _
    $region7: #{attention_block_forward.5} parent=1 // pred_check_branch
      %12 = sbr.rel (0) target = $region9
    $region8: #{attention_block_forward.5} parent=1 // pred_region
      _
    $region9: #{attention_block_forward.5} parent=1 // pred_fallthru
      _
    // Predicated region
    $region10: #{attention_block_forward.5} parent=1 // pred_check
      _
    $region11: #{attention_block_forward.5} parent=1 // pred_check_branch
      %14 = sbr.rel (0) target = $region13
    $region12: #{attention_block_forward.5} parent=1 // pred_region
      %s16 = ssub.s32 16, 16
      %17 = vsyncadd [#allocation3], %s16
      %s19 = sshll.u32 %s2, 4
      %s20 = int_to_ptr.vmem [resolvable:$true] %s19
      %22 = dma.vmem_to_smem %s20, 16, [#allocation2], [#allocation3]
    $region13: #{attention_block_forward.5} parent=1 // pred_fallthru
      _
    // Predicated region
    $region14: #{attention_block_forward.5} parent=1 // pred_check
      _
    $region15: #{attention_block_forward.5} parent=1 // pred_check_branch
      %24 = sbr.rel (0) target = $region17
    $region16: #{attention_block_forward.5} parent=1 // pred_region
      %25 = dma.done [#allocation3], 16
    $region17: #{attention_block_forward.5} parent=1 // pred_fallthru
      _
    %26 = sfence
    %v27 = vld [vmem:[%s1] sm:$0xff]
    %v28 = vld [vmem:[%s1 + $0x8] sm:$0xff]
    %v29 = vld [vmem:[%s1 + $0x10] sm:$0xff]
    %v30 = vld [vmem:[%s1 + $0x18] sm:$0xff]
    %v31 = vld [vmem:[%s1 + $0x20] sm:$0xff]
    %v32 = vld [vmem:[%s1 + $0x28] sm:$0xff]
    %v33 = vld [vmem:[%s1 + $0x30] sm:$0xff]
    %v34 = vld [vmem:[%s1 + $0x38] sm:$0xff]
    %v35 = vld [vmem:[%s1 + $0x40] sm:$0xff]
    %v36 = vld [vmem:[%s1 + $0x48] sm:$0xff]
    %v37 = vld [vmem:[%s1 + $0x50] sm:$0xff]
    %v38 = vld [vmem:[%s1 + $0x58] sm:$0xff]
    %v39 = vld [vmem:[%s1 + $0x60] sm:$0xff]
    %v40 = vld [vmem:[%s1 + $0x68] sm:$0xff]
    %v41 = vld [vmem:[%s1 + $0x70] sm:$0xff]
    %v42 = vld [vmem:[%s1 + $0x78] sm:$0xff]
    %v43 = vld [vmem:[%s1 + $0x80] sm:$0xff]
    %v44 = vld [vmem:[%s1 + $0x88] sm:$0xff]
    %v45 = vld [vmem:[%s1 + $0x90] sm:$0xff]
    %v46 = vld [vmem:[%s1 + $0x98] sm:$0xff]
    %v47 = vld [vmem:[%s1 + $0xa0] sm:$0xff]
    %v48 = vld [vmem:[%s1 + $0xa8] sm:$0xff]
    %v49 = vld [vmem:[%s1 + $0xb0] sm:$0xff]
    %v50 = vld [vmem:[%s1 + $0xb8] sm:$0xff]
    %v51 = vld [vmem:[%s1 + $0xc0] sm:$0xff]
    %v52 = vld [vmem:[%s1 + $0xc8] sm:$0xff]
    %v53 = vld [vmem:[%s1 + $0xd0] sm:$0xff]
    %v54 = vld [vmem:[%s1 + $0xd8] sm:$0xff]
    %v55 = vld [vmem:[%s1 + $0xe0] sm:$0xff]
    %v56 = vld [vmem:[%s1 + $0xe8] sm:$0xff]
    %v57 = vld [vmem:[%s1 + $0xf0] sm:$0xff]
    %v58 = vld [vmem:[%s1 + $0xf8] sm:$0xff]
    %v59 = vld [vmem:[%s1 + $0x100] sm:$0xff]
    %v60 = vld [vmem:[%s1 + $0x108] sm:$0xff]
    %v61 = vld [vmem:[%s1 + $0x110] sm:$0xff]
    %v62 = vld [vmem:[%s1 + $0x118] sm:$0xff]
    %v63 = vld [vmem:[%s1 + $0x120] sm:$0xff]
    %v64 = vld [vmem:[%s1 + $0x128] sm:$0xff]
    %v65 = vld [vmem:[%s1 + $0x130] sm:$0xff]
    %v66 = vld [vmem:[%s1 + $0x138] sm:$0xff]
    %v67 = vld [vmem:[%s1 + $0x140] sm:$0xff]
    %v68 = vld [vmem:[%s1 + $0x148] sm:$0xff]
    %v69 = vld [vmem:[%s1 + $0x150] sm:$0xff]
    %v70 = vld [vmem:[%s1 + $0x158] sm:$0xff]
    %v71 = vld [vmem:[%s1 + $0x160] sm:$0xff]
    %v72 = vld [vmem:[%s1 + $0x168] sm:$0xff]
    %v73 = vld [vmem:[%s1 + $0x170] sm:$0xff]
    %v74 = vld [vmem:[%s1 + $0x178] sm:$0xff]
    %v75 = vld [vmem:[%s1 + $0x180] sm:$0xff]
    %v76 = vld [vmem:[%s1 + $0x188] sm:$0xff]
    %v77 = vld [vmem:[%s1 + $0x190] sm:$0xff]
    %v78 = vld [vmem:[%s1 + $0x198] sm:$0xff]
    %v79 = vld [vmem:[%s1 + $0x1a0] sm:$0xff]
    %v80 = vld [vmem:[%s1 + $0x1a8] sm:$0xff]
    %v81 = vld [vmem:[%s1 + $0x1b0] sm:$0xff]
    %v82 = vld [vmem:[%s1 + $0x1b8] sm:$0xff]
    %v83 = vld [vmem:[%s1 + $0x1c0] sm:$0xff]
    %v84 = vld [vmem:[%s1 + $0x1c8] sm:$0xff]
    %v85 = vld [vmem:[%s1 + $0x1d0] sm:$0xff]
    %v86 = vld [vmem:[%s1 + $0x1d8] sm:$0xff]
    %v87 = vld [vmem:[%s1 + $0x1e0] sm:$0xff]
    %v88 = vld [vmem:[%s1 + $0x1e8] sm:$0xff]
    %v89 = vld [vmem:[%s1 + $0x1f0] sm:$0xff]
    %v90 = vld [vmem:[%s1 + $0x1f8] sm:$0xff]
    %s91 = sld [smem:[#allocation2]]
    %v92 = vstv %s91
    %v93 = vmul.f32 %v27, %v92
    %v94 = vmul.f32 %v28, %v92
    %v95 = vmul.f32 %v29, %v92
    %v96 = vmul.f32 %v30, %v92
    %v97 = vmul.f32 %v31, %v92
    %v98 = vmul.f32 %v32, %v92
    %v99 = vmul.f32 %v33, %v92
    %v100 = vmul.f32 %v34, %v92
    %v101 = vmul.f32 %v35, %v92
    %v102 = vmul.f32 %v36, %v92
    %v103 = vmul.f32 %v37, %v92
    %v104 = vmul.f32 %v38, %v92
    %v105 = vmul.f32 %v39, %v92
    %v106 = vmul.f32 %v40, %v92
    %v107 = vmul.f32 %v41, %v92
    %v108 = vmul.f32 %v42, %v92
    %v109 = vmul.f32 %v43, %v92
    %v110 = vmul.f32 %v44, %v92
    %v111 = vmul.f32 %v45, %v92
    %v112 = vmul.f32 %v46, %v92
    %v113 = vmul.f32 %v47, %v92
    %v114 = vmul.f32 %v48, %v92
    %v115 = vmul.f32 %v49, %v92
    %v116 = vmul.f32 %v50, %v92
    %v117 = vmul.f32 %v51, %v92
    %v118 = vmul.f32 %v52, %v92
    %v119 = vmul.f32 %v53, %v92
    %v120 = vmul.f32 %v54, %v92
    %v121 = vmul.f32 %v55, %v92
    %v122 = vmul.f32 %v56, %v92
    %v123 = vmul.f32 %v57, %v92
    %v124 = vmul.f32 %v58, %v92
    %v125 = vmul.f32 %v59, %v92
    %v126 = vmul.f32 %v60, %v92
    %v127 = vmul.f32 %v61, %v92
    %v128 = vmul.f32 %v62, %v92
    %v129 = vmul.f32 %v63, %v92
    %v130 = vmul.f32 %v64, %v92
    %v131 = vmul.f32 %v65, %v92
    %v132 = vmul.f32 %v66, %v92
    %v133 = vmul.f32 %v67, %v92
    %v134 = vmul.f32 %v68, %v92
    %v135 = vmul.f32 %v69, %v92
    %v136 = vmul.f32 %v70, %v92
    %v137 = vmul.f32 %v71, %v92
    %v138 = vmul.f32 %v72, %v92
    %v139 = vmul.f32 %v73, %v92
    %v140 = vmul.f32 %v74, %v92
    %v141 = vmul.f32 %v75, %v92
    %v142 = vmul.f32 %v76, %v92
    %v143 = vmul.f32 %v77, %v92
    %v144 = vmul.f32 %v78, %v92
    %v145 = vmul.f32 %v79, %v92
    %v146 = vmul.f32 %v80, %v92
    %v147 = vmul.f32 %v81, %v92
    %v148 = vmul.f32 %v82, %v92
    %v149 = vmul.f32 %v83, %v92
    %v150 = vmul.f32 %v84, %v92
    %v151 = vmul.f32 %v85, %v92
    %v152 = vmul.f32 %v86, %v92
    %v153 = vmul.f32 %v87, %v92
    %v154 = vmul.f32 %v88, %v92
    %v155 = vmul.f32 %v89, %v92
    %v156 = vmul.f32 %v90, %v92
    %s157 = sld [smem:[#allocation2 + $0x1]]
    %v158 = vstv %s157
    %v159 = vadd.f32 %v93, %v158
    %v160 = vadd.f32 %v94, %v158
    %v161 = vadd.f32 %v95, %v158
    %v162 = vadd.f32 %v96, %v158
    %v163 = vadd.f32 %v97, %v158
    %v164 = vadd.f32 %v98, %v158
    %v165 = vadd.f32 %v99, %v158
    %v166 = vadd.f32 %v100, %v158
    %v167 = vadd.f32 %v101, %v158
    %v168 = vadd.f32 %v102, %v158
    %v169 = vadd.f32 %v103, %v158
    %v170 = vadd.f32 %v104, %v158
    %v171 = vadd.f32 %v105, %v158
    %v172 = vadd.f32 %v106, %v158
    %v173 = vadd.f32 %v107, %v158
    %v174 = vadd.f32 %v108, %v158
    %v175 = vadd.f32 %v109, %v158
    %v176 = vadd.f32 %v110, %v158
    %v177 = vadd.f32 %v111, %v158
    %v178 = vadd.f32 %v112, %v158
    %v179 = vadd.f32 %v113, %v158
    %v180 = vadd.f32 %v114, %v158
    %v181 = vadd.f32 %v115, %v158
    %v182 = vadd.f32 %v116, %v158
    %v183 = vadd.f32 %v117, %v158
    %v184 = vadd.f32 %v118, %v158
    %v185 = vadd.f32 %v119, %v158
    %v186 = vadd.f32 %v120, %v158
    %v187 = vadd.f32 %v121, %v158
    %v188 = vadd.f32 %v122, %v158
    %v189 = vadd.f32 %v123, %v158
    %v190 = vadd.f32 %v124, %v158
    %v191 = vadd.f32 %v125, %v158
    %v192 = vadd.f32 %v126, %v158
    %v193 = vadd.f32 %v127, %v158
    %v194 = vadd.f32 %v128, %v158
    %v195 = vadd.f32 %v129, %v158
    %v196 = vadd.f32 %v130, %v158
    %v197 = vadd.f32 %v131, %v158
    %v198 = vadd.f32 %v132, %v158
    %v199 = vadd.f32 %v133, %v158
    %v200 = vadd.f32 %v134, %v158
    %v201 = vadd.f32 %v135, %v158
    %v202 = vadd.f32 %v136, %v158
    %v203 = vadd.f32 %v137, %v158
    %v204 = vadd.f32 %v138, %v158
    %v205 = vadd.f32 %v139, %v158
    %v206 = vadd.f32 %v140, %v158
    %v207 = vadd.f32 %v141, %v158
    %v208 = vadd.f32 %v142, %v158
    %v209 = vadd.f32 %v143, %v158
    %v210 = vadd.f32 %v144, %v158
    %v211 = vadd.f32 %v145, %v158
    %v212 = vadd.f32 %v146, %v158
    %v213 = vadd.f32 %v147, %v158
    %v214 = vadd.f32 %v148, %v158
    %v215 = vadd.f32 %v149, %v158
    %v216 = vadd.f32 %v150, %v158
    %v217 = vadd.f32 %v151, %v158
    %v218 = vadd.f32 %v152, %v158
    %v219 = vadd.f32 %v153, %v158
    %v220 = vadd.f32 %v154, %v158
    %v221 = vadd.f32 %v155, %v158
    %v222 = vadd.f32 %v156, %v158
    %v223 = vld [vmem:[%s0] sm:$0xf]
    %v224 = vld [vmem:[%s0 + $0x4] sm:$0xf]
    %v225 = vld [vmem:[%s0 + $0x8] sm:$0xf]
    %v226 = vld [vmem:[%s0 + $0xc] sm:$0xf]
    %v227 = vld [vmem:[%s0 + $0x10] sm:$0xf]
    %v228 = vld [vmem:[%s0 + $0x14] sm:$0xf]
    %v229 = vld [vmem:[%s0 + $0x18] sm:$0xf]
    %v230 = vld [vmem:[%s0 + $0x1c] sm:$0xf]
    %v231 = vld [vmem:[%s0 + $0x20] sm:$0xf]
    %v232 = vld [vmem:[%s0 + $0x24] sm:$0xf]
    %v233 = vld [vmem:[%s0 + $0x28] sm:$0xf]
    %v234 = vld [vmem:[%s0 + $0x2c] sm:$0xf]
    %v235 = vld [vmem:[%s0 + $0x30] sm:$0xf]
    %v236 = vld [vmem:[%s0 + $0x34] sm:$0xf]
    %v237 = vld [vmem:[%s0 + $0x38] sm:$0xf]
    %v238 = vld [vmem:[%s0 + $0x3c] sm:$0xf]
    %v239 = vld [vmem:[%s0 + $0x40] sm:$0xf]
    %v240 = vld [vmem:[%s0 + $0x44] sm:$0xf]
    %v241 = vld [vmem:[%s0 + $0x48] sm:$0xf]
    %v242 = vld [vmem:[%s0 + $0x4c] sm:$0xf]
    %v243 = vld [vmem:[%s0 + $0x50] sm:$0xf]
    %v244 = vld [vmem:[%s0 + $0x54] sm:$0xf]
    %v245 = vld [vmem:[%s0 + $0x58] sm:$0xf]
    %v246 = vld [vmem:[%s0 + $0x5c] sm:$0xf]
    %v247 = vld [vmem:[%s0 + $0x60] sm:$0xf]
    %v248 = vld [vmem:[%s0 + $0x64] sm:$0xf]
    %v249 = vld [vmem:[%s0 + $0x68] sm:$0xf]
    %v250 = vld [vmem:[%s0 + $0x6c] sm:$0xf]
    %v251 = vld [vmem:[%s0 + $0x70] sm:$0xf]
    %v252 = vld [vmem:[%s0 + $0x74] sm:$0xf]
    %v253 = vld [vmem:[%s0 + $0x78] sm:$0xf]
    %v254 = vld [vmem:[%s0 + $0x7c] sm:$0xf]
    %v255 = vld [vmem:[%s0 + $0x80] sm:$0xf]
    %v256 = vld [vmem:[%s0 + $0x84] sm:$0xf]
    %v257 = vld [vmem:[%s0 + $0x88] sm:$0xf]
    %v258 = vld [vmem:[%s0 + $0x8c] sm:$0xf]
    %v259 = vld [vmem:[%s0 + $0x90] sm:$0xf]
    %v260 = vld [vmem:[%s0 + $0x94] sm:$0xf]
    %v261 = vld [vmem:[%s0 + $0x98] sm:$0xf]
    %v262 = vld [vmem:[%s0 + $0x9c] sm:$0xf]
    %v263 = vld [vmem:[%s0 + $0xa0] sm:$0xf]
    %v264 = vld [vmem:[%s0 + $0xa4] sm:$0xf]
    %v265 = vld [vmem:[%s0 + $0xa8] sm:$0xf]
    %v266 = vld [vmem:[%s0 + $0xac] sm:$0xf]
    %v267 = vld [vmem:[%s0 + $0xb0] sm:$0xf]
    %v268 = vld [vmem:[%s0 + $0xb4] sm:$0xf]
    %v269 = vld [vmem:[%s0 + $0xb8] sm:$0xf]
    %v270 = vld [vmem:[%s0 + $0xbc] sm:$0xf]
    %v271 = vld [vmem:[%s0 + $0xc0] sm:$0xf]
    %v272 = vld [vmem:[%s0 + $0xc4] sm:$0xf]
    %v273 = vld [vmem:[%s0 + $0xc8] sm:$0xf]
    %v274 = vld [vmem:[%s0 + $0xcc] sm:$0xf]
    %v275 = vld [vmem:[%s0 + $0xd0] sm:$0xf]
    %v276 = vld [vmem:[%s0 + $0xd4] sm:$0xf]
    %v277 = vld [vmem:[%s0 + $0xd8] sm:$0xf]
    %v278 = vld [vmem:[%s0 + $0xdc] sm:$0xf]
    %v279 = vld [vmem:[%s0 + $0xe0] sm:$0xf]
    %v280 = vld [vmem:[%s0 + $0xe4] sm:$0xf]
    %v281 = vld [vmem:[%s0 + $0xe8] sm:$0xf]
    %v282 = vld [vmem:[%s0 + $0xec] sm:$0xf]
    %v283 = vld [vmem:[%s0 + $0xf0] sm:$0xf]
    %v284 = vld [vmem:[%s0 + $0xf4] sm:$0xf]
    %v285 = vld [vmem:[%s0 + $0xf8] sm:$0xf]
    %v286 = vld [vmem:[%s0 + $0xfc] sm:$0xf]
    %v287 = vunpack.c.l.bf16 %v223
    %v288 = vunpack.c.l.bf16 %v224
    %v289 = vunpack.c.l.bf16 %v225
    %v290 = vunpack.c.l.bf16 %v226
    %v291 = vunpack.c.l.bf16 %v227
    %v292 = vunpack.c.l.bf16 %v228
    %v293 = vunpack.c.l.bf16 %v229
    %v294 = vunpack.c.l.bf16 %v230
    %v295 = vunpack.c.l.bf16 %v231
    %v296 = vunpack.c.l.bf16 %v232
    %v297 = vunpack.c.l.bf16 %v233
    %v298 = vunpack.c.l.bf16 %v234
    %v299 = vunpack.c.l.bf16 %v235
    %v300 = vunpack.c.l.bf16 %v236
    %v301 = vunpack.c.l.bf16 %v237
    %v302 = vunpack.c.l.bf16 %v238
    %v303 = vunpack.c.l.bf16 %v239
    %v304 = vunpack.c.l.bf16 %v240
    %v305 = vunpack.c.l.bf16 %v241
    %v306 = vunpack.c.l.bf16 %v242
    %v307 = vunpack.c.l.bf16 %v243
    %v308 = vunpack.c.l.bf16 %v244
    %v309 = vunpack.c.l.bf16 %v245
    %v310 = vunpack.c.l.bf16 %v246
    %v311 = vunpack.c.l.bf16 %v247
    %v312 = vunpack.c.l.bf16 %v248
    %v313 = vunpack.c.l.bf16 %v249
    %v314 = vunpack.c.l.bf16 %v250
    %v315 = vunpack.c.l.bf16 %v251
    %v316 = vunpack.c.l.bf16 %v252
    %v317 = vunpack.c.l.bf16 %v253
    %v318 = vunpack.c.l.bf16 %v254
    %v319 = vunpack.c.l.bf16 %v255
    %v320 = vunpack.c.l.bf16 %v256
    %v321 = vunpack.c.l.bf16 %v257
    %v322 = vunpack.c.l.bf16 %v258
    %v323 = vunpack.c.l.bf16 %v259
    %v324 = vunpack.c.l.bf16 %v260
    %v325 = vunpack.c.l.bf16 %v261
    %v326 = vunpack.c.l.bf16 %v262
    %v327 = vunpack.c.l.bf16 %v263
    %v328 = vunpack.c.l.bf16 %v264
    %v329 = vunpack.c.l.bf16 %v265
    %v330 = vunpack.c.l.bf16 %v266
    %v331 = vunpack.c.l.bf16 %v267
    %v332 = vunpack.c.l.bf16 %v268
    %v333 = vunpack.c.l.bf16 %v269
    %v334 = vunpack.c.l.bf16 %v270
    %v335 = vunpack.c.l.bf16 %v271
    %v336 = vunpack.c.l.bf16 %v272
    %v337 = vunpack.c.l.bf16 %v273
    %v338 = vunpack.c.l.bf16 %v274
    %v339 = vunpack.c.l.bf16 %v275
    %v340 = vunpack.c.l.bf16 %v276
    %v341 = vunpack.c.l.bf16 %v277
    %v342 = vunpack.c.l.bf16 %v278
    %v343 = vunpack.c.l.bf16 %v279
    %v344 = vunpack.c.l.bf16 %v280
    %v345 = vunpack.c.l.bf16 %v281
    %v346 = vunpack.c.l.bf16 %v282
    %v347 = vunpack.c.l.bf16 %v283
    %v348 = vunpack.c.l.bf16 %v284
    %v349 = vunpack.c.l.bf16 %v285
    %v350 = vunpack.c.l.bf16 %v286
    %v351 = vxor.u32 %v159, 2147483648
    %v352 = vxor.u32 %v160, 2147483648
    %v353 = vxor.u32 %v161, 2147483648
    %v354 = vxor.u32 %v162, 2147483648
    %v355 = vxor.u32 %v163, 2147483648
    %v356 = vxor.u32 %v164, 2147483648
    %v357 = vxor.u32 %v165, 2147483648
    %v358 = vxor.u32 %v166, 2147483648
    %v359 = vxor.u32 %v167, 2147483648
    %v360 = vxor.u32 %v168, 2147483648
    %v361 = vxor.u32 %v169, 2147483648
    %v362 = vxor.u32 %v170, 2147483648
    %v363 = vxor.u32 %v171, 2147483648
    %v364 = vxor.u32 %v172, 2147483648
    %v365 = vxor.u32 %v173, 2147483648
    %v366 = vxor.u32 %v174, 2147483648
    %v367 = vxor.u32 %v175, 2147483648
    %v368 = vxor.u32 %v176, 2147483648
    %v369 = vxor.u32 %v177, 2147483648
    %v370 = vxor.u32 %v178, 2147483648
    %v371 = vxor.u32 %v179, 2147483648
    %v372 = vxor.u32 %v180, 2147483648
    %v373 = vxor.u32 %v181, 2147483648
    %v374 = vxor.u32 %v182, 2147483648
    %v375 = vxor.u32 %v183, 2147483648
    %v376 = vxor.u32 %v184, 2147483648
    %v377 = vxor.u32 %v185, 2147483648
    %v378 = vxor.u32 %v186, 2147483648
    %v379 = vxor.u32 %v187, 2147483648
    %v380 = vxor.u32 %v188, 2147483648
    %v381 = vxor.u32 %v189, 2147483648
    %v382 = vxor.u32 %v190, 2147483648
    %v383 = vxor.u32 %v191, 2147483648
    %v384 = vxor.u32 %v192, 2147483648
    %v385 = vxor.u32 %v193, 2147483648
    %v386 = vxor.u32 %v194, 2147483648
    %v387 = vxor.u32 %v195, 2147483648
    %v388 = vxor.u32 %v196, 2147483648
    %v389 = vxor.u32 %v197, 2147483648
    %v390 = vxor.u32 %v198, 2147483648
    %v391 = vxor.u32 %v199, 2147483648
    %v392 = vxor.u32 %v200, 2147483648
    %v393 = vxor.u32 %v201, 2147483648
    %v394 = vxor.u32 %v202, 2147483648
    %v395 = vxor.u32 %v203, 2147483648
    %v396 = vxor.u32 %v204, 2147483648
    %v397 = vxor.u32 %v205, 2147483648
    %v398 = vxor.u32 %v206, 2147483648
    %v399 = vxor.u32 %v207, 2147483648
    %v400 = vxor.u32 %v208, 2147483648
    %v401 = vxor.u32 %v209, 2147483648
    %v402 = vxor.u32 %v210, 2147483648
    %v403 = vxor.u32 %v211, 2147483648
    %v404 = vxor.u32 %v212, 2147483648
    %v405 = vxor.u32 %v213, 2147483648
    %v406 = vxor.u32 %v214, 2147483648
    %v407 = vxor.u32 %v215, 2147483648
    %v408 = vxor.u32 %v216, 2147483648
    %v409 = vxor.u32 %v217, 2147483648
    %v410 = vxor.u32 %v218, 2147483648
    %v411 = vxor.u32 %v219, 2147483648
    %v412 = vxor.u32 %v220, 2147483648
    %v413 = vxor.u32 %v221, 2147483648
    %v414 = vxor.u32 %v222, 2147483648
    %v415 = vmul.f32 %v351, 1.442695
    %v416 = vpow.pop %v415
    %v417 = vmul.f32 %v352, 1.442695
    %v418 = vpow.pop %v417
    %v419 = vmul.f32 %v353, 1.442695
    %v420 = vpow.pop %v419
    %v421 = vmul.f32 %v354, 1.442695
    %v422 = vpow.pop %v421
    %v423 = vmul.f32 %v355, 1.442695
    %v424 = vpow.pop %v423
    %v425 = vmul.f32 %v356, 1.442695
    %v426 = vpow.pop %v425
    %v427 = vmul.f32 %v357, 1.442695
    %v428 = vpow.pop %v427
    %v429 = vmul.f32 %v358, 1.442695
    %v430 = vpow.pop %v429
    %v431 = vmul.f32 %v359, 1.442695
    %v432 = vpow.pop %v431
    %v433 = vmul.f32 %v360, 1.442695
    %v434 = vpow.pop %v433
    %v435 = vmul.f32 %v361, 1.442695
    %v436 = vpow.pop %v435
    %v437 = vmul.f32 %v362, 1.442695
    %v438 = vpow.pop %v437
    %v439 = vmul.f32 %v363, 1.442695
    %v440 = vpow.pop %v439
    %v441 = vmul.f32 %v364, 1.442695
    %v442 = vpow.pop %v441
    %v443 = vmul.f32 %v365, 1.442695
    %v444 = vpow.pop %v443
    %v445 = vmul.f32 %v366, 1.442695
    %v446 = vpow.pop %v445
    %v447 = vmul.f32 %v367, 1.442695
    %v448 = vpow.pop %v447
    %v449 = vmul.f32 %v368, 1.442695
    %v450 = vpow.pop %v449
    %v451 = vmul.f32 %v369, 1.442695
    %v452 = vpow.pop %v451
    %v453 = vmul.f32 %v370, 1.442695
    %v454 = vpow.pop %v453
    %v455 = vmul.f32 %v371, 1.442695
    %v456 = vpow.pop %v455
    %v457 = vmul.f32 %v372, 1.442695
    %v458 = vpow.pop %v457
    %v459 = vmul.f32 %v373, 1.442695
    %v460 = vpow.pop %v459
    %v461 = vmul.f32 %v374, 1.442695
    %v462 = vpow.pop %v461
    %v463 = vmul.f32 %v375, 1.442695
    %v464 = vpow.pop %v463
    %v465 = vmul.f32 %v376, 1.442695
    %v466 = vpow.pop %v465
    %v467 = vmul.f32 %v377, 1.442695
    %v468 = vpow.pop %v467
    %v469 = vmul.f32 %v378, 1.442695
    %v470 = vpow.pop %v469
    %v471 = vmul.f32 %v379, 1.442695
    %v472 = vpow.pop %v471
    %v473 = vmul.f32 %v380, 1.442695
    %v474 = vpow.pop %v473
    %v475 = vmul.f32 %v381, 1.442695
    %v476 = vpow.pop %v475
    %v477 = vmul.f32 %v382, 1.442695
    %v478 = vpow.pop %v477
    %v479 = vmul.f32 %v383, 1.442695
    %v480 = vpow.pop %v479
    %v481 = vmul.f32 %v384, 1.442695
    %v482 = vpow.pop %v481
    %v483 = vmul.f32 %v385, 1.442695
    %v484 = vpow.pop %v483
    %v485 = vmul.f32 %v386, 1.442695
    %v486 = vpow.pop %v485
    %v487 = vmul.f32 %v387, 1.442695
    %v488 = vpow.pop %v487
    %v489 = vmul.f32 %v388, 1.442695
    %v490 = vpow.pop %v489
    %v491 = vmul.f32 %v389, 1.442695
    %v492 = vpow.pop %v491
    %v493 = vmul.f32 %v390, 1.442695
    %v494 = vpow.pop %v493
    %v495 = vmul.f32 %v391, 1.442695
    %v496 = vpow.pop %v495
    %v497 = vmul.f32 %v392, 1.442695
    %v498 = vpow.pop %v497
    %v499 = vmul.f32 %v393, 1.442695
    %v500 = vpow.pop %v499
    %v501 = vmul.f32 %v394, 1.442695
    %v502 = vpow.pop %v501
    %v503 = vmul.f32 %v395, 1.442695
    %v504 = vpow.pop %v503
    %v505 = vmul.f32 %v396, 1.442695
    %v506 = vpow.pop %v505
    %v507 = vmul.f32 %v397, 1.442695
    %v508 = vpow.pop %v507
    %v509 = vmul.f32 %v398, 1.442695
    %v510 = vpow.pop %v509
    %v511 = vmul.f32 %v399, 1.442695
    %v512 = vpow.pop %v511
    %v513 = vmul.f32 %v400, 1.442695
    %v514 = vpow.pop %v513
    %v515 = vmul.f32 %v401, 1.442695
    %v516 = vpow.pop %v515
    %v517 = vmul.f32 %v402, 1.442695
    %v518 = vpow.pop %v517
    %v519 = vmul.f32 %v403, 1.442695
    %v520 = vpow.pop %v519
    %v521 = vmul.f32 %v404, 1.442695
    %v522 = vpow.pop %v521
    %v523 = vmul.f32 %v405, 1.442695
    %v524 = vpow.pop %v523
    %v525 = vmul.f32 %v406, 1.442695
    %v526 = vpow.pop %v525
    %v527 = vmul.f32 %v407, 1.442695
    %v528 = vpow.pop %v527
    %v529 = vmul.f32 %v408, 1.442695
    %v530 = vpow.pop %v529
    %v531 = vmul.f32 %v409, 1.442695
    %v532 = vpow.pop %v531
    %v533 = vmul.f32 %v410, 1.442695
    %v534 = vpow.pop %v533
    %v535 = vmul.f32 %v411, 1.442695
    %v536 = vpow.pop %v535
    %v537 = vmul.f32 %v412, 1.442695
    %v538 = vpow.pop %v537
    %v539 = vmul.f32 %v413, 1.442695
    %v540 = vpow.pop %v539
    %v541 = vmul.f32 %v414, 1.442695
    %v542 = vpow.pop %v541
    %v543 = vadd.f32 %v416, 1.0
    %v544 = vadd.f32 %v418, 1.0
    %v545 = vadd.f32 %v420, 1.0
    %v546 = vadd.f32 %v422, 1.0
    %v547 = vadd.f32 %v424, 1.0
    %v548 = vadd.f32 %v426, 1.0
    %v549 = vadd.f32 %v428, 1.0
    %v550 = vadd.f32 %v430, 1.0
    %v551 = vadd.f32 %v432, 1.0
    %v552 = vadd.f32 %v434, 1.0
    %v553 = vadd.f32 %v436, 1.0
    %v554 = vadd.f32 %v438, 1.0
    %v555 = vadd.f32 %v440, 1.0
    %v556 = vadd.f32 %v442, 1.0
    %v557 = vadd.f32 %v444, 1.0
    %v558 = vadd.f32 %v446, 1.0
    %v559 = vadd.f32 %v448, 1.0
    %v560 = vadd.f32 %v450, 1.0
    %v561 = vadd.f32 %v452, 1.0
    %v562 = vadd.f32 %v454, 1.0
    %v563 = vadd.f32 %v456, 1.0
    %v564 = vadd.f32 %v458, 1.0
    %v565 = vadd.f32 %v460, 1.0
    %v566 = vadd.f32 %v462, 1.0
    %v567 = vadd.f32 %v464, 1.0
    %v568 = vadd.f32 %v466, 1.0
    %v569 = vadd.f32 %v468, 1.0
    %v570 = vadd.f32 %v470, 1.0
    %v571 = vadd.f32 %v472, 1.0
    %v572 = vadd.f32 %v474, 1.0
    %v573 = vadd.f32 %v476, 1.0
    %v574 = vadd.f32 %v478, 1.0
    %v575 = vadd.f32 %v480, 1.0
    %v576 = vadd.f32 %v482, 1.0
    %v577 = vadd.f32 %v484, 1.0
    %v578 = vadd.f32 %v486, 1.0
    %v579 = vadd.f32 %v488, 1.0
    %v580 = vadd.f32 %v490, 1.0
    %v581 = vadd.f32 %v492, 1.0
    %v582 = vadd.f32 %v494, 1.0
    %v583 = vadd.f32 %v496, 1.0
    %v584 = vadd.f32 %v498, 1.0
    %v585 = vadd.f32 %v500, 1.0
    %v586 = vadd.f32 %v502, 1.0
    %v587 = vadd.f32 %v504, 1.0
    %v588 = vadd.f32 %v506, 1.0
    %v589 = vadd.f32 %v508, 1.0
    %v590 = vadd.f32 %v510, 1.0
    %v591 = vadd.f32 %v512, 1.0
    %v592 = vadd.f32 %v514, 1.0
    %v593 = vadd.f32 %v516, 1.0
    %v594 = vadd.f32 %v518, 1.0
    %v595 = vadd.f32 %v520, 1.0
    %v596 = vadd.f32 %v522, 1.0
    %v597 = vadd.f32 %v524, 1.0
    %v598 = vadd.f32 %v526, 1.0
    %v599 = vadd.f32 %v528, 1.0
    %v600 = vadd.f32 %v530, 1.0
    %v601 = vadd.f32 %v532, 1.0
    %v602 = vadd.f32 %v534, 1.0
    %v603 = vadd.f32 %v536, 1.0
    %v604 = vadd.f32 %v538, 1.0
    %v605 = vadd.f32 %v540, 1.0
    %v606 = vadd.f32 %v542, 1.0
    %v607 = vrcp.pop %v543
    %v608 = vmul.f32 1.0, %v607
    %v609 = vrcp.pop %v544
    %v610 = vmul.f32 1.0, %v609
    %v611 = vrcp.pop %v545
    %v612 = vmul.f32 1.0, %v611
    %v613 = vrcp.pop %v546
    %v614 = vmul.f32 1.0, %v613
    %v615 = vrcp.pop %v547
    %v616 = vmul.f32 1.0, %v615
    %v617 = vrcp.pop %v548
    %v618 = vmul.f32 1.0, %v617
    %v619 = vrcp.pop %v549
    %v620 = vmul.f32 1.0, %v619
    %v621 = vrcp.pop %v550
    %v622 = vmul.f32 1.0, %v621
    %v623 = vrcp.pop %v551
    %v624 = vmul.f32 1.0, %v623
    %v625 = vrcp.pop %v552
    %v626 = vmul.f32 1.0, %v625
    %v627 = vrcp.pop %v553
    %v628 = vmul.f32 1.0, %v627
    %v629 = vrcp.pop %v554
    %v630 = vmul.f32 1.0, %v629
    %v631 = vrcp.pop %v555
    %v632 = vmul.f32 1.0, %v631
    %v633 = vrcp.pop %v556
    %v634 = vmul.f32 1.0, %v633
    %v635 = vrcp.pop %v557
    %v636 = vmul.f32 1.0, %v635
    %v637 = vrcp.pop %v558
    %v638 = vmul.f32 1.0, %v637
    %v639 = vrcp.pop %v559
    %v640 = vmul.f32 1.0, %v639
    %v641 = vrcp.pop %v560
    %v642 = vmul.f32 1.0, %v641
    %v643 = vrcp.pop %v561
    %v644 = vmul.f32 1.0, %v643
    %v645 = vrcp.pop %v562
    %v646 = vmul.f32 1.0, %v645
    %v647 = vrcp.pop %v563
    %v648 = vmul.f32 1.0, %v647
    %v649 = vrcp.pop %v564
    %v650 = vmul.f32 1.0, %v649
    %v651 = vrcp.pop %v565
    %v652 = vmul.f32 1.0, %v651
    %v653 = vrcp.pop %v566
    %v654 = vmul.f32 1.0, %v653
    %v655 = vrcp.pop %v567
    %v656 = vmul.f32 1.0, %v655
    %v657 = vrcp.pop %v568
    %v658 = vmul.f32 1.0, %v657
    %v659 = vrcp.pop %v569
    %v660 = vmul.f32 1.0, %v659
    %v661 = vrcp.pop %v570
    %v662 = vmul.f32 1.0, %v661
    %v663 = vrcp.pop %v571
    %v664 = vmul.f32 1.0, %v663
    %v665 = vrcp.pop %v572
    %v666 = vmul.f32 1.0, %v665
    %v667 = vrcp.pop %v573
    %v668 = vmul.f32 1.0, %v667
    %v669 = vrcp.pop %v574
    %v670 = vmul.f32 1.0, %v669
    %v671 = vrcp.pop %v575
    %v672 = vmul.f32 1.0, %v671
    %v673 = vrcp.pop %v576
    %v674 = vmul.f32 1.0, %v673
    %v675 = vrcp.pop %v577
    %v676 = vmul.f32 1.0, %v675
    %v677 = vrcp.pop %v578
    %v678 = vmul.f32 1.0, %v677
    %v679 = vrcp.pop %v579
    %v680 = vmul.f32 1.0, %v679
    %v681 = vrcp.pop %v580
    %v682 = vmul.f32 1.0, %v681
    %v683 = vrcp.pop %v581
    %v684 = vmul.f32 1.0, %v683
    %v685 = vrcp.pop %v582
    %v686 = vmul.f32 1.0, %v685
    %v687 = vrcp.pop %v583
    %v688 = vmul.f32 1.0, %v687
    %v689 = vrcp.pop %v584
    %v690 = vmul.f32 1.0, %v689
    %v691 = vrcp.pop %v585
    %v692 = vmul.f32 1.0, %v691
    %v693 = vrcp.pop %v586
    %v694 = vmul.f32 1.0, %v693
    %v695 = vrcp.pop %v587
    %v696 = vmul.f32 1.0, %v695
    %v697 = vrcp.pop %v588
    %v698 = vmul.f32 1.0, %v697
    %v699 = vrcp.pop %v589
    %v700 = vmul.f32 1.0, %v699
    %v701 = vrcp.pop %v590
    %v702 = vmul.f32 1.0, %v701
    %v703 = vrcp.pop %v591
    %v704 = vmul.f32 1.0, %v703
    %v705 = vrcp.pop %v592
    %v706 = vmul.f32 1.0, %v705
    %v707 = vrcp.pop %v593
    %v708 = vmul.f32 1.0, %v707
    %v709 = vrcp.pop %v594
    %v710 = vmul.f32 1.0, %v709
    %v711 = vrcp.pop %v595
    %v712 = vmul.f32 1.0, %v711
    %v713 = vrcp.pop %v596
    %v714 = vmul.f32 1.0, %v713
    %v715 = vrcp.pop %v597
    %v716 = vmul.f32 1.0, %v715
    %v717 = vrcp.pop %v598
    %v718 = vmul.f32 1.0, %v717
    %v719 = vrcp.pop %v599
    %v720 = vmul.f32 1.0, %v719
    %v721 = vrcp.pop %v600
    %v722 = vmul.f32 1.0, %v721
    %v723 = vrcp.pop %v601
    %v724 = vmul.f32 1.0, %v723
    %v725 = vrcp.pop %v602
    %v726 = vmul.f32 1.0, %v725
    %v727 = vrcp.pop %v603
    %v728 = vmul.f32 1.0, %v727
    %v729 = vrcp.pop %v604
    %v730 = vmul.f32 1.0, %v729
    %v731 = vrcp.pop %v605
    %v732 = vmul.f32 1.0, %v731
    %v733 = vrcp.pop %v606
    %v734 = vmul.f32 1.0, %v733
    %736 = vset.pattern.permute.xlu0 0
    %737 = vperm.xlu0 %736, %v608
    %v738 = vpop.permute.xlu0 %737
    %741 = vset.pattern.permute.xlu0 0
    %742 = vperm.xlu0 %741, %v610
    %v743 = vpop.permute.xlu0 %742
    %746 = vset.pattern.permute.xlu0 0
    %747 = vperm.xlu0 %746, %v612
    %v748 = vpop.permute.xlu0 %747
    %751 = vset.pattern.permute.xlu0 0
    %752 = vperm.xlu0 %751, %v614
    %v753 = vpop.permute.xlu0 %752
    %756 = vset.pattern.permute.xlu0 0
    %757 = vperm.xlu0 %756, %v616
    %v758 = vpop.permute.xlu0 %757
    %761 = vset.pattern.permute.xlu0 0
    %762 = vperm.xlu0 %761, %v618
    %v763 = vpop.permute.xlu0 %762
    %766 = vset.pattern.permute.xlu0 0
    %767 = vperm.xlu0 %766, %v620
    %v768 = vpop.permute.xlu0 %767
    %771 = vset.pattern.permute.xlu0 0
    %772 = vperm.xlu0 %771, %v622
    %v773 = vpop.permute.xlu0 %772
    %776 = vset.pattern.permute.xlu0 0
    %777 = vperm.xlu0 %776, %v624
    %v778 = vpop.permute.xlu0 %777
    %781 = vset.pattern.permute.xlu0 0
    %782 = vperm.xlu0 %781, %v626
    %v783 = vpop.permute.xlu0 %782
    %786 = vset.pattern.permute.xlu0 0
    %787 = vperm.xlu0 %786, %v628
    %v788 = vpop.permute.xlu0 %787
    %791 = vset.pattern.permute.xlu0 0
    %792 = vperm.xlu0 %791, %v630
    %v793 = vpop.permute.xlu0 %792
    %796 = vset.pattern.permute.xlu0 0
    %797 = vperm.xlu0 %796, %v632
    %v798 = vpop.permute.xlu0 %797
    %801 = vset.pattern.permute.xlu0 0
    %802 = vperm.xlu0 %801, %v634
    %v803 = vpop.permute.xlu0 %802
    %806 = vset.pattern.permute.xlu0 0
    %807 = vperm.xlu0 %806, %v636
    %v808 = vpop.permute.xlu0 %807
    %811 = vset.pattern.permute.xlu0 0
    %812 = vperm.xlu0 %811, %v638
    %v813 = vpop.permute.xlu0 %812
    %816 = vset.pattern.permute.xlu0 0
    %817 = vperm.xlu0 %816, %v640
    %v818 = vpop.permute.xlu0 %817
    %821 = vset.pattern.permute.xlu0 0
    %822 = vperm.xlu0 %821, %v642
    %v823 = vpop.permute.xlu0 %822
    %826 = vset.pattern.permute.xlu0 0
    %827 = vperm.xlu0 %826, %v644
    %v828 = vpop.permute.xlu0 %827
    %831 = vset.pattern.permute.xlu0 0
    %832 = vperm.xlu0 %831, %v646
    %v833 = vpop.permute.xlu0 %832
    %836 = vset.pattern.permute.xlu0 0
    %837 = vperm.xlu0 %836, %v648
    %v838 = vpop.permute.xlu0 %837
    %841 = vset.pattern.permute.xlu0 0
    %842 = vperm.xlu0 %841, %v650
    %v843 = vpop.permute.xlu0 %842
    %846 = vset.pattern.permute.xlu0 0
    %847 = vperm.xlu0 %846, %v652
    %v848 = vpop.permute.xlu0 %847
    %851 = vset.pattern.permute.xlu0 0
    %852 = vperm.xlu0 %851, %v654
    %v853 = vpop.permute.xlu0 %852
    %856 = vset.pattern.permute.xlu0 0
    %857 = vperm.xlu0 %856, %v656
    %v858 = vpop.permute.xlu0 %857
    %861 = vset.pattern.permute.xlu0 0
    %862 = vperm.xlu0 %861, %v658
    %v863 = vpop.permute.xlu0 %862
    %866 = vset.pattern.permute.xlu0 0
    %867 = vperm.xlu0 %866, %v660
    %v868 = vpop.permute.xlu0 %867
    %871 = vset.pattern.permute.xlu0 0
    %872 = vperm.xlu0 %871, %v662
    %v873 = vpop.permute.xlu0 %872
    %876 = vset.pattern.permute.xlu0 0
    %877 = vperm.xlu0 %876, %v664
    %v878 = vpop.permute.xlu0 %877
    %881 = vset.pattern.permute.xlu0 0
    %882 = vperm.xlu0 %881, %v666
    %v883 = vpop.permute.xlu0 %882
    %886 = vset.pattern.permute.xlu0 0
    %887 = vperm.xlu0 %886, %v668
    %v888 = vpop.permute.xlu0 %887
    %891 = vset.pattern.permute.xlu0 0
    %892 = vperm.xlu0 %891, %v670
    %v893 = vpop.permute.xlu0 %892
    %896 = vset.pattern.permute.xlu0 0
    %897 = vperm.xlu0 %896, %v672
    %v898 = vpop.permute.xlu0 %897
    %901 = vset.pattern.permute.xlu0 0
    %902 = vperm.xlu0 %901, %v674
    %v903 = vpop.permute.xlu0 %902
    %906 = vset.pattern.permute.xlu0 0
    %907 = vperm.xlu0 %906, %v676
    %v908 = vpop.permute.xlu0 %907
    %911 = vset.pattern.permute.xlu0 0
    %912 = vperm.xlu0 %911, %v678
    %v913 = vpop.permute.xlu0 %912
    %916 = vset.pattern.permute.xlu0 0
    %917 = vperm.xlu0 %916, %v680
    %v918 = vpop.permute.xlu0 %917
    %921 = vset.pattern.permute.xlu0 0
    %922 = vperm.xlu0 %921, %v682
    %v923 = vpop.permute.xlu0 %922
    %926 = vset.pattern.permute.xlu0 0
    %927 = vperm.xlu0 %926, %v684
    %v928 = vpop.permute.xlu0 %927
    %931 = vset.pattern.permute.xlu0 0
    %932 = vperm.xlu0 %931, %v686
    %v933 = vpop.permute.xlu0 %932
    %936 = vset.pattern.permute.xlu0 0
    %937 = vperm.xlu0 %936, %v688
    %v938 = vpop.permute.xlu0 %937
    %941 = vset.pattern.permute.xlu0 0
    %942 = vperm.xlu0 %941, %v690
    %v943 = vpop.permute.xlu0 %942
    %946 = vset.pattern.permute.xlu0 0
    %947 = vperm.xlu0 %946, %v692
    %v948 = vpop.permute.xlu0 %947
    %951 = vset.pattern.permute.xlu0 0
    %952 = vperm.xlu0 %951, %v694
    %v953 = vpop.permute.xlu0 %952
    %956 = vset.pattern.permute.xlu0 0
    %957 = vperm.xlu0 %956, %v696
    %v958 = vpop.permute.xlu0 %957
    %961 = vset.pattern.permute.xlu0 0
    %962 = vperm.xlu0 %961, %v698
    %v963 = vpop.permute.xlu0 %962
    %966 = vset.pattern.permute.xlu0 0
    %967 = vperm.xlu0 %966, %v700
    %v968 = vpop.permute.xlu0 %967
    %971 = vset.pattern.permute.xlu0 0
    %972 = vperm.xlu0 %971, %v702
    %v973 = vpop.permute.xlu0 %972
    %976 = vset.pattern.permute.xlu0 0
    %977 = vperm.xlu0 %976, %v704
    %v978 = vpop.permute.xlu0 %977
    %981 = vset.pattern.permute.xlu0 0
    %982 = vperm.xlu0 %981, %v706
    %v983 = vpop.permute.xlu0 %982
    %986 = vset.pattern.permute.xlu0 0
    %987 = vperm.xlu0 %986, %v708
    %v988 = vpop.permute.xlu0 %987
    %991 = vset.pattern.permute.xlu0 0
    %992 = vperm.xlu0 %991, %v710
    %v993 = vpop.permute.xlu0 %992
    %996 = vset.pattern.permute.xlu0 0
    %997 = vperm.xlu0 %996, %v712
    %v998 = vpop.permute.xlu0 %997
    %1001 = vset.pattern.permute.xlu0 0
    %1002 = vperm.xlu0 %1001, %v714
    %v1003 = vpop.permute.xlu0 %1002
    %1006 = vset.pattern.permute.xlu0 0
    %1007 = vperm.xlu0 %1006, %v716
    %v1008 = vpop.permute.xlu0 %1007
    %1011 = vset.pattern.permute.xlu0 0
    %1012 = vperm.xlu0 %1011, %v718
    %v1013 = vpop.permute.xlu0 %1012
    %1016 = vset.pattern.permute.xlu0 0
    %1017 = vperm.xlu0 %1016, %v720
    %v1018 = vpop.permute.xlu0 %1017
    %1021 = vset.pattern.permute.xlu0 0
    %1022 = vperm.xlu0 %1021, %v722
    %v1023 = vpop.permute.xlu0 %1022
    %1026 = vset.pattern.permute.xlu0 0
    %1027 = vperm.xlu0 %1026, %v724
    %v1028 = vpop.permute.xlu0 %1027
    %1031 = vset.pattern.permute.xlu0 0
    %1032 = vperm.xlu0 %1031, %v726
    %v1033 = vpop.permute.xlu0 %1032
    %1036 = vset.pattern.permute.xlu0 0
    %1037 = vperm.xlu0 %1036, %v728
    %v1038 = vpop.permute.xlu0 %1037
    %1041 = vset.pattern.permute.xlu0 0
    %1042 = vperm.xlu0 %1041, %v730
    %v1043 = vpop.permute.xlu0 %1042
    %1046 = vset.pattern.permute.xlu0 0
    %1047 = vperm.xlu0 %1046, %v732
    %v1048 = vpop.permute.xlu0 %1047
    %1051 = vset.pattern.permute.xlu0 0
    %1052 = vperm.xlu0 %1051, %v734
    %v1053 = vpop.permute.xlu0 %1052
    %v1055 = vmul.f32 %v287, %v738
    %v1056 = vmul.f32 %v288, %v743
    %v1057 = vmul.f32 %v289, %v748
    %v1058 = vmul.f32 %v290, %v753
    %v1059 = vmul.f32 %v291, %v758
    %v1060 = vmul.f32 %v292, %v763
    %v1061 = vmul.f32 %v293, %v768
    %v1062 = vmul.f32 %v294, %v773
    %v1063 = vmul.f32 %v295, %v778
    %v1064 = vmul.f32 %v296, %v783
    %v1065 = vmul.f32 %v297, %v788
    %v1066 = vmul.f32 %v298, %v793
    %v1067 = vmul.f32 %v299, %v798
    %v1068 = vmul.f32 %v300, %v803
    %v1069 = vmul.f32 %v301, %v808
    %v1070 = vmul.f32 %v302, %v813
    %v1071 = vmul.f32 %v303, %v818
    %v1072 = vmul.f32 %v304, %v823
    %v1073 = vmul.f32 %v305, %v828
    %v1074 = vmul.f32 %v306, %v833
    %v1075 = vmul.f32 %v307, %v838
    %v1076 = vmul.f32 %v308, %v843
    %v1077 = vmul.f32 %v309, %v848
    %v1078 = vmul.f32 %v310, %v853
    %v1079 = vmul.f32 %v311, %v858
    %v1080 = vmul.f32 %v312, %v863
    %v1081 = vmul.f32 %v313, %v868
    %v1082 = vmul.f32 %v314, %v873
    %v1083 = vmul.f32 %v315, %v878
    %v1084 = vmul.f32 %v316, %v883
    %v1085 = vmul.f32 %v317, %v888
    %v1086 = vmul.f32 %v318, %v893
    %v1087 = vmul.f32 %v319, %v898
    %v1088 = vmul.f32 %v320, %v903
    %v1089 = vmul.f32 %v321, %v908
    %v1090 = vmul.f32 %v322, %v913
    %v1091 = vmul.f32 %v323, %v918
    %v1092 = vmul.f32 %v324, %v923
    %v1093 = vmul.f32 %v325, %v928
    %v1094 = vmul.f32 %v326, %v933
    %v1095 = vmul.f32 %v327, %v938
    %v1096 = vmul.f32 %v328, %v943
    %v1097 = vmul.f32 %v329, %v948
    %v1098 = vmul.f32 %v330, %v953
    %v1099 = vmul.f32 %v331, %v958
    %v1100 = vmul.f32 %v332, %v963
    %v1101 = vmul.f32 %v333, %v968
    %v1102 = vmul.f32 %v334, %v973
    %v1103 = vmul.f32 %v335, %v978
    %v1104 = vmul.f32 %v336, %v983
    %v1105 = vmul.f32 %v337, %v988
    %v1106 = vmul.f32 %v338, %v993
    %v1107 = vmul.f32 %v339, %v998
    %v1108 = vmul.f32 %v340, %v1003
    %v1109 = vmul.f32 %v341, %v1008
    %v1110 = vmul.f32 %v342, %v1013
    %v1111 = vmul.f32 %v343, %v1018
    %v1112 = vmul.f32 %v344, %v1023
    %v1113 = vmul.f32 %v345, %v1028
    %v1114 = vmul.f32 %v346, %v1033
    %v1115 = vmul.f32 %v347, %v1038
    %v1116 = vmul.f32 %v348, %v1043
    %v1117 = vmul.f32 %v349, %v1048
    %v1118 = vmul.f32 %v350, %v1053
    %vm1119 = vcmask 64512
    %1120 = vst.msk [vmem:[%s3] sm:$0xff] %vm1119, %v1055
    %1121 = vst.msk [vmem:[%s3 + $0x8] sm:$0xff] %vm1119, %v1056
    %1122 = vst.msk [vmem:[%s3 + $0x10] sm:$0xff] %vm1119, %v1057
    %1123 = vst.msk [vmem:[%s3 + $0x18] sm:$0xff] %vm1119, %v1058
    %1124 = vst.msk [vmem:[%s3 + $0x20] sm:$0xff] %vm1119, %v1059
    %1125 = vst.msk [vmem:[%s3 + $0x28] sm:$0xff] %vm1119, %v1060
    %1126 = vst.msk [vmem:[%s3 + $0x30] sm:$0xff] %vm1119, %v1061
    %1127 = vst.msk [vmem:[%s3 + $0x38] sm:$0xff] %vm1119, %v1062
    %1128 = vst.msk [vmem:[%s3 + $0x40] sm:$0xff] %vm1119, %v1063
    %1129 = vst.msk [vmem:[%s3 + $0x48] sm:$0xff] %vm1119, %v1064
    %1130 = vst.msk [vmem:[%s3 + $0x50] sm:$0xff] %vm1119, %v1065
    %1131 = vst.msk [vmem:[%s3 + $0x58] sm:$0xff] %vm1119, %v1066
    %1132 = vst.msk [vmem:[%s3 + $0x60] sm:$0xff] %vm1119, %v1067
    %1133 = vst.msk [vmem:[%s3 + $0x68] sm:$0xff] %vm1119, %v1068
    %1134 = vst.msk [vmem:[%s3 + $0x70] sm:$0xff] %vm1119, %v1069
    %1135 = vst.msk [vmem:[%s3 + $0x78] sm:$0xff] %vm1119, %v1070
    %1136 = vst.msk [vmem:[%s3 + $0x80] sm:$0xff] %vm1119, %v1071
    %1137 = vst.msk [vmem:[%s3 + $0x88] sm:$0xff] %vm1119, %v1072
    %1138 = vst.msk [vmem:[%s3 + $0x90] sm:$0xff] %vm1119, %v1073
    %1139 = vst.msk [vmem:[%s3 + $0x98] sm:$0xff] %vm1119, %v1074
    %1140 = vst.msk [vmem:[%s3 + $0xa0] sm:$0xff] %vm1119, %v1075
    %1141 = vst.msk [vmem:[%s3 + $0xa8] sm:$0xff] %vm1119, %v1076
    %1142 = vst.msk [vmem:[%s3 + $0xb0] sm:$0xff] %vm1119, %v1077
    %1143 = vst.msk [vmem:[%s3 + $0xb8] sm:$0xff] %vm1119, %v1078
    %1144 = vst.msk [vmem:[%s3 + $0xc0] sm:$0xff] %vm1119, %v1079
    %1145 = vst.msk [vmem:[%s3 + $0xc8] sm:$0xff] %vm1119, %v1080
    %1146 = vst.msk [vmem:[%s3 + $0xd0] sm:$0xff] %vm1119, %v1081
    %1147 = vst.msk [vmem:[%s3 + $0xd8] sm:$0xff] %vm1119, %v1082
    %1148 = vst.msk [vmem:[%s3 + $0xe0] sm:$0xff] %vm1119, %v1083
    %1149 = vst.msk [vmem:[%s3 + $0xe8] sm:$0xff] %vm1119, %v1084
    %1150 = vst.msk [vmem:[%s3 + $0xf0] sm:$0xff] %vm1119, %v1085
    %1151 = vst.msk [vmem:[%s3 + $0xf8] sm:$0xff] %vm1119, %v1086
    %1152 = vst.msk [vmem:[%s3 + $0x100] sm:$0xff] %vm1119, %v1087
    %1153 = vst.msk [vmem:[%s3 + $0x108] sm:$0xff] %vm1119, %v1088
    %1154 = vst.msk [vmem:[%s3 + $0x110] sm:$0xff] %vm1119, %v1089
    %1155 = vst.msk [vmem:[%s3 + $0x118] sm:$0xff] %vm1119, %v1090
    %1156 = vst.msk [vmem:[%s3 + $0x120] sm:$0xff] %vm1119, %v1091
    %1157 = vst.msk [vmem:[%s3 + $0x128] sm:$0xff] %vm1119, %v1092
    %1158 = vst.msk [vmem:[%s3 + $0x130] sm:$0xff] %vm1119, %v1093
    %1159 = vst.msk [vmem:[%s3 + $0x138] sm:$0xff] %vm1119, %v1094
    %1160 = vst.msk [vmem:[%s3 + $0x140] sm:$0xff] %vm1119, %v1095
    %1161 = vst.msk [vmem:[%s3 + $0x148] sm:$0xff] %vm1119, %v1096
    %1162 = vst.msk [vmem:[%s3 + $0x150] sm:$0xff] %vm1119, %v1097
    %1163 = vst.msk [vmem:[%s3 + $0x158] sm:$0xff] %vm1119, %v1098
    %1164 = vst.msk [vmem:[%s3 + $0x160] sm:$0xff] %vm1119, %v1099
    %1165 = vst.msk [vmem:[%s3 + $0x168] sm:$0xff] %vm1119, %v1100
    %1166 = vst.msk [vmem:[%s3 + $0x170] sm:$0xff] %vm1119, %v1101
    %1167 = vst.msk [vmem:[%s3 + $0x178] sm:$0xff] %vm1119, %v1102
    %1168 = vst.msk [vmem:[%s3 + $0x180] sm:$0xff] %vm1119, %v1103
    %1169 = vst.msk [vmem:[%s3 + $0x188] sm:$0xff] %vm1119, %v1104
    %1170 = vst.msk [vmem:[%s3 + $0x190] sm:$0xff] %vm1119, %v1105
    %1171 = vst.msk [vmem:[%s3 + $0x198] sm:$0xff] %vm1119, %v1106
    %1172 = vst.msk [vmem:[%s3 + $0x1a0] sm:$0xff] %vm1119, %v1107
    %1173 = vst.msk [vmem:[%s3 + $0x1a8] sm:$0xff] %vm1119, %v1108
    %1174 = vst.msk [vmem:[%s3 + $0x1b0] sm:$0xff] %vm1119, %v1109
    %1175 = vst.msk [vmem:[%s3 + $0x1b8] sm:$0xff] %vm1119, %v1110
    %1176 = vst.msk [vmem:[%s3 + $0x1c0] sm:$0xff] %vm1119, %v1111
    %1177 = vst.msk [vmem:[%s3 + $0x1c8] sm:$0xff] %vm1119, %v1112
    %1178 = vst.msk [vmem:[%s3 + $0x1d0] sm:$0xff] %vm1119, %v1113
    %1179 = vst.msk [vmem:[%s3 + $0x1d8] sm:$0xff] %vm1119, %v1114
    %1180 = vst.msk [vmem:[%s3 + $0x1e0] sm:$0xff] %vm1119, %v1115
    %1181 = vst.msk [vmem:[%s3 + $0x1e8] sm:$0xff] %vm1119, %v1116
    %1182 = vst.msk [vmem:[%s3 + $0x1f0] sm:$0xff] %vm1119, %v1117
    %1183 = vst.msk [vmem:[%s3 + $0x1f8] sm:$0xff] %vm1119, %v1118
    // Predicated region
    $region18: #{attention_block_forward.5} parent=1 // pred_check
      _
    $region19: #{attention_block_forward.5} parent=1 // pred_check_branch
      %1185 = sbr.rel (0) target = $region21
    $region20: #{attention_block_forward.5} parent=1 // pred_region
      _
    $region21: #{attention_block_forward.5} parent=1 // pred_fallthru
      _
    // Predicated region
    $region22: #{attention_block_forward.5} parent=1 // pred_check
      _
    $region23: #{attention_block_forward.5} parent=1 // pred_check_branch
      %1187 = sbr.rel (0) target = $region25
    $region24: #{attention_block_forward.5} parent=1 // pred_region
      _
    $region25: #{attention_block_forward.5} parent=1 // pred_fallthru
      _
    %1188 = vsyncpa [#allocation3], 1

// kernel: attention_block_forward.3
$region0: #{attention_block_forward.3}
  #allocation0 [shape = 'u32[]', space=smem, size = 0x4, offset = 0x4, fixed_abs, tag = 'smem constant byte address 0x4 - core index']
  #allocation1 [shape = 'u32[144,128]{1,0:T(1,128)}', space=vmem, size = 0x12000, scoped, tag = 'internal scratch']
  %s0 = inlined_call_operand.vmem [shape: bf16[512,8], index: 0, kind: input, shape index: {}]
  %s1 = inlined_call_operand.vmem [shape: bf16[512,8], index: 1, kind: input, shape index: {}]
  %s2 = inlined_call_operand.vmem [shape: bf16[8,4], index: 2, kind: input, shape index: {}]
  %s3 = inlined_call_operand.vmem [shape: bf16[8,4], index: 3, kind: input, shape index: {}]
  %s4 = inlined_call_operand.vmem [shape: f32[1,4,4], index: 4, kind: output, shape index: {}]
  %s5 = sld [smem:[#allocation0]]
  $region26: #{attention_block_forward.3} parent=0
    _
  %s7 = ssub.s32 1, %s5
  %s8 = scalar_select 0, %s7, %s5
  // Predicated region
  $region2: #{attention_block_forward.3} parent=0 // pred_check
    _
  $region3: #{attention_block_forward.3} parent=0 // pred_check_branch
    %10 = sbr.rel (0) target = $region5
  $region4: #{attention_block_forward.3} parent=0 // pred_region
    _
  $region5: #{attention_block_forward.3} parent=0 // pred_fallthru
    _
  // Predicated region
  $region6: #{attention_block_forward.3} parent=0 // pred_check
    _
  $region7: #{attention_block_forward.3} parent=0 // pred_check_branch
    %12 = sbr.rel (0) target = $region9
  $region8: #{attention_block_forward.3} parent=0 // pred_region
    _
  $region9: #{attention_block_forward.3} parent=0 // pred_fallthru
    _
  // Predicated region
  $region10: #{attention_block_forward.3} parent=0 // pred_check
    _
  $region11: #{attention_block_forward.3} parent=0 // pred_check_branch
    %14 = sbr.rel (0) target = $region13
  $region12: #{attention_block_forward.3} parent=0 // pred_region
    _
  $region13: #{attention_block_forward.3} parent=0 // pred_fallthru
    _
  // Predicated region
  $region14: #{attention_block_forward.3} parent=0 // pred_check
    _
  $region15: #{attention_block_forward.3} parent=0 // pred_check_branch
    %16 = sbr.rel (0) target = $region17
  $region16: #{attention_block_forward.3} parent=0 // pred_region
    _
  $region17: #{attention_block_forward.3} parent=0 // pred_fallthru
    _
  %v18 = vld [vmem:[%s0] sm:$0xf]
  %v19 = vld [vmem:[%s0 + $0x4] sm:$0xf]
  %v20 = vld [vmem:[%s0 + $0x8] sm:$0xf]
  %v21 = vld [vmem:[%s0 + $0xc] sm:$0xf]
  %v22 = vld [vmem:[%s0 + $0x10] sm:$0xf]
  %v23 = vld [vmem:[%s0 + $0x14] sm:$0xf]
  %v24 = vld [vmem:[%s0 + $0x18] sm:$0xf]
  %v25 = vld [vmem:[%s0 + $0x1c] sm:$0xf]
  %v26 = vld [vmem:[%s0 + $0x20] sm:$0xf]
  %v27 = vld [vmem:[%s0 + $0x24] sm:$0xf]
  %v28 = vld [vmem:[%s0 + $0x28] sm:$0xf]
  %v29 = vld [vmem:[%s0 + $0x2c] sm:$0xf]
  %v30 = vld [vmem:[%s0 + $0x30] sm:$0xf]
  %v31 = vld [vmem:[%s0 + $0x34] sm:$0xf]
  %v32 = vld [vmem:[%s0 + $0x38] sm:$0xf]
  %v33 = vld [vmem:[%s0 + $0x3c] sm:$0xf]
  %v34 = vld [vmem:[%s0 + $0x40] sm:$0xf]
  %v35 = vld [vmem:[%s0 + $0x44] sm:$0xf]
  %v36 = vld [vmem:[%s0 + $0x48] sm:$0xf]
  %v37 = vld [vmem:[%s0 + $0x4c] sm:$0xf]
  %v38 = vld [vmem:[%s0 + $0x50] sm:$0xf]
  %v39 = vld [vmem:[%s0 + $0x54] sm:$0xf]
  %v40 = vld [vmem:[%s0 + $0x58] sm:$0xf]
  %v41 = vld [vmem:[%s0 + $0x5c] sm:$0xf]
  %v42 = vld [vmem:[%s0 + $0x60] sm:$0xf]
  %v43 = vld [vmem:[%s0 + $0x64] sm:$0xf]
  %v44 = vld [vmem:[%s0 + $0x68] sm:$0xf]
  %v45 = vld [vmem:[%s0 + $0x6c] sm:$0xf]
  %v46 = vld [vmem:[%s0 + $0x70] sm:$0xf]
  %v47 = vld [vmem:[%s0 + $0x74] sm:$0xf]
  %v48 = vld [vmem:[%s0 + $0x78] sm:$0xf]
  %v49 = vld [vmem:[%s0 + $0x7c] sm:$0xf]
  %v50 = vld [vmem:[%s0 + $0x80] sm:$0xf]
  %v51 = vld [vmem:[%s0 + $0x84] sm:$0xf]
  %v52 = vld [vmem:[%s0 + $0x88] sm:$0xf]
  %v53 = vld [vmem:[%s0 + $0x8c] sm:$0xf]
  %v54 = vld [vmem:[%s0 + $0x90] sm:$0xf]
  %v55 = vld [vmem:[%s0 + $0x94] sm:$0xf]
  %v56 = vld [vmem:[%s0 + $0x98] sm:$0xf]
  %v57 = vld [vmem:[%s0 + $0x9c] sm:$0xf]
  %v58 = vld [vmem:[%s0 + $0xa0] sm:$0xf]
  %v59 = vld [vmem:[%s0 + $0xa4] sm:$0xf]
  %v60 = vld [vmem:[%s0 + $0xa8] sm:$0xf]
  %v61 = vld [vmem:[%s0 + $0xac] sm:$0xf]
  %v62 = vld [vmem:[%s0 + $0xb0] sm:$0xf]
  %v63 = vld [vmem:[%s0 + $0xb4] sm:$0xf]
  %v64 = vld [vmem:[%s0 + $0xb8] sm:$0xf]
  %v65 = vld [vmem:[%s0 + $0xbc] sm:$0xf]
  %v66 = vld [vmem:[%s0 + $0xc0] sm:$0xf]
  %v67 = vld [vmem:[%s0 + $0xc4] sm:$0xf]
  %v68 = vld [vmem:[%s0 + $0xc8] sm:$0xf]
  %v69 = vld [vmem:[%s0 + $0xcc] sm:$0xf]
  %v70 = vld [vmem:[%s0 + $0xd0] sm:$0xf]
  %v71 = vld [vmem:[%s0 + $0xd4] sm:$0xf]
  %v72 = vld [vmem:[%s0 + $0xd8] sm:$0xf]
  %v73 = vld [vmem:[%s0 + $0xdc] sm:$0xf]
  %v74 = vld [vmem:[%s0 + $0xe0] sm:$0xf]
  %v75 = vld [vmem:[%s0 + $0xe4] sm:$0xf]
  %v76 = vld [vmem:[%s0 + $0xe8] sm:$0xf]
  %v77 = vld [vmem:[%s0 + $0xec] sm:$0xf]
  %v78 = vld [vmem:[%s0 + $0xf0] sm:$0xf]
  %v79 = vld [vmem:[%s0 + $0xf4] sm:$0xf]
  %v80 = vld [vmem:[%s0 + $0xf8] sm:$0xf]
  %v81 = vld [vmem:[%s0 + $0xfc] sm:$0xf]
  %v82 = vld [vmem:[%s2] sm:$0xf]
  %v147 = vunpack.c.l.b16 %v18
  %v148 = vunpack.c.l.b16 %v19
  %v149 = vunpack.c.l.b16 %v20
  %v150 = vunpack.c.l.b16 %v21
  %v151 = vunpack.c.l.b16 %v22
  %v152 = vunpack.c.l.b16 %v23
  %v153 = vunpack.c.l.b16 %v24
  %v154 = vunpack.c.l.b16 %v25
  %v155 = vunpack.c.l.b16 %v26
  %v156 = vunpack.c.l.b16 %v27
  %v157 = vunpack.c.l.b16 %v28
  %v158 = vunpack.c.l.b16 %v29
  %v159 = vunpack.c.l.b16 %v30
  %v160 = vunpack.c.l.b16 %v31
  %v161 = vunpack.c.l.b16 %v32
  %v162 = vunpack.c.l.b16 %v33
  %v163 = vunpack.c.l.b16 %v34
  %v164 = vunpack.c.l.b16 %v35
  %v165 = vunpack.c.l.b16 %v36
  %v166 = vunpack.c.l.b16 %v37
  %v167 = vunpack.c.l.b16 %v38
  %v168 = vunpack.c.l.b16 %v39
  %v169 = vunpack.c.l.b16 %v40
  %v170 = vunpack.c.l.b16 %v41
  %v171 = vunpack.c.l.b16 %v42
  %v172 = vunpack.c.l.b16 %v43
  %v173 = vunpack.c.l.b16 %v44
  %v174 = vunpack.c.l.b16 %v45
  %v175 = vunpack.c.l.b16 %v46
  %v176 = vunpack.c.l.b16 %v47
  %v177 = vunpack.c.l.b16 %v48
  %v178 = vunpack.c.l.b16 %v49
  %v179 = vunpack.c.l.b16 %v50
  %v180 = vunpack.c.l.b16 %v51
  %v181 = vunpack.c.l.b16 %v52
  %v182 = vunpack.c.l.b16 %v53
  %v183 = vunpack.c.l.b16 %v54
  %v184 = vunpack.c.l.b16 %v55
  %v185 = vunpack.c.l.b16 %v56
  %v186 = vunpack.c.l.b16 %v57
  %v187 = vunpack.c.l.b16 %v58
  %v188 = vunpack.c.l.b16 %v59
  %v189 = vunpack.c.l.b16 %v60
  %v190 = vunpack.c.l.b16 %v61
  %v191 = vunpack.c.l.b16 %v62
  %v192 = vunpack.c.l.b16 %v63
  %v193 = vunpack.c.l.b16 %v64
  %v194 = vunpack.c.l.b16 %v65
  %v195 = vunpack.c.l.b16 %v66
  %v196 = vunpack.c.l.b16 %v67
  %v197 = vunpack.c.l.b16 %v68
  %v198 = vunpack.c.l.b16 %v69
  %v199 = vunpack.c.l.b16 %v70
  %v200 = vunpack.c.l.b16 %v71
  %v201 = vunpack.c.l.b16 %v72
  %v202 = vunpack.c.l.b16 %v73
  %v203 = vunpack.c.l.b16 %v74
  %v204 = vunpack.c.l.b16 %v75
  %v205 = vunpack.c.l.b16 %v76
  %v206 = vunpack.c.l.b16 %v77
  %v207 = vunpack.c.l.b16 %v78
  %v208 = vunpack.c.l.b16 %v79
  %v209 = vunpack.c.l.b16 %v80
  %v210 = vunpack.c.l.b16 %v81
  %v211 = vpack.c.b16 %v148, %v147
  %v212 = vpack.c.b16 %v150, %v149
  %v213 = vpack.c.b16 %v152, %v151
  %v214 = vpack.c.b16 %v154, %v153
  %v215 = vpack.c.b16 %v156, %v155
  %v216 = vpack.c.b16 %v158, %v157
  %v217 = vpack.c.b16 %v160, %v159
  %v218 = vpack.c.b16 %v162, %v161
  %v219 = vpack.c.b16 %v164, %v163
  %v220 = vpack.c.b16 %v166, %v165
  %v221 = vpack.c.b16 %v168, %v167
  %v222 = vpack.c.b16 %v170, %v169
  %v223 = vpack.c.b16 %v172, %v171
  %v224 = vpack.c.b16 %v174, %v173
  %v225 = vpack.c.b16 %v176, %v175
  %v226 = vpack.c.b16 %v178, %v177
  %v227 = vpack.c.b16 %v180, %v179
  %v228 = vpack.c.b16 %v182, %v181
  %v229 = vpack.c.b16 %v184, %v183
  %v230 = vpack.c.b16 %v186, %v185
  %v231 = vpack.c.b16 %v188, %v187
  %v232 = vpack.c.b16 %v190, %v189
  %v233 = vpack.c.b16 %v192, %v191
  %v234 = vpack.c.b16 %v194, %v193
  %v235 = vpack.c.b16 %v196, %v195
  %v236 = vpack.c.b16 %v198, %v197
  %v237 = vpack.c.b16 %v200, %v199
  %v238 = vpack.c.b16 %v202, %v201
  %v239 = vpack.c.b16 %v204, %v203
  %v240 = vpack.c.b16 %v206, %v205
  %v241 = vpack.c.b16 %v208, %v207
  %v242 = vpack.c.b16 %v210, %v209
  %vm243 = vcmask 64512
  %v245 = vsel %vm243, %v211, 0
  %v248 = vsel %vm243, %v212, 0
  %v251 = vsel %vm243, %v213, 0
  %v254 = vsel %vm243, %v214, 0
  %v257 = vsel %vm243, %v215, 0
  %v260 = vsel %vm243, %v216, 0
  %v263 = vsel %vm243, %v217, 0
  %v266 = vsel %vm243, %v218, 0
  %v269 = vsel %vm243, %v219, 0
  %v272 = vsel %vm243, %v220, 0
  %v275 = vsel %vm243, %v221, 0
  %v278 = vsel %vm243, %v222, 0
  %v281 = vsel %vm243, %v223, 0
  %v284 = vsel %vm243, %v224, 0
  %v287 = vsel %vm243, %v225, 0
  %v290 = vsel %vm243, %v226, 0
  %v293 = vsel %vm243, %v227, 0
  %v296 = vsel %vm243, %v228, 0
  %v299 = vsel %vm243, %v229, 0
  %v302 = vsel %vm243, %v230, 0
  %v305 = vsel %vm243, %v231, 0
  %v308 = vsel %vm243, %v232, 0
  %v311 = vsel %vm243, %v233, 0
  %v314 = vsel %vm243, %v234, 0
  %v317 = vsel %vm243, %v235, 0
  %v320 = vsel %vm243, %v236, 0
  %v323 = vsel %vm243, %v237, 0
  %v326 = vsel %vm243, %v238, 0
  %v329 = vsel %vm243, %v239, 0
  %v332 = vsel %vm243, %v240, 0
  %v335 = vsel %vm243, %v241, 0
  %v338 = vsel %vm243, %v242, 0
  %vm340 = vcmask 1043456
  %v342 = vsel %vm340, %v82, 0
  %344 = vmatprep.subr.bf16.mxu0 0
  %345 = vmatpush1.bf16.msra.mxu0 %v342
  %346 = vmatprep.subr.bf16.mxu0 0
  %347 = vmatpush1.bf16.msra.mxu0 0
  %348 = vmatprep.subr.bf16.mxu0 0
  %349 = vmatpush1.bf16.msra.mxu0 0
  %350 = vmatprep.subr.bf16.mxu0 0
  %351 = vmatpush1.bf16.msra.mxu0 0
  %352 = vmatprep.subr.bf16.mxu0 0
  %353 = vmatpush1.bf16.msra.mxu0 0
  %354 = vmatprep.subr.bf16.mxu0 0
  %355 = vmatpush1.bf16.msra.mxu0 0
  %356 = vmatprep.subr.bf16.mxu0 0
  %357 = vmatpush1.bf16.msra.mxu0 0
  %358 = vmatprep.subr.bf16.mxu0 0
  %359 = vmatpush1.bf16.msra.mxu0 0
  %360 = vmatprep.subr.bf16.mxu0 0
  %361 = vmatpush1.bf16.msra.mxu0 0
  %362 = vmatprep.subr.bf16.mxu0 0
  %363 = vmatpush1.bf16.msra.mxu0 0
  %364 = vmatprep.subr.bf16.mxu0 0
  %365 = vmatpush1.bf16.msra.mxu0 0
  %366 = vmatprep.subr.bf16.mxu0 0
  %367 = vmatpush1.bf16.msra.mxu0 0
  %368 = vmatprep.subr.bf16.mxu0 0
  %369 = vmatpush1.bf16.msra.mxu0 0
  %370 = vmatprep.subr.bf16.mxu0 0
  %371 = vmatpush1.bf16.msra.mxu0 0
  %372 = vmatprep.subr.bf16.mxu0 0
  %373 = vmatpush1.bf16.msra.mxu0 0
  %374 = vmatprep.subr.bf16.mxu0 0
  %375 = vmatpush1.bf16.msra.mxu0 0
  %376 = vmatprep.mubr.bf16.mxu0 0
  %377 = vmatmul.mubr.bf16.gmra.mrb[0].mxu0 %v245
  %v378 = vpop.f32.mrb[0].mxu0
  %v379 = vadd.f32 0.0, %v378
  %v380 = vpop.f32.mrb[0].mxu0
  %v381 = vpop.f32.mrb[0].mxu0
  %v382 = vadd.f32 0.0, %v381
  %v383 = vpop.f32.mrb[0].mxu0
  %384 = vmatprep.mubr.bf16.mxu0 0
  %385 = vmatmul.mubr.bf16.gmra.mrb[0].mxu0 %v248
  %v386 = vpop.f32.mrb[0].mxu0
  %v387 = vadd.f32 0.0, %v386
  %v388 = vpop.f32.mrb[0].mxu0
  %v389 = vpop.f32.mrb[0].mxu0
  %v390 = vadd.f32 0.0, %v389
  %v391 = vpop.f32.mrb[0].mxu0
  %392 = vmatprep.mubr.bf16.mxu0 0
  %393 = vmatmul.mubr.bf16.gmra.mrb[0].mxu0 %v251
  %v394 = vpop.f32.mrb[0].mxu0
  %v395 = vadd.f32 0.0, %v394
  %v396 = vpop.f32.mrb[0].mxu0
  %v397 = vpop.f32.mrb[0].mxu0
  %v398 = vadd.f32 0.0, %v397
  %v399 = vpop.f32.mrb[0].mxu0
  %400 = vmatprep.mubr.bf16.mxu0 0
  %401 = vmatmul.mubr.bf16.gmra.mrb[0].mxu0 %v254
  %v402 = vpop.f32.mrb[0].mxu0
  %v403 = vadd.f32 0.0, %v402
  %v404 = vpop.f32.mrb[0].mxu0
  %v405 = vpop.f32.mrb[0].mxu0
  %v406 = vadd.f32 0.0, %v405
  %v407 = vpop.f32.mrb[0].mxu0
  %408 = vmatprep.mubr.bf16.mxu0 0
  %409 = vmatmul.mubr.bf16.gmra.mrb[0].mxu0 %v257
  %v410 = vpop.f32.mrb[0].mxu0
  %v411 = vadd.f32 0.0, %v410
  %v412 = vpop.f32.mrb[0].mxu0
  %v413 = vpop.f32.mrb[0].mxu0
  %v414 = vadd.f32 0.0, %v413
  %v415 = vpop.f32.mrb[0].mxu0
  %416 = vmatprep.mubr.bf16.mxu0 0
  %417 = vmatmul.mubr.bf16.gmra.mrb[0].mxu0 %v260
  %v418 = vpop.f32.mrb[0].mxu0
  %v419 = vadd.f32 0.0, %v418
  %v420 = vpop.f32.mrb[0].mxu0
  %v421 = vpop.f32.mrb[0].mxu0
  %v422 = vadd.f32 0.0, %v421
  %v423 = vpop.f32.mrb[0].mxu0
  %424 = vmatprep.mubr.bf16.mxu0 0
  %425 = vmatmul.mubr.bf16.gmra.mrb[0].mxu0 %v263
  %v426 = vpop.f32.mrb[0].mxu0
  %v427 = vadd.f32 0.0, %v426
  %v428 = vpop.f32.mrb[0].mxu0
  %v429 = vpop.f32.mrb[0].mxu0
  %v430 = vadd.f32 0.0, %v429
  %v431 = vpop.f32.mrb[0].mxu0
  %432 = vmatprep.mubr.bf16.mxu0 0
  %433 = vmatmul.mubr.bf16.gmra.mrb[0].mxu0 %v266
  %v434 = vpop.f32.mrb[0].mxu0
  %v435 = vadd.f32 0.0, %v434
  %v436 = vpop.f32.mrb[0].mxu0
  %v437 = vpop.f32.mrb[0].mxu0
  %v438 = vadd.f32 0.0, %v437
  %v439 = vpop.f32.mrb[0].mxu0
  %440 = vmatprep.mubr.bf16.mxu0 0
  %441 = vmatmul.mubr.bf16.gmra.mrb[0].mxu0 %v269
  %v442 = vpop.f32.mrb[0].mxu0
  %v443 = vadd.f32 0.0, %v442
  %v444 = vpop.f32.mrb[0].mxu0
  %v445 = vpop.f32.mrb[0].mxu0
  %v446 = vadd.f32 0.0, %v445
  %v447 = vpop.f32.mrb[0].mxu0
  %448 = vmatprep.mubr.bf16.mxu0 0
  %449 = vmatmul.mubr.bf16.gmra.mrb[0].mxu0 %v272
  %v450 = vpop.f32.mrb[0].mxu0
  %v451 = vadd.f32 0.0, %v450
  %v452 = vpop.f32.mrb[0].mxu0
  %v453 = vpop.f32.mrb[0].mxu0
  %v454 = vadd.f32 0.0, %v453
  %v455 = vpop.f32.mrb[0].mxu0
  %456 = vmatprep.mubr.bf16.mxu0 0
  %457 = vmatmul.mubr.bf16.gmra.mrb[0].mxu0 %v275
  %v458 = vpop.f32.mrb[0].mxu0
  %v459 = vadd.f32 0.0, %v458
  %v460 = vpop.f32.mrb[0].mxu0
  %v461 = vpop.f32.mrb[0].mxu0
  %v462 = vadd.f32 0.0, %v461
  %v463 = vpop.f32.mrb[0].mxu0
  %464 = vmatprep.mubr.bf16.mxu0 0
  %465 = vmatmul.mubr.bf16.gmra.mrb[0].mxu0 %v278
  %v466 = vpop.f32.mrb[0].mxu0
  %v467 = vadd.f32 0.0, %v466
  %v468 = vpop.f32.mrb[0].mxu0
  %v469 = vpop.f32.mrb[0].mxu0
  %v470 = vadd.f32 0.0, %v469
  %v471 = vpop.f32.mrb[0].mxu0
  %472 = vmatprep.mubr.bf16.mxu0 0
  %473 = vmatmul.mubr.bf16.gmra.mrb[0].mxu0 %v281
  %v474 = vpop.f32.mrb[0].mxu0
  %v475 = vadd.f32 0.0, %v474
  %v476 = vpop.f32.mrb[0].mxu0
  %v477 = vpop.f32.mrb[0].mxu0
  %v478 = vadd.f32 0.0, %v477
  %v479 = vpop.f32.mrb[0].mxu0
  %480 = vmatprep.mubr.bf16.mxu0 0
  %481 = vmatmul.mubr.bf16.gmra.mrb[0].mxu0 %v284
  %v482 = vpop.f32.mrb[0].mxu0
  %v483 = vadd.f32 0.0, %v482
  %v484 = vpop.f32.mrb[0].mxu0
  %v485 = vpop.f32.mrb[0].mxu0
  %v486 = vadd.f32 0.0, %v485
  %v487 = vpop.f32.mrb[0].mxu0
  %488 = vmatprep.mubr.bf16.mxu0 0
  %489 = vmatmul.mubr.bf16.gmra.mrb[0].mxu0 %v287
  %v490 = vpop.f32.mrb[0].mxu0
  %v491 = vadd.f32 0.0, %v490
  %v492 = vpop.f32.mrb[0].mxu0
  %v493 = vpop.f32.mrb[0].mxu0
  %v494 = vadd.f32 0.0, %v493
  %v495 = vpop.f32.mrb[0].mxu0
  %496 = vmatprep.mubr.bf16.mxu0 0
  %497 = vmatmul.mubr.bf16.gmra.mrb[0].mxu0 %v290
  %v498 = vpop.f32.mrb[0].mxu0
  %v499 = vadd.f32 0.0, %v498
  %v500 = vpop.f32.mrb[0].mxu0
  %v501 = vpop.f32.mrb[0].mxu0
  %v502 = vadd.f32 0.0, %v501
  %v503 = vpop.f32.mrb[0].mxu0
  %504 = vmatprep.mubr.bf16.mxu0 0
  %505 = vmatmul.mubr.bf16.gmra.mrb[0].mxu0 %v293
  %v506 = vpop.f32.mrb[0].mxu0
  %v507 = vadd.f32 0.0, %v506
  %v508 = vpop.f32.mrb[0].mxu0
  %v509 = vpop.f32.mrb[0].mxu0
  %v510 = vadd.f32 0.0, %v509
  %v511 = vpop.f32.mrb[0].mxu0
  %512 = vmatprep.mubr.bf16.mxu0 0
  %513 = vmatmul.mubr.bf16.gmra.mrb[0].mxu0 %v296
  %v514 = vpop.f32.mrb[0].mxu0
  %v515 = vadd.f32 0.0, %v514
  %v516 = vpop.f32.mrb[0].mxu0
  %v517 = vpop.f32.mrb[0].mxu0
  %v518 = vadd.f32 0.0, %v517
  %v519 = vpop.f32.mrb[0].mxu0
  %520 = vmatprep.mubr.bf16.mxu0 0
  %521 = vmatmul.mubr.bf16.gmra.mrb[0].mxu0 %v299
  %v522 = vpop.f32.mrb[0].mxu0
  %v523 = vadd.f32 0.0, %v522
  %v524 = vpop.f32.mrb[0].mxu0
  %v525 = vpop.f32.mrb[0].mxu0
  %v526 = vadd.f32 0.0, %v525
  %v527 = vpop.f32.mrb[0].mxu0
  %528 = vmatprep.mubr.bf16.mxu0 0
  %529 = vmatmul.mubr.bf16.gmra.mrb[0].mxu0 %v302
  %v530 = vpop.f32.mrb[0].mxu0
  %v531 = vadd.f32 0.0, %v530
  %v532 = vpop.f32.mrb[0].mxu0
  %v533 = vpop.f32.mrb[0].mxu0
  %v534 = vadd.f32 0.0, %v533
  %v535 = vpop.f32.mrb[0].mxu0
  %536 = vmatprep.mubr.bf16.mxu0 0
  %537 = vmatmul.mubr.bf16.gmra.mrb[0].mxu0 %v305
  %v538 = vpop.f32.mrb[0].mxu0
  %v539 = vadd.f32 0.0, %v538
  %v540 = vpop.f32.mrb[0].mxu0
  %v541 = vpop.f32.mrb[0].mxu0
  %v542 = vadd.f32 0.0, %v541
  %v543 = vpop.f32.mrb[0].mxu0
  %544 = vmatprep.mubr.bf16.mxu0 0
  %545 = vmatmul.mubr.bf16.gmra.mrb[0].mxu0 %v308
  %v546 = vpop.f32.mrb[0].mxu0
  %v547 = vadd.f32 0.0, %v546
  %v548 = vpop.f32.mrb[0].mxu0
  %v549 = vpop.f32.mrb[0].mxu0
  %v550 = vadd.f32 0.0, %v549
  %v551 = vpop.f32.mrb[0].mxu0
  %552 = vmatprep.mubr.bf16.mxu0 0
  %553 = vmatmul.mubr.bf16.gmra.mrb[0].mxu0 %v311
  %v554 = vpop.f32.mrb[0].mxu0
  %v555 = vadd.f32 0.0, %v554
  %v556 = vpop.f32.mrb[0].mxu0
  %v557 = vpop.f32.mrb[0].mxu0
  %v558 = vadd.f32 0.0, %v557
  %v559 = vpop.f32.mrb[0].mxu0
  %560 = vmatprep.mubr.bf16.mxu0 0
  %561 = vmatmul.mubr.bf16.gmra.mrb[0].mxu0 %v314
  %v562 = vpop.f32.mrb[0].mxu0
  %v563 = vadd.f32 0.0, %v562
  %v564 = vpop.f32.mrb[0].mxu0
  %v565 = vpop.f32.mrb[0].mxu0
  %v566 = vadd.f32 0.0, %v565
  %v567 = vpop.f32.mrb[0].mxu0
  %568 = vmatprep.mubr.bf16.mxu0 0
  %569 = vmatmul.mubr.bf16.gmra.mrb[0].mxu0 %v317
  %v570 = vpop.f32.mrb[0].mxu0
  %v571 = vadd.f32 0.0, %v570
  %v572 = vpop.f32.mrb[0].mxu0
  %v573 = vpop.f32.mrb[0].mxu0
  %v574 = vadd.f32 0.0, %v573
  %v575 = vpop.f32.mrb[0].mxu0
  %576 = vmatprep.mubr.bf16.mxu0 0
  %577 = vmatmul.mubr.bf16.gmra.mrb[0].mxu0 %v320
  %v578 = vpop.f32.mrb[0].mxu0
  %v579 = vadd.f32 0.0, %v578
  %v580 = vpop.f32.mrb[0].mxu0
  %v581 = vpop.f32.mrb[0].mxu0
  %v582 = vadd.f32 0.0, %v581
  %v583 = vpop.f32.mrb[0].mxu0
  %584 = vmatprep.mubr.bf16.mxu0 0
  %585 = vmatmul.mubr.bf16.gmra.mrb[0].mxu0 %v323
  %v586 = vpop.f32.mrb[0].mxu0
  %v587 = vadd.f32 0.0, %v586
  %v588 = vpop.f32.mrb[0].mxu0
  %v589 = vpop.f32.mrb[0].mxu0
  %v590 = vadd.f32 0.0, %v589
  %v591 = vpop.f32.mrb[0].mxu0
  %592 = vmatprep.mubr.bf16.mxu0 0
  %593 = vmatmul.mubr.bf16.gmra.mrb[0].mxu0 %v326
  %v594 = vpop.f32.mrb[0].mxu0
  %v595 = vadd.f32 0.0, %v594
  %v596 = vpop.f32.mrb[0].mxu0
  %v597 = vpop.f32.mrb[0].mxu0
  %v598 = vadd.f32 0.0, %v597
  %v599 = vpop.f32.mrb[0].mxu0
  %600 = vmatprep.mubr.bf16.mxu0 0
  %601 = vmatmul.mubr.bf16.gmra.mrb[0].mxu0 %v329
  %v602 = vpop.f32.mrb[0].mxu0
  %v603 = vadd.f32 0.0, %v602
  %v604 = vpop.f32.mrb[0].mxu0
  %v605 = vpop.f32.mrb[0].mxu0
  %v606 = vadd.f32 0.0, %v605
  %v607 = vpop.f32.mrb[0].mxu0
  %608 = vmatprep.mubr.bf16.mxu0 0
  %609 = vmatmul.mubr.bf16.gmra.mrb[0].mxu0 %v332
  %v610 = vpop.f32.mrb[0].mxu0
  %v611 = vadd.f32 0.0, %v610
  %v612 = vpop.f32.mrb[0].mxu0
  %v613 = vpop.f32.mrb[0].mxu0
  %v614 = vadd.f32 0.0, %v613
  %v615 = vpop.f32.mrb[0].mxu0
  %616 = vmatprep.mubr.bf16.mxu0 0
  %617 = vmatmul.mubr.bf16.gmra.mrb[0].mxu0 %v335
  %v618 = vpop.f32.mrb[0].mxu0
  %v619 = vadd.f32 0.0, %v618
  %v620 = vpop.f32.mrb[0].mxu0
  %v621 = vpop.f32.mrb[0].mxu0
  %v622 = vadd.f32 0.0, %v621
  %v623 = vpop.f32.mrb[0].mxu0
  %624 = vmatprep.mubr.bf16.mxu0 0
  %625 = vmatmul.mubr.bf16.gmra.mrb[0].mxu0 %v338
  %v626 = vpop.f32.mrb[0].mxu0
  %v627 = vadd.f32 0.0, %v626
  %v628 = vpop.f32.mrb[0].mxu0
  %v629 = vpop.f32.mrb[0].mxu0
  %v630 = vadd.f32 0.0, %v629
  %v631 = vpop.f32.mrb[0].mxu0
  %632 = vdwg.mxu0
  %v633 = vld [vmem:[%s1] sm:$0xf]
  %v634 = vld [vmem:[%s1 + $0x4] sm:$0xf]
  %v635 = vld [vmem:[%s1 + $0x8] sm:$0xf]
  %v636 = vld [vmem:[%s1 + $0xc] sm:$0xf]
  %v637 = vld [vmem:[%s1 + $0x10] sm:$0xf]
  %v638 = vld [vmem:[%s1 + $0x14] sm:$0xf]
  %v639 = vld [vmem:[%s1 + $0x18] sm:$0xf]
  %v640 = vld [vmem:[%s1 + $0x1c] sm:$0xf]
  %v641 = vld [vmem:[%s1 + $0x20] sm:$0xf]
  %v642 = vld [vmem:[%s1 + $0x24] sm:$0xf]
  %v643 = vld [vmem:[%s1 + $0x28] sm:$0xf]
  %v644 = vld [vmem:[%s1 + $0x2c] sm:$0xf]
  %v645 = vld [vmem:[%s1 + $0x30] sm:$0xf]
  %v646 = vld [vmem:[%s1 + $0x34] sm:$0xf]
  %v647 = vld [vmem:[%s1 + $0x38] sm:$0xf]
  %v648 = vld [vmem:[%s1 + $0x3c] sm:$0xf]
  %v649 = vld [vmem:[%s1 + $0x40] sm:$0xf]
  %v650 = vld [vmem:[%s1 + $0x44] sm:$0xf]
  %v651 = vld [vmem:[%s1 + $0x48] sm:$0xf]
  %v652 = vld [vmem:[%s1 + $0x4c] sm:$0xf]
  %v653 = vld [vmem:[%s1 + $0x50] sm:$0xf]
  %v654 = vld [vmem:[%s1 + $0x54] sm:$0xf]
  %v655 = vld [vmem:[%s1 + $0x58] sm:$0xf]
  %v656 = vld [vmem:[%s1 + $0x5c] sm:$0xf]
  %v657 = vld [vmem:[%s1 + $0x60] sm:$0xf]
  %v658 = vld [vmem:[%s1 + $0x64] sm:$0xf]
  %v659 = vld [vmem:[%s1 + $0x68] sm:$0xf]
  %v660 = vld [vmem:[%s1 + $0x6c] sm:$0xf]
  %v661 = vld [vmem:[%s1 + $0x70] sm:$0xf]
  %v662 = vld [vmem:[%s1 + $0x74] sm:$0xf]
  %v663 = vld [vmem:[%s1 + $0x78] sm:$0xf]
  %v664 = vld [vmem:[%s1 + $0x7c] sm:$0xf]
  %v665 = vld [vmem:[%s1 + $0x80] sm:$0xf]
  %v666 = vld [vmem:[%s1 + $0x84] sm:$0xf]
  %v667 = vld [vmem:[%s1 + $0x88] sm:$0xf]
  %v668 = vld [vmem:[%s1 + $0x8c] sm:$0xf]
  %v669 = vld [vmem:[%s1 + $0x90] sm:$0xf]
  %v670 = vld [vmem:[%s1 + $0x94] sm:$0xf]
  %v671 = vld [vmem:[%s1 + $0x98] sm:$0xf]
  %v672 = vld [vmem:[%s1 + $0x9c] sm:$0xf]
  %v673 = vld [vmem:[%s1 + $0xa0] sm:$0xf]
  %v674 = vld [vmem:[%s1 + $0xa4] sm:$0xf]
  %v675 = vld [vmem:[%s1 + $0xa8] sm:$0xf]
  %v676 = vld [vmem:[%s1 + $0xac] sm:$0xf]
  %v677 = vld [vmem:[%s1 + $0xb0] sm:$0xf]
  %v678 = vld [vmem:[%s1 + $0xb4] sm:$0xf]
  %v679 = vld [vmem:[%s1 + $0xb8] sm:$0xf]
  %v680 = vld [vmem:[%s1 + $0xbc] sm:$0xf]
  %v681 = vld [vmem:[%s1 + $0xc0] sm:$0xf]
  %v682 = vld [vmem:[%s1 + $0xc4] sm:$0xf]
  %v683 = vld [vmem:[%s1 + $0xc8] sm:$0xf]
  %v684 = vld [vmem:[%s1 + $0xcc] sm:$0xf]
  %v685 = vld [vmem:[%s1 + $0xd0] sm:$0xf]
  %v686 = vld [vmem:[%s1 + $0xd4] sm:$0xf]
  %v687 = vld [vmem:[%s1 + $0xd8] sm:$0xf]
  %v688 = vld [vmem:[%s1 + $0xdc] sm:$0xf]
  %v689 = vld [vmem:[%s1 + $0xe0] sm:$0xf]
  %v690 = vld [vmem:[%s1 + $0xe4] sm:$0xf]
  %v691 = vld [vmem:[%s1 + $0xe8] sm:$0xf]
  %v692 = vld [vmem:[%s1 + $0xec] sm:$0xf]
  %v693 = vld [vmem:[%s1 + $0xf0] sm:$0xf]
  %v694 = vld [vmem:[%s1 + $0xf4] sm:$0xf]
  %v695 = vld [vmem:[%s1 + $0xf8] sm:$0xf]
  %v696 = vld [vmem:[%s1 + $0xfc] sm:$0xf]
  %v697 = vld [vmem:[%s3] sm:$0xf]
  %v762 = vunpack.c.l.b16 %v633
  %v763 = vunpack.c.l.b16 %v634
  %v764 = vunpack.c.l.b16 %v635
  %v765 = vunpack.c.l.b16 %v636
  %v766 = vunpack.c.l.b16 %v637
  %v767 = vunpack.c.l.b16 %v638
  %v768 = vunpack.c.l.b16 %v639
  %v769 = vunpack.c.l.b16 %v640
  %v770 = vunpack.c.l.b16 %v641
  %v771 = vunpack.c.l.b16 %v642
  %v772 = vunpack.c.l.b16 %v643
  %v773 = vunpack.c.l.b16 %v644
  %v774 = vunpack.c.l.b16 %v645
  %v775 = vunpack.c.l.b16 %v646
  %v776 = vunpack.c.l.b16 %v647
  %v777 = vunpack.c.l.b16 %v648
  %v778 = vunpack.c.l.b16 %v649
  %v779 = vunpack.c.l.b16 %v650
  %v780 = vunpack.c.l.b16 %v651
  %v781 = vunpack.c.l.b16 %v652
  %v782 = vunpack.c.l.b16 %v653
  %v783 = vunpack.c.l.b16 %v654
  %v784 = vunpack.c.l.b16 %v655
  %v785 = vunpack.c.l.b16 %v656
  %v786 = vunpack.c.l.b16 %v657
  %v787 = vunpack.c.l.b16 %v658
  %v788 = vunpack.c.l.b16 %v659
  %v789 = vunpack.c.l.b16 %v660
  %v790 = vunpack.c.l.b16 %v661
  %v791 = vunpack.c.l.b16 %v662
  %v792 = vunpack.c.l.b16 %v663
  %v793 = vunpack.c.l.b16 %v664
  %v794 = vunpack.c.l.b16 %v665
  %v795 = vunpack.c.l.b16 %v666
  %v796 = vunpack.c.l.b16 %v667
  %v797 = vunpack.c.l.b16 %v668
  %v798 = vunpack.c.l.b16 %v669
  %v799 = vunpack.c.l.b16 %v670
  %v800 = vunpack.c.l.b16 %v671
  %v801 = vunpack.c.l.b16 %v672
  %v802 = vunpack.c.l.b16 %v673
  %v803 = vunpack.c.l.b16 %v674
  %v804 = vunpack.c.l.b16 %v675
  %v805 = vunpack.c.l.b16 %v676
  %v806 = vunpack.c.l.b16 %v677
  %v807 = vunpack.c.l.b16 %v678
  %v808 = vunpack.c.l.b16 %v679
  %v809 = vunpack.c.l.b16 %v680
  %v810 = vunpack.c.l.b16 %v681
  %v811 = vunpack.c.l.b16 %v682
  %v812 = vunpack.c.l.b16 %v683
  %v813 = vunpack.c.l.b16 %v684
  %v814 = vunpack.c.l.b16 %v685
  %v815 = vunpack.c.l.b16 %v686
  %v816 = vunpack.c.l.b16 %v687
  %v817 = vunpack.c.l.b16 %v688
  %v818 = vunpack.c.l.b16 %v689
  %v819 = vunpack.c.l.b16 %v690
  %v820 = vunpack.c.l.b16 %v691
  %v821 = vunpack.c.l.b16 %v692
  %v822 = vunpack.c.l.b16 %v693
  %v823 = vunpack.c.l.b16 %v694
  %v824 = vunpack.c.l.b16 %v695
  %v825 = vunpack.c.l.b16 %v696
  %v826 = vpack.c.b16 %v763, %v762
  %v827 = vpack.c.b16 %v765, %v764
  %v828 = vpack.c.b16 %v767, %v766
  %v829 = vpack.c.b16 %v769, %v768
  %v830 = vpack.c.b16 %v771, %v770
  %v831 = vpack.c.b16 %v773, %v772
  %v832 = vpack.c.b16 %v775, %v774
  %v833 = vpack.c.b16 %v777, %v776
  %v834 = vpack.c.b16 %v779, %v778
  %v835 = vpack.c.b16 %v781, %v780
  %v836 = vpack.c.b16 %v783, %v782
  %v837 = vpack.c.b16 %v785, %v784
  %v838 = vpack.c.b16 %v787, %v786
  %v839 = vpack.c.b16 %v789, %v788
  %v840 = vpack.c.b16 %v791, %v790
  %v841 = vpack.c.b16 %v793, %v792
  %v842 = vpack.c.b16 %v795, %v794
  %v843 = vpack.c.b16 %v797, %v796
  %v844 = vpack.c.b16 %v799, %v798
  %v845 = vpack.c.b16 %v801, %v800
  %v846 = vpack.c.b16 %v803, %v802
  %v847 = vpack.c.b16 %v805, %v804
  %v848 = vpack.c.b16 %v807, %v806
  %v849 = vpack.c.b16 %v809, %v808
  %v850 = vpack.c.b16 %v811, %v810
  %v851 = vpack.c.b16 %v813, %v812
  %v852 = vpack.c.b16 %v815, %v814
  %v853 = vpack.c.b16 %v817, %v816
  %v854 = vpack.c.b16 %v819, %v818
  %v855 = vpack.c.b16 %v821, %v820
  %v856 = vpack.c.b16 %v823, %v822
  %v857 = vpack.c.b16 %v825, %v824
  %v859 = vsel %vm243, %v826, 0
  %v862 = vsel %vm243, %v827, 0
  %v865 = vsel %vm243, %v828, 0
  %v868 = vsel %vm243, %v829, 0
  %v871 = vsel %vm243, %v830, 0
  %v874 = vsel %vm243, %v831, 0
  %v877 = vsel %vm243, %v832, 0
  %v880 = vsel %vm243, %v833, 0
  %v883 = vsel %vm243, %v834, 0
  %v886 = vsel %vm243, %v835, 0
  %v889 = vsel %vm243, %v836, 0
  %v892 = vsel %vm243, %v837, 0
  %v895 = vsel %vm243, %v838, 0
  %v898 = vsel %vm243, %v839, 0
  %v901 = vsel %vm243, %v840, 0
  %v904 = vsel %vm243, %v841, 0
  %v907 = vsel %vm243, %v842, 0
  %v910 = vsel %vm243, %v843, 0
  %v913 = vsel %vm243, %v844, 0
  %v916 = vsel %vm243, %v845, 0
  %v919 = vsel %vm243, %v846, 0
  %v922 = vsel %vm243, %v847, 0
  %v925 = vsel %vm243, %v848, 0
  %v928 = vsel %vm243, %v849, 0
  %v931 = vsel %vm243, %v850, 0
  %v934 = vsel %vm243, %v851, 0
  %v937 = vsel %vm243, %v852, 0
  %v940 = vsel %vm243, %v853, 0
  %v943 = vsel %vm243, %v854, 0
  %v946 = vsel %vm243, %v855, 0
  %v949 = vsel %vm243, %v856, 0
  %v952 = vsel %vm243, %v857, 0
  %v955 = vsel %vm340, %v697, 0
  %957 = vmatprep.subr.bf16.mxu0 0
  %958 = vmatpush1.bf16.msra.mxu0 %v955
  %959 = vmatprep.subr.bf16.mxu0 0
  %960 = vmatpush1.bf16.msra.mxu0 0
  %961 = vmatprep.subr.bf16.mxu0 0
  %962 = vmatpush1.bf16.msra.mxu0 0
  %963 = vmatprep.subr.bf16.mxu0 0
  %964 = vmatpush1.bf16.msra.mxu0 0
  %965 = vmatprep.subr.bf16.mxu0 0
  %966 = vmatpush1.bf16.msra.mxu0 0
  %967 = vmatprep.subr.bf16.mxu0 0
  %968 = vmatpush1.bf16.msra.mxu0 0
  %969 = vmatprep.subr.bf16.mxu0 0
  %970 = vmatpush1.bf16.msra.mxu0 0
  %971 = vmatprep.subr.bf16.mxu0 0
  %972 = vmatpush1.bf16.msra.mxu0 0
  %973 = vmatprep.subr.bf16.mxu0 0
  %974 = vmatpush1.bf16.msra.mxu0 0
  %975 = vmatprep.subr.bf16.mxu0 0
  %976 = vmatpush1.bf16.msra.mxu0 0
  %977 = vmatprep.subr.bf16.mxu0 0
  %978 = vmatpush1.bf16.msra.mxu0 0
  %979 = vmatprep.subr.bf16.mxu0 0
  %980 = vmatpush1.bf16.msra.mxu0 0
  %981 = vmatprep.subr.bf16.mxu0 0
  %982 = vmatpush1.bf16.msra.mxu0 0
  %983 = vmatprep.subr.bf16.mxu0 0
  %984 = vmatpush1.bf16.msra.mxu0 0
  %985 = vmatprep.subr.bf16.mxu0 0
  %986 = vmatpush1.bf16.msra.mxu0 0
  %987 = vmatprep.subr.bf16.mxu0 0
  %988 = vmatpush1.bf16.msra.mxu0 0
  %989 = vmatprep.mubr.bf16.mxu0 0
  %990 = vmatmul.mubr.bf16.gmra.mrb[0].mxu0 %v859
  %v991 = vpop.f32.mrb[0].mxu0
  %v992 = vadd.f32 0.0, %v991
  %v993 = vpop.f32.mrb[0].mxu0
  %v994 = vpop.f32.mrb[0].mxu0
  %v995 = vadd.f32 0.0, %v994
  %v996 = vpop.f32.mrb[0].mxu0
  %997 = vmatprep.mubr.bf16.mxu0 0
  %998 = vmatmul.mubr.bf16.gmra.mrb[0].mxu0 %v862
  %v999 = vpop.f32.mrb[0].mxu0
  %v1000 = vadd.f32 0.0, %v999
  %v1001 = vpop.f32.mrb[0].mxu0
  %v1002 = vpop.f32.mrb[0].mxu0
  %v1003 = vadd.f32 0.0, %v1002
  %v1004 = vpop.f32.mrb[0].mxu0
  %1005 = vmatprep.mubr.bf16.mxu0 0
  %1006 = vmatmul.mubr.bf16.gmra.mrb[0].mxu0 %v865
  %v1007 = vpop.f32.mrb[0].mxu0
  %v1008 = vadd.f32 0.0, %v1007
  %v1009 = vpop.f32.mrb[0].mxu0
  %v1010 = vpop.f32.mrb[0].mxu0
  %v1011 = vadd.f32 0.0, %v1010
  %v1012 = vpop.f32.mrb[0].mxu0
  %1013 = vmatprep.mubr.bf16.mxu0 0
  %1014 = vmatmul.mubr.bf16.gmra.mrb[0].mxu0 %v868
  %v1015 = vpop.f32.mrb[0].mxu0
  %v1016 = vadd.f32 0.0, %v1015
  %v1017 = vpop.f32.mrb[0].mxu0
  %v1018 = vpop.f32.mrb[0].mxu0
  %v1019 = vadd.f32 0.0, %v1018
  %v1020 = vpop.f32.mrb[0].mxu0
  %1021 = vmatprep.mubr.bf16.mxu0 0
  %1022 = vmatmul.mubr.bf16.gmra.mrb[0].mxu0 %v871
  %v1023 = vpop.f32.mrb[0].mxu0
  %v1024 = vadd.f32 0.0, %v1023
  %v1025 = vpop.f32.mrb[0].mxu0
  %v1026 = vpop.f32.mrb[0].mxu0
  %v1027 = vadd.f32 0.0, %v1026
  %v1028 = vpop.f32.mrb[0].mxu0
  %1029 = vmatprep.mubr.bf16.mxu0 0
  %1030 = vmatmul.mubr.bf16.gmra.mrb[0].mxu0 %v874
  %v1031 = vpop.f32.mrb[0].mxu0
  %v1032 = vadd.f32 0.0, %v1031
  %v1033 = vpop.f32.mrb[0].mxu0
  %v1034 = vpop.f32.mrb[0].mxu0
  %v1035 = vadd.f32 0.0, %v1034
  %v1036 = vpop.f32.mrb[0].mxu0
  %1037 = vmatprep.mubr.bf16.mxu0 0
  %1038 = vmatmul.mubr.bf16.gmra.mrb[0].mxu0 %v877
  %v1039 = vpop.f32.mrb[0].mxu0
  %v1040 = vadd.f32 0.0, %v1039
  %v1041 = vpop.f32.mrb[0].mxu0
  %v1042 = vpop.f32.mrb[0].mxu0
  %v1043 = vadd.f32 0.0, %v1042
  %v1044 = vpop.f32.mrb[0].mxu0
  %1045 = vmatprep.mubr.bf16.mxu0 0
  %1046 = vmatmul.mubr.bf16.gmra.mrb[0].mxu0 %v880
  %v1047 = vpop.f32.mrb[0].mxu0
  %v1048 = vadd.f32 0.0, %v1047
  %v1049 = vpop.f32.mrb[0].mxu0
  %v1050 = vpop.f32.mrb[0].mxu0
  %v1051 = vadd.f32 0.0, %v1050
  %v1052 = vpop.f32.mrb[0].mxu0
  %1053 = vmatprep.mubr.bf16.mxu0 0
  %1054 = vmatmul.mubr.bf16.gmra.mrb[0].mxu0 %v883
  %v1055 = vpop.f32.mrb[0].mxu0
  %v1056 = vadd.f32 0.0, %v1055
  %v1057 = vpop.f32.mrb[0].mxu0
  %v1058 = vpop.f32.mrb[0].mxu0
  %v1059 = vadd.f32 0.0, %v1058
  %v1060 = vpop.f32.mrb[0].mxu0
  %1061 = vmatprep.mubr.bf16.mxu0 0
  %1062 = vmatmul.mubr.bf16.gmra.mrb[0].mxu0 %v886
  %v1063 = vpop.f32.mrb[0].mxu0
  %v1064 = vadd.f32 0.0, %v1063
  %v1065 = vpop.f32.mrb[0].mxu0
  %v1066 = vpop.f32.mrb[0].mxu0
  %v1067 = vadd.f32 0.0, %v1066
  %v1068 = vpop.f32.mrb[0].mxu0
  %1069 = vmatprep.mubr.bf16.mxu0 0
  %1070 = vmatmul.mubr.bf16.gmra.mrb[0].mxu0 %v889
  %v1071 = vpop.f32.mrb[0].mxu0
  %v1072 = vadd.f32 0.0, %v1071
  %v1073 = vpop.f32.mrb[0].mxu0
  %v1074 = vpop.f32.mrb[0].mxu0
  %v1075 = vadd.f32 0.0, %v1074
  %v1076 = vpop.f32.mrb[0].mxu0
  %1077 = vmatprep.mubr.bf16.mxu0 0
  %1078 = vmatmul.mubr.bf16.gmra.mrb[0].mxu0 %v892
  %v1079 = vpop.f32.mrb[0].mxu0
  %v1080 = vadd.f32 0.0, %v1079
  %v1081 = vpop.f32.mrb[0].mxu0
  %v1082 = vpop.f32.mrb[0].mxu0
  %v1083 = vadd.f32 0.0, %v1082
  %v1084 = vpop.f32.mrb[0].mxu0
  %1085 = vmatprep.mubr.bf16.mxu0 0
  %1086 = vmatmul.mubr.bf16.gmra.mrb[0].mxu0 %v895
  %v1087 = vpop.f32.mrb[0].mxu0
  %v1088 = vadd.f32 0.0, %v1087
  %v1089 = vpop.f32.mrb[0].mxu0
  %v1090 = vpop.f32.mrb[0].mxu0
  %v1091 = vadd.f32 0.0, %v1090
  %v1092 = vpop.f32.mrb[0].mxu0
  %1093 = vmatprep.mubr.bf16.mxu0 0
  %1094 = vmatmul.mubr.bf16.gmra.mrb[0].mxu0 %v898
  %v1095 = vpop.f32.mrb[0].mxu0
  %v1096 = vadd.f32 0.0, %v1095
  %v1097 = vpop.f32.mrb[0].mxu0
  %v1098 = vpop.f32.mrb[0].mxu0
  %v1099 = vadd.f32 0.0, %v1098
  %v1100 = vpop.f32.mrb[0].mxu0
  %1101 = vmatprep.mubr.bf16.mxu0 0
  %1102 = vmatmul.mubr.bf16.gmra.mrb[0].mxu0 %v901
  %v1103 = vpop.f32.mrb[0].mxu0
  %v1104 = vadd.f32 0.0, %v1103
  %v1105 = vpop.f32.mrb[0].mxu0
  %v1106 = vpop.f32.mrb[0].mxu0
  %v1107 = vadd.f32 0.0, %v1106
  %v1108 = vpop.f32.mrb[0].mxu0
  %1109 = vmatprep.mubr.bf16.mxu0 0
  %1110 = vmatmul.mubr.bf16.gmra.mrb[0].mxu0 %v904
  %v1111 = vpop.f32.mrb[0].mxu0
  %v1112 = vadd.f32 0.0, %v1111
  %v1113 = vpop.f32.mrb[0].mxu0
  %v1114 = vpop.f32.mrb[0].mxu0
  %v1115 = vadd.f32 0.0, %v1114
  %v1116 = vpop.f32.mrb[0].mxu0
  %1117 = vmatprep.mubr.bf16.mxu0 0
  %1118 = vmatmul.mubr.bf16.gmra.mrb[0].mxu0 %v907
  %v1119 = vpop.f32.mrb[0].mxu0
  %v1120 = vadd.f32 0.0, %v1119
  %v1121 = vpop.f32.mrb[0].mxu0
  %v1122 = vpop.f32.mrb[0].mxu0
  %v1123 = vadd.f32 0.0, %v1122
  %v1124 = vpop.f32.mrb[0].mxu0
  %1125 = vmatprep.mubr.bf16.mxu0 0
  %1126 = vmatmul.mubr.bf16.gmra.mrb[0].mxu0 %v910
  %v1127 = vpop.f32.mrb[0].mxu0
  %v1128 = vadd.f32 0.0, %v1127
  %v1129 = vpop.f32.mrb[0].mxu0
  %v1130 = vpop.f32.mrb[0].mxu0
  %v1131 = vadd.f32 0.0, %v1130
  %v1132 = vpop.f32.mrb[0].mxu0
  %1133 = vmatprep.mubr.bf16.mxu0 0
  %1134 = vmatmul.mubr.bf16.gmra.mrb[0].mxu0 %v913
  %v1135 = vpop.f32.mrb[0].mxu0
  %v1136 = vadd.f32 0.0, %v1135
  %v1137 = vpop.f32.mrb[0].mxu0
  %v1138 = vpop.f32.mrb[0].mxu0
  %v1139 = vadd.f32 0.0, %v1138
  %v1140 = vpop.f32.mrb[0].mxu0
  %1141 = vmatprep.mubr.bf16.mxu0 0
  %1142 = vmatmul.mubr.bf16.gmra.mrb[0].mxu0 %v916
  %v1143 = vpop.f32.mrb[0].mxu0
  %v1144 = vadd.f32 0.0, %v1143
  %v1145 = vpop.f32.mrb[0].mxu0
  %v1146 = vpop.f32.mrb[0].mxu0
  %v1147 = vadd.f32 0.0, %v1146
  %v1148 = vpop.f32.mrb[0].mxu0
  %1149 = vmatprep.mubr.bf16.mxu0 0
  %1150 = vmatmul.mubr.bf16.gmra.mrb[0].mxu0 %v919
  %v1151 = vpop.f32.mrb[0].mxu0
  %v1152 = vadd.f32 0.0, %v1151
  %v1153 = vpop.f32.mrb[0].mxu0
  %v1154 = vpop.f32.mrb[0].mxu0
  %v1155 = vadd.f32 0.0, %v1154
  %v1156 = vpop.f32.mrb[0].mxu0
  %1157 = vmatprep.mubr.bf16.mxu0 0
  %1158 = vmatmul.mubr.bf16.gmra.mrb[0].mxu0 %v922
  %v1159 = vpop.f32.mrb[0].mxu0
  %v1160 = vadd.f32 0.0, %v1159
  %v1161 = vpop.f32.mrb[0].mxu0
  %v1162 = vpop.f32.mrb[0].mxu0
  %v1163 = vadd.f32 0.0, %v1162
  %v1164 = vpop.f32.mrb[0].mxu0
  %1165 = vmatprep.mubr.bf16.mxu0 0
  %1166 = vmatmul.mubr.bf16.gmra.mrb[0].mxu0 %v925
  %v1167 = vpop.f32.mrb[0].mxu0
  %v1168 = vadd.f32 0.0, %v1167
  %v1169 = vpop.f32.mrb[0].mxu0
  %v1170 = vpop.f32.mrb[0].mxu0
  %v1171 = vadd.f32 0.0, %v1170
  %v1172 = vpop.f32.mrb[0].mxu0
  %1173 = vmatprep.mubr.bf16.mxu0 0
  %1174 = vmatmul.mubr.bf16.gmra.mrb[0].mxu0 %v928
  %v1175 = vpop.f32.mrb[0].mxu0
  %v1176 = vadd.f32 0.0, %v1175
  %v1177 = vpop.f32.mrb[0].mxu0
  %v1178 = vpop.f32.mrb[0].mxu0
  %v1179 = vadd.f32 0.0, %v1178
  %v1180 = vpop.f32.mrb[0].mxu0
  %1181 = vmatprep.mubr.bf16.mxu0 0
  %1182 = vmatmul.mubr.bf16.gmra.mrb[0].mxu0 %v931
  %v1183 = vpop.f32.mrb[0].mxu0
  %v1184 = vadd.f32 0.0, %v1183
  %v1185 = vpop.f32.mrb[0].mxu0
  %v1186 = vpop.f32.mrb[0].mxu0
  %v1187 = vadd.f32 0.0, %v1186
  %v1188 = vpop.f32.mrb[0].mxu0
  %1189 = vmatprep.mubr.bf16.mxu0 0
  %1190 = vmatmul.mubr.bf16.gmra.mrb[0].mxu0 %v934
  %v1191 = vpop.f32.mrb[0].mxu0
  %v1192 = vadd.f32 0.0, %v1191
  %v1193 = vpop.f32.mrb[0].mxu0
  %v1194 = vpop.f32.mrb[0].mxu0
  %v1195 = vadd.f32 0.0, %v1194
  %v1196 = vpop.f32.mrb[0].mxu0
  %1197 = vmatprep.mubr.bf16.mxu0 0
  %1198 = vmatmul.mubr.bf16.gmra.mrb[0].mxu0 %v937
  %v1199 = vpop.f32.mrb[0].mxu0
  %v1200 = vadd.f32 0.0, %v1199
  %v1201 = vpop.f32.mrb[0].mxu0
  %v1202 = vpop.f32.mrb[0].mxu0
  %v1203 = vadd.f32 0.0, %v1202
  %v1204 = vpop.f32.mrb[0].mxu0
  %1205 = vmatprep.mubr.bf16.mxu0 0
  %1206 = vmatmul.mubr.bf16.gmra.mrb[0].mxu0 %v940
  %v1207 = vpop.f32.mrb[0].mxu0
  %v1208 = vadd.f32 0.0, %v1207
  %v1209 = vpop.f32.mrb[0].mxu0
  %v1210 = vpop.f32.mrb[0].mxu0
  %v1211 = vadd.f32 0.0, %v1210
  %v1212 = vpop.f32.mrb[0].mxu0
  %1213 = vmatprep.mubr.bf16.mxu0 0
  %1214 = vmatmul.mubr.bf16.gmra.mrb[0].mxu0 %v943
  %v1215 = vpop.f32.mrb[0].mxu0
  %v1216 = vadd.f32 0.0, %v1215
  %v1217 = vpop.f32.mrb[0].mxu0
  %v1218 = vpop.f32.mrb[0].mxu0
  %v1219 = vadd.f32 0.0, %v1218
  %v1220 = vpop.f32.mrb[0].mxu0
  %1221 = vmatprep.mubr.bf16.mxu0 0
  %1222 = vmatmul.mubr.bf16.gmra.mrb[0].mxu0 %v946
  %v1223 = vpop.f32.mrb[0].mxu0
  %v1224 = vadd.f32 0.0, %v1223
  %v1225 = vpop.f32.mrb[0].mxu0
  %v1226 = vpop.f32.mrb[0].mxu0
  %v1227 = vadd.f32 0.0, %v1226
  %v1228 = vpop.f32.mrb[0].mxu0
  %1229 = vmatprep.mubr.bf16.mxu0 0
  %1230 = vmatmul.mubr.bf16.gmra.mrb[0].mxu0 %v949
  %v1231 = vpop.f32.mrb[0].mxu0
  %v1232 = vadd.f32 0.0, %v1231
  %v1233 = vpop.f32.mrb[0].mxu0
  %v1234 = vpop.f32.mrb[0].mxu0
  %v1235 = vadd.f32 0.0, %v1234
  %v1236 = vpop.f32.mrb[0].mxu0
  %1237 = vmatprep.mubr.bf16.mxu0 0
  %1238 = vmatmul.mubr.bf16.gmra.mrb[0].mxu0 %v952
  %v1239 = vpop.f32.mrb[0].mxu0
  %v1240 = vadd.f32 0.0, %v1239
  %v1241 = vpop.f32.mrb[0].mxu0
  %v1242 = vpop.f32.mrb[0].mxu0
  %v1243 = vadd.f32 0.0, %v1242
  %v1244 = vpop.f32.mrb[0].mxu0
  %1245 = vdwg.mxu0
  %vm1246 = vcmask 31744
  %v1247 = vsel %vm1246, %v379, 0.0
  %v1248 = vsel %vm1246, %v382, 0.0
  %v1249 = vadd.f32 %v1247, %v1248
  %v1250 = vsel %vm1246, %v387, 0.0
  %v1251 = vadd.f32 %v1249, %v1250
  %v1252 = vsel %vm1246, %v390, 0.0
  %v1253 = vadd.f32 %v1251, %v1252
  %v1254 = vsel %vm1246, %v395, 0.0
  %v1255 = vadd.f32 %v1253, %v1254
  %v1256 = vsel %vm1246, %v398, 0.0
  %v1257 = vadd.f32 %v1255, %v1256
  %v1258 = vsel %vm1246, %v403, 0.0
  %v1259 = vadd.f32 %v1257, %v1258
  %v1260 = vsel %vm1246, %v406, 0.0
  %v1261 = vadd.f32 %v1259, %v1260
  %v1262 = vsel %vm1246, %v411, 0.0
  %v1263 = vadd.f32 %v1261, %v1262
  %v1264 = vsel %vm1246, %v414, 0.0
  %v1265 = vadd.f32 %v1263, %v1264
  %v1266 = vsel %vm1246, %v419, 0.0
  %v1267 = vadd.f32 %v1265, %v1266
  %v1268 = vsel %vm1246, %v422, 0.0
  %v1269 = vadd.f32 %v1267, %v1268
  %v1270 = vsel %vm1246, %v427, 0.0
  %v1271 = vadd.f32 %v1269, %v1270
  %v1272 = vsel %vm1246, %v430, 0.0
  %v1273 = vadd.f32 %v1271, %v1272
  %v1274 = vsel %vm1246, %v435, 0.0
  %v1275 = vadd.f32 %v1273, %v1274
  %v1276 = vsel %vm1246, %v438, 0.0
  %v1277 = vadd.f32 %v1275, %v1276
  %v1278 = vsel %vm1246, %v443, 0.0
  %v1279 = vadd.f32 %v1277, %v1278
  %v1280 = vsel %vm1246, %v446, 0.0
  %v1281 = vadd.f32 %v1279, %v1280
  %v1282 = vsel %vm1246, %v451, 0.0
  %v1283 = vadd.f32 %v1281, %v1282
  %v1284 = vsel %vm1246, %v454, 0.0
  %v1285 = vadd.f32 %v1283, %v1284
  %v1286 = vsel %vm1246, %v459, 0.0
  %v1287 = vadd.f32 %v1285, %v1286
  %v1288 = vsel %vm1246, %v462, 0.0
  %v1289 = vadd.f32 %v1287, %v1288
  %v1290 = vsel %vm1246, %v467, 0.0
  %v1291 = vadd.f32 %v1289, %v1290
  %v1292 = vsel %vm1246, %v470, 0.0
  %v1293 = vadd.f32 %v1291, %v1292
  %v1294 = vsel %vm1246, %v475, 0.0
  %v1295 = vadd.f32 %v1293, %v1294
  %v1296 = vsel %vm1246, %v478, 0.0
  %v1297 = vadd.f32 %v1295, %v1296
  %v1298 = vsel %vm1246, %v483, 0.0
  %v1299 = vadd.f32 %v1297, %v1298
  %v1300 = vsel %vm1246, %v486, 0.0
  %v1301 = vadd.f32 %v1299, %v1300
  %v1302 = vsel %vm1246, %v491, 0.0
  %v1303 = vadd.f32 %v1301, %v1302
  %v1304 = vsel %vm1246, %v494, 0.0
  %v1305 = vadd.f32 %v1303, %v1304
  %v1306 = vsel %vm1246, %v499, 0.0
  %v1307 = vadd.f32 %v1305, %v1306
  %v1308 = vsel %vm1246, %v502, 0.0
  %v1309 = vadd.f32 %v1307, %v1308
  %v1310 = vsel %vm1246, %v507, 0.0
  %v1311 = vadd.f32 %v1309, %v1310
  %v1312 = vsel %vm1246, %v510, 0.0
  %v1313 = vadd.f32 %v1311, %v1312
  %v1314 = vsel %vm1246, %v515, 0.0
  %v1315 = vadd.f32 %v1313, %v1314
  %v1316 = vsel %vm1246, %v518, 0.0
  %v1317 = vadd.f32 %v1315, %v1316
  %v1318 = vsel %vm1246, %v523, 0.0
  %v1319 = vadd.f32 %v1317, %v1318
  %v1320 = vsel %vm1246, %v526, 0.0
  %v1321 = vadd.f32 %v1319, %v1320
  %v1322 = vsel %vm1246, %v531, 0.0
  %v1323 = vadd.f32 %v1321, %v1322
  %v1324 = vsel %vm1246, %v534, 0.0
  %v1325 = vadd.f32 %v1323, %v1324
  %v1326 = vsel %vm1246, %v539, 0.0
  %v1327 = vadd.f32 %v1325, %v1326
  %v1328 = vsel %vm1246, %v542, 0.0
  %v1329 = vadd.f32 %v1327, %v1328
  %v1330 = vsel %vm1246, %v547, 0.0
  %v1331 = vadd.f32 %v1329, %v1330
  %v1332 = vsel %vm1246, %v550, 0.0
  %v1333 = vadd.f32 %v1331, %v1332
  %v1334 = vsel %vm1246, %v555, 0.0
  %v1335 = vadd.f32 %v1333, %v1334
  %v1336 = vsel %vm1246, %v558, 0.0
  %v1337 = vadd.f32 %v1335, %v1336
  %v1338 = vsel %vm1246, %v563, 0.0
  %v1339 = vadd.f32 %v1337, %v1338
  %v1340 = vsel %vm1246, %v566, 0.0
  %v1341 = vadd.f32 %v1339, %v1340
  %v1342 = vsel %vm1246, %v571, 0.0
  %v1343 = vadd.f32 %v1341, %v1342
  %v1344 = vsel %vm1246, %v574, 0.0
  %v1345 = vadd.f32 %v1343, %v1344
  %v1346 = vsel %vm1246, %v579, 0.0
  %v1347 = vadd.f32 %v1345, %v1346
  %v1348 = vsel %vm1246, %v582, 0.0
  %v1349 = vadd.f32 %v1347, %v1348
  %v1350 = vsel %vm1246, %v587, 0.0
  %v1351 = vadd.f32 %v1349, %v1350
  %v1352 = vsel %vm1246, %v590, 0.0
  %v1353 = vadd.f32 %v1351, %v1352
  %v1354 = vsel %vm1246, %v595, 0.0
  %v1355 = vadd.f32 %v1353, %v1354
  %v1356 = vsel %vm1246, %v598, 0.0
  %v1357 = vadd.f32 %v1355, %v1356
  %v1358 = vsel %vm1246, %v603, 0.0
  %v1359 = vadd.f32 %v1357, %v1358
  %v1360 = vsel %vm1246, %v606, 0.0
  %v1361 = vadd.f32 %v1359, %v1360
  %v1362 = vsel %vm1246, %v611, 0.0
  %v1363 = vadd.f32 %v1361, %v1362
  %v1364 = vsel %vm1246, %v614, 0.0
  %v1365 = vadd.f32 %v1363, %v1364
  %v1366 = vsel %vm1246, %v619, 0.0
  %v1367 = vadd.f32 %v1365, %v1366
  %v1368 = vsel %vm1246, %v622, 0.0
  %v1369 = vadd.f32 %v1367, %v1368
  %v1370 = vsel %vm1246, %v627, 0.0
  %v1371 = vadd.f32 %v1369, %v1370
  %v1372 = vsel %vm1246, %v630, 0.0
  %v1373 = vadd.f32 %v1371, %v1372
  %v1374 = vrot.slane %v1373, 4
  %v1375 = vadd.f32 %v1373, %v1374
  %v1376 = vrot.slane %v1375, 2
  %v1377 = vadd.f32 %v1375, %v1376
  %v1378 = vrot.slane %v1377, 1
  %v1379 = vadd.f32 %v1377, %v1378
  %vm1380 = vcmask 24576
  %1381 = vst.msk [vmem:[%s4] sm:$0x1] %vm1380, %v1379
  %v1382 = vmul.f32 %v379, %v379
  %v1383 = vmul.f32 %v382, %v382
  %v1384 = vmul.f32 %v387, %v387
  %v1385 = vmul.f32 %v390, %v390
  %v1386 = vmul.f32 %v395, %v395
  %v1387 = vmul.f32 %v398, %v398
  %v1388 = vmul.f32 %v403, %v403
  %v1389 = vmul.f32 %v406, %v406
  %v1390 = vmul.f32 %v411, %v411
  %v1391 = vmul.f32 %v414, %v414
  %v1392 = vmul.f32 %v419, %v419
  %v1393 = vmul.f32 %v422, %v422
  %v1394 = vmul.f32 %v427, %v427
  %v1395 = vmul.f32 %v430, %v430
  %v1396 = vmul.f32 %v435, %v435
  %v1397 = vmul.f32 %v438, %v438
  %v1398 = vmul.f32 %v443, %v443
  %v1399 = vmul.f32 %v446, %v446
  %v1400 = vmul.f32 %v451, %v451
  %v1401 = vmul.f32 %v454, %v454
  %v1402 = vmul.f32 %v459, %v459
  %v1403 = vmul.f32 %v462, %v462
  %v1404 = vmul.f32 %v467, %v467
  %v1405 = vmul.f32 %v470, %v470
  %v1406 = vmul.f32 %v475, %v475
  %v1407 = vmul.f32 %v478, %v478
  %v1408 = vmul.f32 %v483, %v483
  %v1409 = vmul.f32 %v486, %v486
  %v1410 = vmul.f32 %v491, %v491
  %v1411 = vmul.f32 %v494, %v494
  %v1412 = vmul.f32 %v499, %v499
  %v1413 = vmul.f32 %v502, %v502
  %v1414 = vmul.f32 %v507, %v507
  %v1415 = vmul.f32 %v510, %v510
  %v1416 = vmul.f32 %v515, %v515
  %v1417 = vmul.f32 %v518, %v518
  %v1418 = vmul.f32 %v523, %v523
  %v1419 = vmul.f32 %v526, %v526
  %v1420 = vmul.f32 %v531, %v531
  %v1421 = vmul.f32 %v534, %v534
  %v1422 = vmul.f32 %v539, %v539
  %v1423 = vmul.f32 %v542, %v542
  %v1424 = vmul.f32 %v547, %v547
  %v1425 = vmul.f32 %v550, %v550
  %v1426 = vmul.f32 %v555, %v555
  %v1427 = vmul.f32 %v558, %v558
  %v1428 = vmul.f32 %v563, %v563
  %v1429 = vmul.f32 %v566, %v566
  %v1430 = vmul.f32 %v571, %v571
  %v1431 = vmul.f32 %v574, %v574
  %v1432 = vmul.f32 %v579, %v579
  %v1433 = vmul.f32 %v582, %v582
  %v1434 = vmul.f32 %v587, %v587
  %v1435 = vmul.f32 %v590, %v590
  %v1436 = vmul.f32 %v595, %v595
  %v1437 = vmul.f32 %v598, %v598
  %v1438 = vmul.f32 %v603, %v603
  %v1439 = vmul.f32 %v606, %v606
  %v1440 = vmul.f32 %v611, %v611
  %v1441 = vmul.f32 %v614, %v614
  %v1442 = vmul.f32 %v619, %v619
  %v1443 = vmul.f32 %v622, %v622
  %v1444 = vmul.f32 %v627, %v627
  %v1445 = vmul.f32 %v630, %v630
  %v1446 = vsel %vm1246, %v1382, 0.0
  %v1447 = vsel %vm1246, %v1383, 0.0
  %v1448 = vadd.f32 %v1446, %v1447
  %v1449 = vsel %vm1246, %v1384, 0.0
  %v1450 = vadd.f32 %v1448, %v1449
  %v1451 = vsel %vm1246, %v1385, 0.0
  %v1452 = vadd.f32 %v1450, %v1451
  %v1453 = vsel %vm1246, %v1386, 0.0
  %v1454 = vadd.f32 %v1452, %v1453
  %v1455 = vsel %vm1246, %v1387, 0.0
  %v1456 = vadd.f32 %v1454, %v1455
  %v1457 = vsel %vm1246, %v1388, 0.0
  %v1458 = vadd.f32 %v1456, %v1457
  %v1459 = vsel %vm1246, %v1389, 0.0
  %v1460 = vadd.f32 %v1458, %v1459
  %v1461 = vsel %vm1246, %v1390, 0.0
  %v1462 = vadd.f32 %v1460, %v1461
  %v1463 = vsel %vm1246, %v1391, 0.0
  %v1464 = vadd.f32 %v1462, %v1463
  %v1465 = vsel %vm1246, %v1392, 0.0
  %v1466 = vadd.f32 %v1464, %v1465
  %v1467 = vsel %vm1246, %v1393, 0.0
  %v1468 = vadd.f32 %v1466, %v1467
  %v1469 = vsel %vm1246, %v1394, 0.0
  %v1470 = vadd.f32 %v1468, %v1469
  %v1471 = vsel %vm1246, %v1395, 0.0
  %v1472 = vadd.f32 %v1470, %v1471
  %v1473 = vsel %vm1246, %v1396, 0.0
  %v1474 = vadd.f32 %v1472, %v1473
  %v1475 = vsel %vm1246, %v1397, 0.0
  %v1476 = vadd.f32 %v1474, %v1475
  %v1477 = vsel %vm1246, %v1398, 0.0
  %v1478 = vadd.f32 %v1476, %v1477
  %v1479 = vsel %vm1246, %v1399, 0.0
  %v1480 = vadd.f32 %v1478, %v1479
  %v1481 = vsel %vm1246, %v1400, 0.0
  %v1482 = vadd.f32 %v1480, %v1481
  %v1483 = vsel %vm1246, %v1401, 0.0
  %v1484 = vadd.f32 %v1482, %v1483
  %v1485 = vsel %vm1246, %v1402, 0.0
  %v1486 = vadd.f32 %v1484, %v1485
  %v1487 = vsel %vm1246, %v1403, 0.0
  %v1488 = vadd.f32 %v1486, %v1487
  %v1489 = vsel %vm1246, %v1404, 0.0
  %v1490 = vadd.f32 %v1488, %v1489
  %v1491 = vsel %vm1246, %v1405, 0.0
  %v1492 = vadd.f32 %v1490, %v1491
  %v1493 = vsel %vm1246, %v1406, 0.0
  %v1494 = vadd.f32 %v1492, %v1493
  %v1495 = vsel %vm1246, %v1407, 0.0
  %v1496 = vadd.f32 %v1494, %v1495
  %v1497 = vsel %vm1246, %v1408, 0.0
  %v1498 = vadd.f32 %v1496, %v1497
  %v1499 = vsel %vm1246, %v1409, 0.0
  %v1500 = vadd.f32 %v1498, %v1499
  %v1501 = vsel %vm1246, %v1410, 0.0
  %v1502 = vadd.f32 %v1500, %v1501
  %v1503 = vsel %vm1246, %v1411, 0.0
  %v1504 = vadd.f32 %v1502, %v1503
  %v1505 = vsel %vm1246, %v1412, 0.0
  %v1506 = vadd.f32 %v1504, %v1505
  %v1507 = vsel %vm1246, %v1413, 0.0
  %v1508 = vadd.f32 %v1506, %v1507
  %v1509 = vsel %vm1246, %v1414, 0.0
  %v1510 = vadd.f32 %v1508, %v1509
  %v1511 = vsel %vm1246, %v1415, 0.0
  %v1512 = vadd.f32 %v1510, %v1511
  %v1513 = vsel %vm1246, %v1416, 0.0
  %v1514 = vadd.f32 %v1512, %v1513
  %v1515 = vsel %vm1246, %v1417, 0.0
  %v1516 = vadd.f32 %v1514, %v1515
  %v1517 = vsel %vm1246, %v1418, 0.0
  %v1518 = vadd.f32 %v1516, %v1517
  %v1519 = vsel %vm1246, %v1419, 0.0
  %v1520 = vadd.f32 %v1518, %v1519
  %v1521 = vsel %vm1246, %v1420, 0.0
  %v1522 = vadd.f32 %v1520, %v1521
  %v1523 = vsel %vm1246, %v1421, 0.0
  %v1524 = vadd.f32 %v1522, %v1523
  %v1525 = vsel %vm1246, %v1422, 0.0
  %v1526 = vadd.f32 %v1524, %v1525
  %v1527 = vsel %vm1246, %v1423, 0.0
  %v1528 = vadd.f32 %v1526, %v1527
  %v1529 = vsel %vm1246, %v1424, 0.0
  %v1530 = vadd.f32 %v1528, %v1529
  %v1531 = vsel %vm1246, %v1425, 0.0
  %v1532 = vadd.f32 %v1530, %v1531
  %v1533 = vsel %vm1246, %v1426, 0.0
  %v1534 = vadd.f32 %v1532, %v1533
  %v1535 = vsel %vm1246, %v1427, 0.0
  %v1536 = vadd.f32 %v1534, %v1535
  %v1537 = vsel %vm1246, %v1428, 0.0
  %v1538 = vadd.f32 %v1536, %v1537
  %v1539 = vsel %vm1246, %v1429, 0.0
  %v1540 = vadd.f32 %v1538, %v1539
  %v1541 = vsel %vm1246, %v1430, 0.0
  %v1542 = vadd.f32 %v1540, %v1541
  %v1543 = vsel %vm1246, %v1431, 0.0
  %v1544 = vadd.f32 %v1542, %v1543
  %v1545 = vsel %vm1246, %v1432, 0.0
  %v1546 = vadd.f32 %v1544, %v1545
  %v1547 = vsel %vm1246, %v1433, 0.0
  %v1548 = vadd.f32 %v1546, %v1547
  %v1549 = vsel %vm1246, %v1434, 0.0
  %v1550 = vadd.f32 %v1548, %v1549
  %v1551 = vsel %vm1246, %v1435, 0.0
  %v1552 = vadd.f32 %v1550, %v1551
  %v1553 = vsel %vm1246, %v1436, 0.0
  %v1554 = vadd.f32 %v1552, %v1553
  %v1555 = vsel %vm1246, %v1437, 0.0
  %v1556 = vadd.f32 %v1554, %v1555
  %v1557 = vsel %vm1246, %v1438, 0.0
  %v1558 = vadd.f32 %v1556, %v1557
  %v1559 = vsel %vm1246, %v1439, 0.0
  %v1560 = vadd.f32 %v1558, %v1559
  %v1561 = vsel %vm1246, %v1440, 0.0
  %v1562 = vadd.f32 %v1560, %v1561
  %v1563 = vsel %vm1246, %v1441, 0.0
  %v1564 = vadd.f32 %v1562, %v1563
  %v1565 = vsel %vm1246, %v1442, 0.0
  %v1566 = vadd.f32 %v1564, %v1565
  %v1567 = vsel %vm1246, %v1443, 0.0
  %v1568 = vadd.f32 %v1566, %v1567
  %v1569 = vsel %vm1246, %v1444, 0.0
  %v1570 = vadd.f32 %v1568, %v1569
  %v1571 = vsel %vm1246, %v1445, 0.0
  %v1572 = vadd.f32 %v1570, %v1571
  %v1573 = vrot.slane %v1572, 4
  %v1574 = vadd.f32 %v1572, %v1573
  %v1575 = vrot.slane %v1574, 2
  %v1576 = vadd.f32 %v1574, %v1575
  %v1577 = vrot.slane %v1576, 1
  %v1578 = vadd.f32 %v1576, %v1577
  %1579 = vst.msk [vmem:[%s4 + $0x1] sm:$0x1] %vm1380, %v1578
  %v1580 = vsel %vm1246, %v992, 0.0
  %v1581 = vsel %vm1246, %v995, 0.0
  %v1582 = vadd.f32 %v1580, %v1581
  %v1583 = vsel %vm1246, %v1000, 0.0
  %v1584 = vadd.f32 %v1582, %v1583
  %v1585 = vsel %vm1246, %v1003, 0.0
  %v1586 = vadd.f32 %v1584, %v1585
  %v1587 = vsel %vm1246, %v1008, 0.0
  %v1588 = vadd.f32 %v1586, %v1587
  %v1589 = vsel %vm1246, %v1011, 0.0
  %v1590 = vadd.f32 %v1588, %v1589
  %v1591 = vsel %vm1246, %v1016, 0.0
  %v1592 = vadd.f32 %v1590, %v1591
  %v1593 = vsel %vm1246, %v1019, 0.0
  %v1594 = vadd.f32 %v1592, %v1593
  %v1595 = vsel %vm1246, %v1024, 0.0
  %v1596 = vadd.f32 %v1594, %v1595
  %v1597 = vsel %vm1246, %v1027, 0.0
  %v1598 = vadd.f32 %v1596, %v1597
  %v1599 = vsel %vm1246, %v1032, 0.0
  %v1600 = vadd.f32 %v1598, %v1599
  %v1601 = vsel %vm1246, %v1035, 0.0
  %v1602 = vadd.f32 %v1600, %v1601
  %v1603 = vsel %vm1246, %v1040, 0.0
  %v1604 = vadd.f32 %v1602, %v1603
  %v1605 = vsel %vm1246, %v1043, 0.0
  %v1606 = vadd.f32 %v1604, %v1605
  %v1607 = vsel %vm1246, %v1048, 0.0
  %v1608 = vadd.f32 %v1606, %v1607
  %v1609 = vsel %vm1246, %v1051, 0.0
  %v1610 = vadd.f32 %v1608, %v1609
  %v1611 = vsel %vm1246, %v1056, 0.0
  %v1612 = vadd.f32 %v1610, %v1611
  %v1613 = vsel %vm1246, %v1059, 0.0
  %v1614 = vadd.f32 %v1612, %v1613
  %v1615 = vsel %vm1246, %v1064, 0.0
  %v1616 = vadd.f32 %v1614, %v1615
  %v1617 = vsel %vm1246, %v1067, 0.0
  %v1618 = vadd.f32 %v1616, %v1617
  %v1619 = vsel %vm1246, %v1072, 0.0
  %v1620 = vadd.f32 %v1618, %v1619
  %v1621 = vsel %vm1246, %v1075, 0.0
  %v1622 = vadd.f32 %v1620, %v1621
  %v1623 = vsel %vm1246, %v1080, 0.0
  %v1624 = vadd.f32 %v1622, %v1623
  %v1625 = vsel %vm1246, %v1083, 0.0
  %v1626 = vadd.f32 %v1624, %v1625
  %v1627 = vsel %vm1246, %v1088, 0.0
  %v1628 = vadd.f32 %v1626, %v1627
  %v1629 = vsel %vm1246, %v1091, 0.0
  %v1630 = vadd.f32 %v1628, %v1629
  %v1631 = vsel %vm1246, %v1096, 0.0
  %v1632 = vadd.f32 %v1630, %v1631
  %v1633 = vsel %vm1246, %v1099, 0.0
  %v1634 = vadd.f32 %v1632, %v1633
  %v1635 = vsel %vm1246, %v1104, 0.0
  %v1636 = vadd.f32 %v1634, %v1635
  %v1637 = vsel %vm1246, %v1107, 0.0
  %v1638 = vadd.f32 %v1636, %v1637
  %v1639 = vsel %vm1246, %v1112, 0.0
  %v1640 = vadd.f32 %v1638, %v1639
  %v1641 = vsel %vm1246, %v1115, 0.0
  %v1642 = vadd.f32 %v1640, %v1641
  %v1643 = vsel %vm1246, %v1120, 0.0
  %v1644 = vadd.f32 %v1642, %v1643
  %v1645 = vsel %vm1246, %v1123, 0.0
  %v1646 = vadd.f32 %v1644, %v1645
  %v1647 = vsel %vm1246, %v1128, 0.0
  %v1648 = vadd.f32 %v1646, %v1647
  %v1649 = vsel %vm1246, %v1131, 0.0
  %v1650 = vadd.f32 %v1648, %v1649
  %v1651 = vsel %vm1246, %v1136, 0.0
  %v1652 = vadd.f32 %v1650, %v1651
  %v1653 = vsel %vm1246, %v1139, 0.0
  %v1654 = vadd.f32 %v1652, %v1653
  %v1655 = vsel %vm1246, %v1144, 0.0
  %v1656 = vadd.f32 %v1654, %v1655
  %v1657 = vsel %vm1246, %v1147, 0.0
  %v1658 = vadd.f32 %v1656, %v1657
  %v1659 = vsel %vm1246, %v1152, 0.0
  %v1660 = vadd.f32 %v1658, %v1659
  %v1661 = vsel %vm1246, %v1155, 0.0
  %v1662 = vadd.f32 %v1660, %v1661
  %v1663 = vsel %vm1246, %v1160, 0.0
  %v1664 = vadd.f32 %v1662, %v1663
  %v1665 = vsel %vm1246, %v1163, 0.0
  %v1666 = vadd.f32 %v1664, %v1665
  %v1667 = vsel %vm1246, %v1168, 0.0
  %v1668 = vadd.f32 %v1666, %v1667
  %v1669 = vsel %vm1246, %v1171, 0.0
  %v1670 = vadd.f32 %v1668, %v1669
  %v1671 = vsel %vm1246, %v1176, 0.0
  %v1672 = vadd.f32 %v1670, %v1671
  %v1673 = vsel %vm1246, %v1179, 0.0
  %v1674 = vadd.f32 %v1672, %v1673
  %v1675 = vsel %vm1246, %v1184, 0.0
  %v1676 = vadd.f32 %v1674, %v1675
  %v1677 = vsel %vm1246, %v1187, 0.0
  %v1678 = vadd.f32 %v1676, %v1677
  %v1679 = vsel %vm1246, %v1192, 0.0
  %v1680 = vadd.f32 %v1678, %v1679
  %v1681 = vsel %vm1246, %v1195, 0.0
  %v1682 = vadd.f32 %v1680, %v1681
  %v1683 = vsel %vm1246, %v1200, 0.0
  %v1684 = vadd.f32 %v1682, %v1683
  %v1685 = vsel %vm1246, %v1203, 0.0
  %v1686 = vadd.f32 %v1684, %v1685
  %v1687 = vsel %vm1246, %v1208, 0.0
  %v1688 = vadd.f32 %v1686, %v1687
  %v1689 = vsel %vm1246, %v1211, 0.0
  %v1690 = vadd.f32 %v1688, %v1689
  %v1691 = vsel %vm1246, %v1216, 0.0
  %v1692 = vadd.f32 %v1690, %v1691
  %v1693 = vsel %vm1246, %v1219, 0.0
  %v1694 = vadd.f32 %v1692, %v1693
  %v1695 = vsel %vm1246, %v1224, 0.0
  %v1696 = vadd.f32 %v1694, %v1695
  %v1697 = vsel %vm1246, %v1227, 0.0
  %v1698 = vadd.f32 %v1696, %v1697
  %v1699 = vsel %vm1246, %v1232, 0.0
  %v1700 = vadd.f32 %v1698, %v1699
  %v1701 = vsel %vm1246, %v1235, 0.0
  %v1702 = vadd.f32 %v1700, %v1701
  %v1703 = vsel %vm1246, %v1240, 0.0
  %v1704 = vadd.f32 %v1702, %v1703
  %v1705 = vsel %vm1246, %v1243, 0.0
  %v1706 = vadd.f32 %v1704, %v1705
  %v1707 = vrot.slane %v1706, 4
  %v1708 = vadd.f32 %v1706, %v1707
  %v1709 = vrot.slane %v1708, 2
  %v1710 = vadd.f32 %v1708, %v1709
  %v1711 = vrot.slane %v1710, 1
  %v1712 = vadd.f32 %v1710, %v1711
  %1713 = vst.msk [vmem:[%s4 + $0x2] sm:$0x1] %vm1380, %v1712
  %v1714 = vmul.f32 %v992, %v992
  %v1715 = vmul.f32 %v995, %v995
  %v1716 = vmul.f32 %v1000, %v1000
  %v1717 = vmul.f32 %v1003, %v1003
  %v1718 = vmul.f32 %v1008, %v1008
  %v1719 = vmul.f32 %v1011, %v1011
  %v1720 = vmul.f32 %v1016, %v1016
  %v1721 = vmul.f32 %v1019, %v1019
  %v1722 = vmul.f32 %v1024, %v1024
  %v1723 = vmul.f32 %v1027, %v1027
  %v1724 = vmul.f32 %v1032, %v1032
  %v1725 = vmul.f32 %v1035, %v1035
  %v1726 = vmul.f32 %v1040, %v1040
  %v1727 = vmul.f32 %v1043, %v1043
  %v1728 = vmul.f32 %v1048, %v1048
  %v1729 = vmul.f32 %v1051, %v1051
  %v1730 = vmul.f32 %v1056, %v1056
  %v1731 = vmul.f32 %v1059, %v1059
  %v1732 = vmul.f32 %v1064, %v1064
  %v1733 = vmul.f32 %v1067, %v1067
  %v1734 = vmul.f32 %v1072, %v1072
  %v1735 = vmul.f32 %v1075, %v1075
  %v1736 = vmul.f32 %v1080, %v1080
  %v1737 = vmul.f32 %v1083, %v1083
  %v1738 = vmul.f32 %v1088, %v1088
  %v1739 = vmul.f32 %v1091, %v1091
  %v1740 = vmul.f32 %v1096, %v1096
  %v1741 = vmul.f32 %v1099, %v1099
  %v1742 = vmul.f32 %v1104, %v1104
  %v1743 = vmul.f32 %v1107, %v1107
  %v1744 = vmul.f32 %v1112, %v1112
  %v1745 = vmul.f32 %v1115, %v1115
  %v1746 = vmul.f32 %v1120, %v1120
  %v1747 = vmul.f32 %v1123, %v1123
  %v1748 = vmul.f32 %v1128, %v1128
  %v1749 = vmul.f32 %v1131, %v1131
  %v1750 = vmul.f32 %v1136, %v1136
  %v1751 = vmul.f32 %v1139, %v1139
  %v1752 = vmul.f32 %v1144, %v1144
  %v1753 = vmul.f32 %v1147, %v1147
  %v1754 = vmul.f32 %v1152, %v1152
  %v1755 = vmul.f32 %v1155, %v1155
  %v1756 = vmul.f32 %v1160, %v1160
  %v1757 = vmul.f32 %v1163, %v1163
  %v1758 = vmul.f32 %v1168, %v1168
  %v1759 = vmul.f32 %v1171, %v1171
  %v1760 = vmul.f32 %v1176, %v1176
  %v1761 = vmul.f32 %v1179, %v1179
  %v1762 = vmul.f32 %v1184, %v1184
  %v1763 = vmul.f32 %v1187, %v1187
  %v1764 = vmul.f32 %v1192, %v1192
  %v1765 = vmul.f32 %v1195, %v1195
  %v1766 = vmul.f32 %v1200, %v1200
  %v1767 = vmul.f32 %v1203, %v1203
  %v1768 = vmul.f32 %v1208, %v1208
  %v1769 = vmul.f32 %v1211, %v1211
  %v1770 = vmul.f32 %v1216, %v1216
  %v1771 = vmul.f32 %v1219, %v1219
  %v1772 = vmul.f32 %v1224, %v1224
  %v1773 = vmul.f32 %v1227, %v1227
  %v1774 = vmul.f32 %v1232, %v1232
  %v1775 = vmul.f32 %v1235, %v1235
  %v1776 = vmul.f32 %v1240, %v1240
  %v1777 = vmul.f32 %v1243, %v1243
  %v1778 = vsel %vm1246, %v1714, 0.0
  %v1779 = vsel %vm1246, %v1715, 0.0
  %v1780 = vadd.f32 %v1778, %v1779
  %v1781 = vsel %vm1246, %v1716, 0.0
  %v1782 = vadd.f32 %v1780, %v1781
  %v1783 = vsel %vm1246, %v1717, 0.0
  %v1784 = vadd.f32 %v1782, %v1783
  %v1785 = vsel %vm1246, %v1718, 0.0
  %v1786 = vadd.f32 %v1784, %v1785
  %v1787 = vsel %vm1246, %v1719, 0.0
  %v1788 = vadd.f32 %v1786, %v1787
  %v1789 = vsel %vm1246, %v1720, 0.0
  %v1790 = vadd.f32 %v1788, %v1789
  %v1791 = vsel %vm1246, %v1721, 0.0
  %v1792 = vadd.f32 %v1790, %v1791
  %v1793 = vsel %vm1246, %v1722, 0.0
  %v1794 = vadd.f32 %v1792, %v1793
  %v1795 = vsel %vm1246, %v1723, 0.0
  %v1796 = vadd.f32 %v1794, %v1795
  %v1797 = vsel %vm1246, %v1724, 0.0
  %v1798 = vadd.f32 %v1796, %v1797
  %v1799 = vsel %vm1246, %v1725, 0.0
  %v1800 = vadd.f32 %v1798, %v1799
  %v1801 = vsel %vm1246, %v1726, 0.0
  %v1802 = vadd.f32 %v1800, %v1801
  %v1803 = vsel %vm1246, %v1727, 0.0
  %v1804 = vadd.f32 %v1802, %v1803
  %v1805 = vsel %vm1246, %v1728, 0.0
  %v1806 = vadd.f32 %v1804, %v1805
  %v1807 = vsel %vm1246, %v1729, 0.0
  %v1808 = vadd.f32 %v1806, %v1807
  %v1809 = vsel %vm1246, %v1730, 0.0
  %v1810 = vadd.f32 %v1808, %v1809
  %v1811 = vsel %vm1246, %v1731, 0.0
  %v1812 = vadd.f32 %v1810, %v1811
  %v1813 = vsel %vm1246, %v1732, 0.0
  %v1814 = vadd.f32 %v1812, %v1813
  %v1815 = vsel %vm1246, %v1733, 0.0
  %v1816 = vadd.f32 %v1814, %v1815
  %v1817 = vsel %vm1246, %v1734, 0.0
  %v1818 = vadd.f32 %v1816, %v1817
  %v1819 = vsel %vm1246, %v1735, 0.0
  %v1820 = vadd.f32 %v1818, %v1819
  %v1821 = vsel %vm1246, %v1736, 0.0
  %v1822 = vadd.f32 %v1820, %v1821
  %v1823 = vsel %vm1246, %v1737, 0.0
  %v1824 = vadd.f32 %v1822, %v1823
  %v1825 = vsel %vm1246, %v1738, 0.0
  %v1826 = vadd.f32 %v1824, %v1825
  %v1827 = vsel %vm1246, %v1739, 0.0
  %v1828 = vadd.f32 %v1826, %v1827
  %v1829 = vsel %vm1246, %v1740, 0.0
  %v1830 = vadd.f32 %v1828, %v1829
  %v1831 = vsel %vm1246, %v1741, 0.0
  %v1832 = vadd.f32 %v1830, %v1831
  %v1833 = vsel %vm1246, %v1742, 0.0
  %v1834 = vadd.f32 %v1832, %v1833
  %v1835 = vsel %vm1246, %v1743, 0.0
  %v1836 = vadd.f32 %v1834, %v1835
  %v1837 = vsel %vm1246, %v1744, 0.0
  %v1838 = vadd.f32 %v1836, %v1837
  %v1839 = vsel %vm1246, %v1745, 0.0
  %v1840 = vadd.f32 %v1838, %v1839
  %v1841 = vsel %vm1246, %v1746, 0.0
  %v1842 = vadd.f32 %v1840, %v1841
  %v1843 = vsel %vm1246, %v1747, 0.0
  %v1844 = vadd.f32 %v1842, %v1843
  %v1845 = vsel %vm1246, %v1748, 0.0
  %v1846 = vadd.f32 %v1844, %v1845
  %v1847 = vsel %vm1246, %v1749, 0.0
  %v1848 = vadd.f32 %v1846, %v1847
  %v1849 = vsel %vm1246, %v1750, 0.0
  %v1850 = vadd.f32 %v1848, %v1849
  %v1851 = vsel %vm1246, %v1751, 0.0
  %v1852 = vadd.f32 %v1850, %v1851
  %v1853 = vsel %vm1246, %v1752, 0.0
  %v1854 = vadd.f32 %v1852, %v1853
  %v1855 = vsel %vm1246, %v1753, 0.0
  %v1856 = vadd.f32 %v1854, %v1855
  %v1857 = vsel %vm1246, %v1754, 0.0
  %v1858 = vadd.f32 %v1856, %v1857
  %v1859 = vsel %vm1246, %v1755, 0.0
  %v1860 = vadd.f32 %v1858, %v1859
  %v1861 = vsel %vm1246, %v1756, 0.0
  %v1862 = vadd.f32 %v1860, %v1861
  %v1863 = vsel %vm1246, %v1757, 0.0
  %v1864 = vadd.f32 %v1862, %v1863
  %v1865 = vsel %vm1246, %v1758, 0.0
  %v1866 = vadd.f32 %v1864, %v1865
  %v1867 = vsel %vm1246, %v1759, 0.0
  %v1868 = vadd.f32 %v1866, %v1867
  %v1869 = vsel %vm1246, %v1760, 0.0
  %v1870 = vadd.f32 %v1868, %v1869
  %v1871 = vsel %vm1246, %v1761, 0.0
  %v1872 = vadd.f32 %v1870, %v1871
  %v1873 = vsel %vm1246, %v1762, 0.0
  %v1874 = vadd.f32 %v1872, %v1873
  %v1875 = vsel %vm1246, %v1763, 0.0
  %v1876 = vadd.f32 %v1874, %v1875
  %v1877 = vsel %vm1246, %v1764, 0.0
  %v1878 = vadd.f32 %v1876, %v1877
  %v1879 = vsel %vm1246, %v1765, 0.0
  %v1880 = vadd.f32 %v1878, %v1879
  %v1881 = vsel %vm1246, %v1766, 0.0
  %v1882 = vadd.f32 %v1880, %v1881
  %v1883 = vsel %vm1246, %v1767, 0.0
  %v1884 = vadd.f32 %v1882, %v1883
  %v1885 = vsel %vm1246, %v1768, 0.0
  %v1886 = vadd.f32 %v1884, %v1885
  %v1887 = vsel %vm1246, %v1769, 0.0
  %v1888 = vadd.f32 %v1886, %v1887
  %v1889 = vsel %vm1246, %v1770, 0.0
  %v1890 = vadd.f32 %v1888, %v1889
  %v1891 = vsel %vm1246, %v1771, 0.0
  %v1892 = vadd.f32 %v1890, %v1891
  %v1893 = vsel %vm1246, %v1772, 0.0
  %v1894 = vadd.f32 %v1892, %v1893
  %v1895 = vsel %vm1246, %v1773, 0.0
  %v1896 = vadd.f32 %v1894, %v1895
  %v1897 = vsel %vm1246, %v1774, 0.0
  %v1898 = vadd.f32 %v1896, %v1897
  %v1899 = vsel %vm1246, %v1775, 0.0
  %v1900 = vadd.f32 %v1898, %v1899
  %v1901 = vsel %vm1246, %v1776, 0.0
  %v1902 = vadd.f32 %v1900, %v1901
  %v1903 = vsel %vm1246, %v1777, 0.0
  %v1904 = vadd.f32 %v1902, %v1903
  %v1905 = vrot.slane %v1904, 4
  %v1906 = vadd.f32 %v1904, %v1905
  %v1907 = vrot.slane %v1906, 2
  %v1908 = vadd.f32 %v1906, %v1907
  %v1909 = vrot.slane %v1908, 1
  %v1910 = vadd.f32 %v1908, %v1909
  %1911 = vst.msk [vmem:[%s4 + $0x3] sm:$0x1] %vm1380, %v1910
  // Predicated region
  $region18: #{attention_block_forward.3} parent=0 // pred_check
    _
  $region19: #{attention_block_forward.3} parent=0 // pred_check_branch
    %1913 = sbr.rel (0) target = $region21
  $region20: #{attention_block_forward.3} parent=0 // pred_region
    _
  $region21: #{attention_block_forward.3} parent=0 // pred_fallthru
    _
  // Predicated region
  $region22: #{attention_block_forward.3} parent=0 // pred_check
    _
  $region23: #{attention_block_forward.3} parent=0 // pred_check_branch
    %1915 = sbr.rel (0) target = $region25
  $region24: #{attention_block_forward.3} parent=0 // pred_region
    _
  $region25: #{attention_block_forward.3} parent=0 // pred_fallthru
    _

// kernel: attention_block_forward.4
$region0: #{attention_block_forward.4}
  #allocation0 [shape = 'u32[]', space=smem, size = 0x4, offset = 0x4, fixed_abs, tag = 'smem constant byte address 0x4 - core index']
  #allocation1 [shape = 'u32[144,128]{1,0:T(1,128)}', space=vmem, size = 0x12000, scoped, tag = 'internal scratch']
  %s0 = inlined_call_operand.vmem [shape: bf16[512,8], index: 0, kind: input, shape index: {}]
  %s1 = inlined_call_operand.vmem [shape: bf16[512,8], index: 1, kind: input, shape index: {}]
  %s2 = inlined_call_operand.vmem [shape: bf16[8,4], index: 2, kind: input, shape index: {}]
  %s3 = inlined_call_operand.vmem [shape: bf16[8,4], index: 3, kind: input, shape index: {}]
  %s4 = inlined_call_operand.vmem [shape: f32[4,4], index: 4, kind: input, shape index: {}]
  %s5 = inlined_call_operand.vmem [shape: f32[1,4], index: 5, kind: input, shape index: {}]
  %s6 = inlined_call_operand.vmem [shape: f32[512,1], index: 6, kind: output, shape index: {0}]
  %s7 = inlined_call_operand.vmem [shape: f32[1,2,1], index: 7, kind: output, shape index: {1}]
  %8 = xla_tuple %s6, %s7
  %s9 = sld [smem:[#allocation0]]
  $region42: #{attention_block_forward.4} parent=0
    _
  %s11 = ssub.s32 1, %s9
  %s12 = scalar_select 0, %s11, %s9
  // Predicated region
  $region2: #{attention_block_forward.4} parent=0 // pred_check
    _
  $region3: #{attention_block_forward.4} parent=0 // pred_check_branch
    %14 = sbr.rel (0) target = $region5
  $region4: #{attention_block_forward.4} parent=0 // pred_region
    _
  $region5: #{attention_block_forward.4} parent=0 // pred_fallthru
    _
  // Predicated region
  $region6: #{attention_block_forward.4} parent=0 // pred_check
    _
  $region7: #{attention_block_forward.4} parent=0 // pred_check_branch
    %16 = sbr.rel (0) target = $region9
  $region8: #{attention_block_forward.4} parent=0 // pred_region
    _
  $region9: #{attention_block_forward.4} parent=0 // pred_fallthru
    _
  // Predicated region
  $region10: #{attention_block_forward.4} parent=0 // pred_check
    _
  $region11: #{attention_block_forward.4} parent=0 // pred_check_branch
    %18 = sbr.rel (0) target = $region13
  $region12: #{attention_block_forward.4} parent=0 // pred_region
    _
  $region13: #{attention_block_forward.4} parent=0 // pred_fallthru
    _
  // Predicated region
  $region14: #{attention_block_forward.4} parent=0 // pred_check
    _
  $region15: #{attention_block_forward.4} parent=0 // pred_check_branch
    %20 = sbr.rel (0) target = $region17
  $region16: #{attention_block_forward.4} parent=0 // pred_region
    _
  $region17: #{attention_block_forward.4} parent=0 // pred_fallthru
    _
  // Predicated region
  $region18: #{attention_block_forward.4} parent=0 // pred_check
    _
  $region19: #{attention_block_forward.4} parent=0 // pred_check_branch
    %22 = sbr.rel (0) target = $region21
  $region20: #{attention_block_forward.4} parent=0 // pred_region
    _
  $region21: #{attention_block_forward.4} parent=0 // pred_fallthru
    _
  // Predicated region
  $region22: #{attention_block_forward.4} parent=0 // pred_check
    _
  $region23: #{attention_block_forward.4} parent=0 // pred_check_branch
    %24 = sbr.rel (0) target = $region25
  $region24: #{attention_block_forward.4} parent=0 // pred_region
    _
  $region25: #{attention_block_forward.4} parent=0 // pred_fallthru
    _
  %v26 = vld [vmem:[%s0] sm:$0xf]
  %v27 = vld [vmem:[%s0 + $0x4] sm:$0xf]
  %v28 = vld [vmem:[%s0 + $0x8] sm:$0xf]
  %v29 = vld [vmem:[%s0 + $0xc] sm:$0xf]
  %v30 = vld [vmem:[%s0 + $0x10] sm:$0xf]
  %v31 = vld [vmem:[%s0 + $0x14] sm:$0xf]
  %v32 = vld [vmem:[%s0 + $0x18] sm:$0xf]
  %v33 = vld [vmem:[%s0 + $0x1c] sm:$0xf]
  %v34 = vld [vmem:[%s0 + $0x20] sm:$0xf]
  %v35 = vld [vmem:[%s0 + $0x24] sm:$0xf]
  %v36 = vld [vmem:[%s0 + $0x28] sm:$0xf]
  %v37 = vld [vmem:[%s0 + $0x2c] sm:$0xf]
  %v38 = vld [vmem:[%s0 + $0x30] sm:$0xf]
  %v39 = vld [vmem:[%s0 + $0x34] sm:$0xf]
  %v40 = vld [vmem:[%s0 + $0x38] sm:$0xf]
  %v41 = vld [vmem:[%s0 + $0x3c] sm:$0xf]
  %v42 = vld [vmem:[%s0 + $0x40] sm:$0xf]
  %v43 = vld [vmem:[%s0 + $0x44] sm:$0xf]
  %v44 = vld [vmem:[%s0 + $0x48] sm:$0xf]
  %v45 = vld [vmem:[%s0 + $0x4c] sm:$0xf]
  %v46 = vld [vmem:[%s0 + $0x50] sm:$0xf]
  %v47 = vld [vmem:[%s0 + $0x54] sm:$0xf]
  %v48 = vld [vmem:[%s0 + $0x58] sm:$0xf]
  %v49 = vld [vmem:[%s0 + $0x5c] sm:$0xf]
  %v50 = vld [vmem:[%s0 + $0x60] sm:$0xf]
  %v51 = vld [vmem:[%s0 + $0x64] sm:$0xf]
  %v52 = vld [vmem:[%s0 + $0x68] sm:$0xf]
  %v53 = vld [vmem:[%s0 + $0x6c] sm:$0xf]
  %v54 = vld [vmem:[%s0 + $0x70] sm:$0xf]
  %v55 = vld [vmem:[%s0 + $0x74] sm:$0xf]
  %v56 = vld [vmem:[%s0 + $0x78] sm:$0xf]
  %v57 = vld [vmem:[%s0 + $0x7c] sm:$0xf]
  %v58 = vld [vmem:[%s0 + $0x80] sm:$0xf]
  %v59 = vld [vmem:[%s0 + $0x84] sm:$0xf]
  %v60 = vld [vmem:[%s0 + $0x88] sm:$0xf]
  %v61 = vld [vmem:[%s0 + $0x8c] sm:$0xf]
  %v62 = vld [vmem:[%s0 + $0x90] sm:$0xf]
  %v63 = vld [vmem:[%s0 + $0x94] sm:$0xf]
  %v64 = vld [vmem:[%s0 + $0x98] sm:$0xf]
  %v65 = vld [vmem:[%s0 + $0x9c] sm:$0xf]
  %v66 = vld [vmem:[%s0 + $0xa0] sm:$0xf]
  %v67 = vld [vmem:[%s0 + $0xa4] sm:$0xf]
  %v68 = vld [vmem:[%s0 + $0xa8] sm:$0xf]
  %v69 = vld [vmem:[%s0 + $0xac] sm:$0xf]
  %v70 = vld [vmem:[%s0 + $0xb0] sm:$0xf]
  %v71 = vld [vmem:[%s0 + $0xb4] sm:$0xf]
  %v72 = vld [vmem:[%s0 + $0xb8] sm:$0xf]
  %v73 = vld [vmem:[%s0 + $0xbc] sm:$0xf]
  %v74 = vld [vmem:[%s0 + $0xc0] sm:$0xf]
  %v75 = vld [vmem:[%s0 + $0xc4] sm:$0xf]
  %v76 = vld [vmem:[%s0 + $0xc8] sm:$0xf]
  %v77 = vld [vmem:[%s0 + $0xcc] sm:$0xf]
  %v78 = vld [vmem:[%s0 + $0xd0] sm:$0xf]
  %v79 = vld [vmem:[%s0 + $0xd4] sm:$0xf]
  %v80 = vld [vmem:[%s0 + $0xd8] sm:$0xf]
  %v81 = vld [vmem:[%s0 + $0xdc] sm:$0xf]
  %v82 = vld [vmem:[%s0 + $0xe0] sm:$0xf]
  %v83 = vld [vmem:[%s0 + $0xe4] sm:$0xf]
  %v84 = vld [vmem:[%s0 + $0xe8] sm:$0xf]
  %v85 = vld [vmem:[%s0 + $0xec] sm:$0xf]
  %v86 = vld [vmem:[%s0 + $0xf0] sm:$0xf]
  %v87 = vld [vmem:[%s0 + $0xf4] sm:$0xf]
  %v88 = vld [vmem:[%s0 + $0xf8] sm:$0xf]
  %v89 = vld [vmem:[%s0 + $0xfc] sm:$0xf]
  %v90 = vld [vmem:[%s2] sm:$0xf]
  %v155 = vunpack.c.l.b16 %v26
  %v156 = vunpack.c.l.b16 %v27
  %v157 = vunpack.c.l.b16 %v28
  %v158 = vunpack.c.l.b16 %v29
  %v159 = vunpack.c.l.b16 %v30
  %v160 = vunpack.c.l.b16 %v31
  %v161 = vunpack.c.l.b16 %v32
  %v162 = vunpack.c.l.b16 %v33
  %v163 = vunpack.c.l.b16 %v34
  %v164 = vunpack.c.l.b16 %v35
  %v165 = vunpack.c.l.b16 %v36
  %v166 = vunpack.c.l.b16 %v37
  %v167 = vunpack.c.l.b16 %v38
  %v168 = vunpack.c.l.b16 %v39
  %v169 = vunpack.c.l.b16 %v40
  %v170 = vunpack.c.l.b16 %v41
  %v171 = vunpack.c.l.b16 %v42
  %v172 = vunpack.c.l.b16 %v43
  %v173 = vunpack.c.l.b16 %v44
  %v174 = vunpack.c.l.b16 %v45
  %v175 = vunpack.c.l.b16 %v46
  %v176 = vunpack.c.l.b16 %v47
  %v177 = vunpack.c.l.b16 %v48
  %v178 = vunpack.c.l.b16 %v49
  %v179 = vunpack.c.l.b16 %v50
  %v180 = vunpack.c.l.b16 %v51
  %v181 = vunpack.c.l.b16 %v52
  %v182 = vunpack.c.l.b16 %v53
  %v183 = vunpack.c.l.b16 %v54
  %v184 = vunpack.c.l.b16 %v55
  %v185 = vunpack.c.l.b16 %v56
  %v186 = vunpack.c.l.b16 %v57
  %v187 = vunpack.c.l.b16 %v58
  %v188 = vunpack.c.l.b16 %v59
  %v189 = vunpack.c.l.b16 %v60
  %v190 = vunpack.c.l.b16 %v61
  %v191 = vunpack.c.l.b16 %v62
  %v192 = vunpack.c.l.b16 %v63
  %v193 = vunpack.c.l.b16 %v64
  %v194 = vunpack.c.l.b16 %v65
  %v195 = vunpack.c.l.b16 %v66
  %v196 = vunpack.c.l.b16 %v67
  %v197 = vunpack.c.l.b16 %v68
  %v198 = vunpack.c.l.b16 %v69
  %v199 = vunpack.c.l.b16 %v70
  %v200 = vunpack.c.l.b16 %v71
  %v201 = vunpack.c.l.b16 %v72
  %v202 = vunpack.c.l.b16 %v73
  %v203 = vunpack.c.l.b16 %v74
  %v204 = vunpack.c.l.b16 %v75
  %v205 = vunpack.c.l.b16 %v76
  %v206 = vunpack.c.l.b16 %v77
  %v207 = vunpack.c.l.b16 %v78
  %v208 = vunpack.c.l.b16 %v79
  %v209 = vunpack.c.l.b16 %v80
  %v210 = vunpack.c.l.b16 %v81
  %v211 = vunpack.c.l.b16 %v82
  %v212 = vunpack.c.l.b16 %v83
  %v213 = vunpack.c.l.b16 %v84
  %v214 = vunpack.c.l.b16 %v85
  %v215 = vunpack.c.l.b16 %v86
  %v216 = vunpack.c.l.b16 %v87
  %v217 = vunpack.c.l.b16 %v88
  %v218 = vunpack.c.l.b16 %v89
  %v219 = vpack.c.b16 %v156, %v155
  %v220 = vpack.c.b16 %v158, %v157
  %v221 = vpack.c.b16 %v160, %v159
  %v222 = vpack.c.b16 %v162, %v161
  %v223 = vpack.c.b16 %v164, %v163
  %v224 = vpack.c.b16 %v166, %v165
  %v225 = vpack.c.b16 %v168, %v167
  %v226 = vpack.c.b16 %v170, %v169
  %v227 = vpack.c.b16 %v172, %v171
  %v228 = vpack.c.b16 %v174, %v173
  %v229 = vpack.c.b16 %v176, %v175
  %v230 = vpack.c.b16 %v178, %v177
  %v231 = vpack.c.b16 %v180, %v179
  %v232 = vpack.c.b16 %v182, %v181
  %v233 = vpack.c.b16 %v184, %v183
  %v234 = vpack.c.b16 %v186, %v185
  %v235 = vpack.c.b16 %v188, %v187
  %v236 = vpack.c.b16 %v190, %v189
  %v237 = vpack.c.b16 %v192, %v191
  %v238 = vpack.c.b16 %v194, %v193
  %v239 = vpack.c.b16 %v196, %v195
  %v240 = vpack.c.b16 %v198, %v197
  %v241 = vpack.c.b16 %v200, %v199
  %v242 = vpack.c.b16 %v202, %v201
  %v243 = vpack.c.b16 %v204, %v203
  %v244 = vpack.c.b16 %v206, %v205
  %v245 = vpack.c.b16 %v208, %v207
  %v246 = vpack.c.b16 %v210, %v209
  %v247 = vpack.c.b16 %v212, %v211
  %v248 = vpack.c.b16 %v214, %v213
  %v249 = vpack.c.b16 %v216, %v215
  %v250 = vpack.c.b16 %v218, %v217
  %vm251 = vcmask 64512
  %v253 = vsel %vm251, %v219, 0
  %v256 = vsel %vm251, %v220, 0
  %v259 = vsel %vm251, %v221, 0
  %v262 = vsel %vm251, %v222, 0
  %v265 = vsel %vm251, %v223, 0
  %v268 = vsel %vm251, %v224, 0
  %v271 = vsel %vm251, %v225, 0
  %v274 = vsel %vm251, %v226, 0
  %v277 = vsel %vm251, %v227, 0
  %v280 = vsel %vm251, %v228, 0
  %v283 = vsel %vm251, %v229, 0
  %v286 = vsel %vm251, %v230, 0
  %v289 = vsel %vm251, %v231, 0
  %v292 = vsel %vm251, %v232, 0
  %v295 = vsel %vm251, %v233, 0
  %v298 = vsel %vm251, %v234, 0
  %v301 = vsel %vm251, %v235, 0
  %v304 = vsel %vm251, %v236, 0
  %v307 = vsel %vm251, %v237, 0
  %v310 = vsel %vm251, %v238, 0
  %v313 = vsel %vm251, %v239, 0
  %v316 = vsel %vm251, %v240, 0
  %v319 = vsel %vm251, %v241, 0
  %v322 = vsel %vm251, %v242, 0
  %v325 = vsel %vm251, %v243, 0
  %v328 = vsel %vm251, %v244, 0
  %v331 = vsel %vm251, %v245, 0
  %v334 = vsel %vm251, %v246, 0
  %v337 = vsel %vm251, %v247, 0
  %v340 = vsel %vm251, %v248, 0
  %v343 = vsel %vm251, %v249, 0
  %v346 = vsel %vm251, %v250, 0
  %vm348 = vcmask 1043456
  %v350 = vsel %vm348, %v90, 0
  %352 = vmatprep.subr.bf16.mxu0 0
  %353 = vmatpush1.bf16.msra.mxu0 %v350
  %354 = vmatprep.subr.bf16.mxu0 0
  %355 = vmatpush1.bf16.msra.mxu0 0
  %356 = vmatprep.subr.bf16.mxu0 0
  %357 = vmatpush1.bf16.msra.mxu0 0
  %358 = vmatprep.subr.bf16.mxu0 0
  %359 = vmatpush1.bf16.msra.mxu0 0
  %360 = vmatprep.subr.bf16.mxu0 0
  %361 = vmatpush1.bf16.msra.mxu0 0
  %362 = vmatprep.subr.bf16.mxu0 0
  %363 = vmatpush1.bf16.msra.mxu0 0
  %364 = vmatprep.subr.bf16.mxu0 0
  %365 = vmatpush1.bf16.msra.mxu0 0
  %366 = vmatprep.subr.bf16.mxu0 0
  %367 = vmatpush1.bf16.msra.mxu0 0
  %368 = vmatprep.subr.bf16.mxu0 0
  %369 = vmatpush1.bf16.msra.mxu0 0
  %370 = vmatprep.subr.bf16.mxu0 0
  %371 = vmatpush1.bf16.msra.mxu0 0
  %372 = vmatprep.subr.bf16.mxu0 0
  %373 = vmatpush1.bf16.msra.mxu0 0
  %374 = vmatprep.subr.bf16.mxu0 0
  %375 = vmatpush1.bf16.msra.mxu0 0
  %376 = vmatprep.subr.bf16.mxu0 0
  %377 = vmatpush1.bf16.msra.mxu0 0
  %378 = vmatprep.subr.bf16.mxu0 0
  %379 = vmatpush1.bf16.msra.mxu0 0
  %380 = vmatprep.subr.bf16.mxu0 0
  %381 = vmatpush1.bf16.msra.mxu0 0
  %382 = vmatprep.subr.bf16.mxu0 0
  %383 = vmatpush1.bf16.msra.mxu0 0
  %384 = vmatprep.mubr.bf16.mxu0 0
  %385 = vmatmul.mubr.bf16.gmra.mrb[0].mxu0 %v253
  %v386 = vpop.f32.mrb[0].mxu0
  %v387 = vadd.f32 0.0, %v386
  %v388 = vpop.f32.mrb[0].mxu0
  %v389 = vpop.f32.mrb[0].mxu0
  %v390 = vadd.f32 0.0, %v389
  %v391 = vpop.f32.mrb[0].mxu0
  %392 = vmatprep.mubr.bf16.mxu0 0
  %393 = vmatmul.mubr.bf16.gmra.mrb[0].mxu0 %v256
  %v394 = vpop.f32.mrb[0].mxu0
  %v395 = vadd.f32 0.0, %v394
  %v396 = vpop.f32.mrb[0].mxu0
  %v397 = vpop.f32.mrb[0].mxu0
  %v398 = vadd.f32 0.0, %v397
  %v399 = vpop.f32.mrb[0].mxu0
  %400 = vmatprep.mubr.bf16.mxu0 0
  %401 = vmatmul.mubr.bf16.gmra.mrb[0].mxu0 %v259
  %v402 = vpop.f32.mrb[0].mxu0
  %v403 = vadd.f32 0.0, %v402
  %v404 = vpop.f32.mrb[0].mxu0
  %v405 = vpop.f32.mrb[0].mxu0
  %v406 = vadd.f32 0.0, %v405
  %v407 = vpop.f32.mrb[0].mxu0
  %408 = vmatprep.mubr.bf16.mxu0 0
  %409 = vmatmul.mubr.bf16.gmra.mrb[0].mxu0 %v262
  %v410 = vpop.f32.mrb[0].mxu0
  %v411 = vadd.f32 0.0, %v410
  %v412 = vpop.f32.mrb[0].mxu0
  %v413 = vpop.f32.mrb[0].mxu0
  %v414 = vadd.f32 0.0, %v413
  %v415 = vpop.f32.mrb[0].mxu0
  %416 = vmatprep.mubr.bf16.mxu0 0
  %417 = vmatmul.mubr.bf16.gmra.mrb[0].mxu0 %v265
  %v418 = vpop.f32.mrb[0].mxu0
  %v419 = vadd.f32 0.0, %v418
  %v420 = vpop.f32.mrb[0].mxu0
  %v421 = vpop.f32.mrb[0].mxu0
  %v422 = vadd.f32 0.0, %v421
  %v423 = vpop.f32.mrb[0].mxu0
  %424 = vmatprep.mubr.bf16.mxu0 0
  %425 = vmatmul.mubr.bf16.gmra.mrb[0].mxu0 %v268
  %v426 = vpop.f32.mrb[0].mxu0
  %v427 = vadd.f32 0.0, %v426
  %v428 = vpop.f32.mrb[0].mxu0
  %v429 = vpop.f32.mrb[0].mxu0
  %v430 = vadd.f32 0.0, %v429
  %v431 = vpop.f32.mrb[0].mxu0
  %432 = vmatprep.mubr.bf16.mxu0 0
  %433 = vmatmul.mubr.bf16.gmra.mrb[0].mxu0 %v271
  %v434 = vpop.f32.mrb[0].mxu0
  %v435 = vadd.f32 0.0, %v434
  %v436 = vpop.f32.mrb[0].mxu0
  %v437 = vpop.f32.mrb[0].mxu0
  %v438 = vadd.f32 0.0, %v437
  %v439 = vpop.f32.mrb[0].mxu0
  %440 = vmatprep.mubr.bf16.mxu0 0
  %441 = vmatmul.mubr.bf16.gmra.mrb[0].mxu0 %v274
  %v442 = vpop.f32.mrb[0].mxu0
  %v443 = vadd.f32 0.0, %v442
  %v444 = vpop.f32.mrb[0].mxu0
  %v445 = vpop.f32.mrb[0].mxu0
  %v446 = vadd.f32 0.0, %v445
  %v447 = vpop.f32.mrb[0].mxu0
  %448 = vmatprep.mubr.bf16.mxu0 0
  %449 = vmatmul.mubr.bf16.gmra.mrb[0].mxu0 %v277
  %v450 = vpop.f32.mrb[0].mxu0
  %v451 = vadd.f32 0.0, %v450
  %v452 = vpop.f32.mrb[0].mxu0
  %v453 = vpop.f32.mrb[0].mxu0
  %v454 = vadd.f32 0.0, %v453
  %v455 = vpop.f32.mrb[0].mxu0
  %456 = vmatprep.mubr.bf16.mxu0 0
  %457 = vmatmul.mubr.bf16.gmra.mrb[0].mxu0 %v280
  %v458 = vpop.f32.mrb[0].mxu0
  %v459 = vadd.f32 0.0, %v458
  %v460 = vpop.f32.mrb[0].mxu0
  %v461 = vpop.f32.mrb[0].mxu0
  %v462 = vadd.f32 0.0, %v461
  %v463 = vpop.f32.mrb[0].mxu0
  %464 = vmatprep.mubr.bf16.mxu0 0
  %465 = vmatmul.mubr.bf16.gmra.mrb[0].mxu0 %v283
  %v466 = vpop.f32.mrb[0].mxu0
  %v467 = vadd.f32 0.0, %v466
  %v468 = vpop.f32.mrb[0].mxu0
  %v469 = vpop.f32.mrb[0].mxu0
  %v470 = vadd.f32 0.0, %v469
  %v471 = vpop.f32.mrb[0].mxu0
  %472 = vmatprep.mubr.bf16.mxu0 0
  %473 = vmatmul.mubr.bf16.gmra.mrb[0].mxu0 %v286
  %v474 = vpop.f32.mrb[0].mxu0
  %v475 = vadd.f32 0.0, %v474
  %v476 = vpop.f32.mrb[0].mxu0
  %v477 = vpop.f32.mrb[0].mxu0
  %v478 = vadd.f32 0.0, %v477
  %v479 = vpop.f32.mrb[0].mxu0
  %480 = vmatprep.mubr.bf16.mxu0 0
  %481 = vmatmul.mubr.bf16.gmra.mrb[0].mxu0 %v289
  %v482 = vpop.f32.mrb[0].mxu0
  %v483 = vadd.f32 0.0, %v482
  %v484 = vpop.f32.mrb[0].mxu0
  %v485 = vpop.f32.mrb[0].mxu0
  %v486 = vadd.f32 0.0, %v485
  %v487 = vpop.f32.mrb[0].mxu0
  %488 = vmatprep.mubr.bf16.mxu0 0
  %489 = vmatmul.mubr.bf16.gmra.mrb[0].mxu0 %v292
  %v490 = vpop.f32.mrb[0].mxu0
  %v491 = vadd.f32 0.0, %v490
  %v492 = vpop.f32.mrb[0].mxu0
  %v493 = vpop.f32.mrb[0].mxu0
  %v494 = vadd.f32 0.0, %v493
  %v495 = vpop.f32.mrb[0].mxu0
  %496 = vmatprep.mubr.bf16.mxu0 0
  %497 = vmatmul.mubr.bf16.gmra.mrb[0].mxu0 %v295
  %v498 = vpop.f32.mrb[0].mxu0
  %v499 = vadd.f32 0.0, %v498
  %v500 = vpop.f32.mrb[0].mxu0
  %v501 = vpop.f32.mrb[0].mxu0
  %v502 = vadd.f32 0.0, %v501
  %v503 = vpop.f32.mrb[0].mxu0
  %504 = vmatprep.mubr.bf16.mxu0 0
  %505 = vmatmul.mubr.bf16.gmra.mrb[0].mxu0 %v298
  %v506 = vpop.f32.mrb[0].mxu0
  %v507 = vadd.f32 0.0, %v506
  %v508 = vpop.f32.mrb[0].mxu0
  %v509 = vpop.f32.mrb[0].mxu0
  %v510 = vadd.f32 0.0, %v509
  %v511 = vpop.f32.mrb[0].mxu0
  %512 = vmatprep.mubr.bf16.mxu0 0
  %513 = vmatmul.mubr.bf16.gmra.mrb[0].mxu0 %v301
  %v514 = vpop.f32.mrb[0].mxu0
  %v515 = vadd.f32 0.0, %v514
  %v516 = vpop.f32.mrb[0].mxu0
  %v517 = vpop.f32.mrb[0].mxu0
  %v518 = vadd.f32 0.0, %v517
  %v519 = vpop.f32.mrb[0].mxu0
  %520 = vmatprep.mubr.bf16.mxu0 0
  %521 = vmatmul.mubr.bf16.gmra.mrb[0].mxu0 %v304
  %v522 = vpop.f32.mrb[0].mxu0
  %v523 = vadd.f32 0.0, %v522
  %v524 = vpop.f32.mrb[0].mxu0
  %v525 = vpop.f32.mrb[0].mxu0
  %v526 = vadd.f32 0.0, %v525
  %v527 = vpop.f32.mrb[0].mxu0
  %528 = vmatprep.mubr.bf16.mxu0 0
  %529 = vmatmul.mubr.bf16.gmra.mrb[0].mxu0 %v307
  %v530 = vpop.f32.mrb[0].mxu0
  %v531 = vadd.f32 0.0, %v530
  %v532 = vpop.f32.mrb[0].mxu0
  %v533 = vpop.f32.mrb[0].mxu0
  %v534 = vadd.f32 0.0, %v533
  %v535 = vpop.f32.mrb[0].mxu0
  %536 = vmatprep.mubr.bf16.mxu0 0
  %537 = vmatmul.mubr.bf16.gmra.mrb[0].mxu0 %v310
  %v538 = vpop.f32.mrb[0].mxu0
  %v539 = vadd.f32 0.0, %v538
  %v540 = vpop.f32.mrb[0].mxu0
  %v541 = vpop.f32.mrb[0].mxu0
  %v542 = vadd.f32 0.0, %v541
  %v543 = vpop.f32.mrb[0].mxu0
  %544 = vmatprep.mubr.bf16.mxu0 0
  %545 = vmatmul.mubr.bf16.gmra.mrb[0].mxu0 %v313
  %v546 = vpop.f32.mrb[0].mxu0
  %v547 = vadd.f32 0.0, %v546
  %v548 = vpop.f32.mrb[0].mxu0
  %v549 = vpop.f32.mrb[0].mxu0
  %v550 = vadd.f32 0.0, %v549
  %v551 = vpop.f32.mrb[0].mxu0
  %552 = vmatprep.mubr.bf16.mxu0 0
  %553 = vmatmul.mubr.bf16.gmra.mrb[0].mxu0 %v316
  %v554 = vpop.f32.mrb[0].mxu0
  %v555 = vadd.f32 0.0, %v554
  %v556 = vpop.f32.mrb[0].mxu0
  %v557 = vpop.f32.mrb[0].mxu0
  %v558 = vadd.f32 0.0, %v557
  %v559 = vpop.f32.mrb[0].mxu0
  %560 = vmatprep.mubr.bf16.mxu0 0
  %561 = vmatmul.mubr.bf16.gmra.mrb[0].mxu0 %v319
  %v562 = vpop.f32.mrb[0].mxu0
  %v563 = vadd.f32 0.0, %v562
  %v564 = vpop.f32.mrb[0].mxu0
  %v565 = vpop.f32.mrb[0].mxu0
  %v566 = vadd.f32 0.0, %v565
  %v567 = vpop.f32.mrb[0].mxu0
  %568 = vmatprep.mubr.bf16.mxu0 0
  %569 = vmatmul.mubr.bf16.gmra.mrb[0].mxu0 %v322
  %v570 = vpop.f32.mrb[0].mxu0
  %v571 = vadd.f32 0.0, %v570
  %v572 = vpop.f32.mrb[0].mxu0
  %v573 = vpop.f32.mrb[0].mxu0
  %v574 = vadd.f32 0.0, %v573
  %v575 = vpop.f32.mrb[0].mxu0
  %576 = vmatprep.mubr.bf16.mxu0 0
  %577 = vmatmul.mubr.bf16.gmra.mrb[0].mxu0 %v325
  %v578 = vpop.f32.mrb[0].mxu0
  %v579 = vadd.f32 0.0, %v578
  %v580 = vpop.f32.mrb[0].mxu0
  %v581 = vpop.f32.mrb[0].mxu0
  %v582 = vadd.f32 0.0, %v581
  %v583 = vpop.f32.mrb[0].mxu0
  %584 = vmatprep.mubr.bf16.mxu0 0
  %585 = vmatmul.mubr.bf16.gmra.mrb[0].mxu0 %v328
  %v586 = vpop.f32.mrb[0].mxu0
  %v587 = vadd.f32 0.0, %v586
  %v588 = vpop.f32.mrb[0].mxu0
  %v589 = vpop.f32.mrb[0].mxu0
  %v590 = vadd.f32 0.0, %v589
  %v591 = vpop.f32.mrb[0].mxu0
  %592 = vmatprep.mubr.bf16.mxu0 0
  %593 = vmatmul.mubr.bf16.gmra.mrb[0].mxu0 %v331
  %v594 = vpop.f32.mrb[0].mxu0
  %v595 = vadd.f32 0.0, %v594
  %v596 = vpop.f32.mrb[0].mxu0
  %v597 = vpop.f32.mrb[0].mxu0
  %v598 = vadd.f32 0.0, %v597
  %v599 = vpop.f32.mrb[0].mxu0
  %600 = vmatprep.mubr.bf16.mxu0 0
  %601 = vmatmul.mubr.bf16.gmra.mrb[0].mxu0 %v334
  %v602 = vpop.f32.mrb[0].mxu0
  %v603 = vadd.f32 0.0, %v602
  %v604 = vpop.f32.mrb[0].mxu0
  %v605 = vpop.f32.mrb[0].mxu0
  %v606 = vadd.f32 0.0, %v605
  %v607 = vpop.f32.mrb[0].mxu0
  %608 = vmatprep.mubr.bf16.mxu0 0
  %609 = vmatmul.mubr.bf16.gmra.mrb[0].mxu0 %v337
  %v610 = vpop.f32.mrb[0].mxu0
  %v611 = vadd.f32 0.0, %v610
  %v612 = vpop.f32.mrb[0].mxu0
  %v613 = vpop.f32.mrb[0].mxu0
  %v614 = vadd.f32 0.0, %v613
  %v615 = vpop.f32.mrb[0].mxu0
  %616 = vmatprep.mubr.bf16.mxu0 0
  %617 = vmatmul.mubr.bf16.gmra.mrb[0].mxu0 %v340
  %v618 = vpop.f32.mrb[0].mxu0
  %v619 = vadd.f32 0.0, %v618
  %v620 = vpop.f32.mrb[0].mxu0
  %v621 = vpop.f32.mrb[0].mxu0
  %v622 = vadd.f32 0.0, %v621
  %v623 = vpop.f32.mrb[0].mxu0
  %624 = vmatprep.mubr.bf16.mxu0 0
  %625 = vmatmul.mubr.bf16.gmra.mrb[0].mxu0 %v343
  %v626 = vpop.f32.mrb[0].mxu0
  %v627 = vadd.f32 0.0, %v626
  %v628 = vpop.f32.mrb[0].mxu0
  %v629 = vpop.f32.mrb[0].mxu0
  %v630 = vadd.f32 0.0, %v629
  %v631 = vpop.f32.mrb[0].mxu0
  %632 = vmatprep.mubr.bf16.mxu0 0
  %633 = vmatmul.mubr.bf16.gmra.mrb[0].mxu0 %v346
  %v634 = vpop.f32.mrb[0].mxu0
  %v635 = vadd.f32 0.0, %v634
  %v636 = vpop.f32.mrb[0].mxu0
  %v637 = vpop.f32.mrb[0].mxu0
  %v638 = vadd.f32 0.0, %v637
  %v639 = vpop.f32.mrb[0].mxu0
  %640 = vdwg.mxu0
  %v641 = vld [vmem:[%s1] sm:$0xf]
  %v642 = vld [vmem:[%s1 + $0x4] sm:$0xf]
  %v643 = vld [vmem:[%s1 + $0x8] sm:$0xf]
  %v644 = vld [vmem:[%s1 + $0xc] sm:$0xf]
  %v645 = vld [vmem:[%s1 + $0x10] sm:$0xf]
  %v646 = vld [vmem:[%s1 + $0x14] sm:$0xf]
  %v647 = vld [vmem:[%s1 + $0x18] sm:$0xf]
  %v648 = vld [vmem:[%s1 + $0x1c] sm:$0xf]
  %v649 = vld [vmem:[%s1 + $0x20] sm:$0xf]
  %v650 = vld [vmem:[%s1 + $0x24] sm:$0xf]
  %v651 = vld [vmem:[%s1 + $0x28] sm:$0xf]
  %v652 = vld [vmem:[%s1 + $0x2c] sm:$0xf]
  %v653 = vld [vmem:[%s1 + $0x30] sm:$0xf]
  %v654 = vld [vmem:[%s1 + $0x34] sm:$0xf]
  %v655 = vld [vmem:[%s1 + $0x38] sm:$0xf]
  %v656 = vld [vmem:[%s1 + $0x3c] sm:$0xf]
  %v657 = vld [vmem:[%s1 + $0x40] sm:$0xf]
  %v658 = vld [vmem:[%s1 + $0x44] sm:$0xf]
  %v659 = vld [vmem:[%s1 + $0x48] sm:$0xf]
  %v660 = vld [vmem:[%s1 + $0x4c] sm:$0xf]
  %v661 = vld [vmem:[%s1 + $0x50] sm:$0xf]
  %v662 = vld [vmem:[%s1 + $0x54] sm:$0xf]
  %v663 = vld [vmem:[%s1 + $0x58] sm:$0xf]
  %v664 = vld [vmem:[%s1 + $0x5c] sm:$0xf]
  %v665 = vld [vmem:[%s1 + $0x60] sm:$0xf]
  %v666 = vld [vmem:[%s1 + $0x64] sm:$0xf]
  %v667 = vld [vmem:[%s1 + $0x68] sm:$0xf]
  %v668 = vld [vmem:[%s1 + $0x6c] sm:$0xf]
  %v669 = vld [vmem:[%s1 + $0x70] sm:$0xf]
  %v670 = vld [vmem:[%s1 + $0x74] sm:$0xf]
  %v671 = vld [vmem:[%s1 + $0x78] sm:$0xf]
  %v672 = vld [vmem:[%s1 + $0x7c] sm:$0xf]
  %v673 = vld [vmem:[%s1 + $0x80] sm:$0xf]
  %v674 = vld [vmem:[%s1 + $0x84] sm:$0xf]
  %v675 = vld [vmem:[%s1 + $0x88] sm:$0xf]
  %v676 = vld [vmem:[%s1 + $0x8c] sm:$0xf]
  %v677 = vld [vmem:[%s1 + $0x90] sm:$0xf]
  %v678 = vld [vmem:[%s1 + $0x94] sm:$0xf]
  %v679 = vld [vmem:[%s1 + $0x98] sm:$0xf]
  %v680 = vld [vmem:[%s1 + $0x9c] sm:$0xf]
  %v681 = vld [vmem:[%s1 + $0xa0] sm:$0xf]
  %v682 = vld [vmem:[%s1 + $0xa4] sm:$0xf]
  %v683 = vld [vmem:[%s1 + $0xa8] sm:$0xf]
  %v684 = vld [vmem:[%s1 + $0xac] sm:$0xf]
  %v685 = vld [vmem:[%s1 + $0xb0] sm:$0xf]
  %v686 = vld [vmem:[%s1 + $0xb4] sm:$0xf]
  %v687 = vld [vmem:[%s1 + $0xb8] sm:$0xf]
  %v688 = vld [vmem:[%s1 + $0xbc] sm:$0xf]
  %v689 = vld [vmem:[%s1 + $0xc0] sm:$0xf]
  %v690 = vld [vmem:[%s1 + $0xc4] sm:$0xf]
  %v691 = vld [vmem:[%s1 + $0xc8] sm:$0xf]
  %v692 = vld [vmem:[%s1 + $0xcc] sm:$0xf]
  %v693 = vld [vmem:[%s1 + $0xd0] sm:$0xf]
  %v694 = vld [vmem:[%s1 + $0xd4] sm:$0xf]
  %v695 = vld [vmem:[%s1 + $0xd8] sm:$0xf]
  %v696 = vld [vmem:[%s1 + $0xdc] sm:$0xf]
  %v697 = vld [vmem:[%s1 + $0xe0] sm:$0xf]
  %v698 = vld [vmem:[%s1 + $0xe4] sm:$0xf]
  %v699 = vld [vmem:[%s1 + $0xe8] sm:$0xf]
  %v700 = vld [vmem:[%s1 + $0xec] sm:$0xf]
  %v701 = vld [vmem:[%s1 + $0xf0] sm:$0xf]
  %v702 = vld [vmem:[%s1 + $0xf4] sm:$0xf]
  %v703 = vld [vmem:[%s1 + $0xf8] sm:$0xf]
  %v704 = vld [vmem:[%s1 + $0xfc] sm:$0xf]
  %v705 = vld [vmem:[%s3] sm:$0xf]
  %v770 = vunpack.c.l.b16 %v641
  %v771 = vunpack.c.l.b16 %v642
  %v772 = vunpack.c.l.b16 %v643
  %v773 = vunpack.c.l.b16 %v644
  %v774 = vunpack.c.l.b16 %v645
  %v775 = vunpack.c.l.b16 %v646
  %v776 = vunpack.c.l.b16 %v647
  %v777 = vunpack.c.l.b16 %v648
  %v778 = vunpack.c.l.b16 %v649
  %v779 = vunpack.c.l.b16 %v650
  %v780 = vunpack.c.l.b16 %v651
  %v781 = vunpack.c.l.b16 %v652
  %v782 = vunpack.c.l.b16 %v653
  %v783 = vunpack.c.l.b16 %v654
  %v784 = vunpack.c.l.b16 %v655
  %v785 = vunpack.c.l.b16 %v656
  %v786 = vunpack.c.l.b16 %v657
  %v787 = vunpack.c.l.b16 %v658
  %v788 = vunpack.c.l.b16 %v659
  %v789 = vunpack.c.l.b16 %v660
  %v790 = vunpack.c.l.b16 %v661
  %v791 = vunpack.c.l.b16 %v662
  %v792 = vunpack.c.l.b16 %v663
  %v793 = vunpack.c.l.b16 %v664
  %v794 = vunpack.c.l.b16 %v665
  %v795 = vunpack.c.l.b16 %v666
  %v796 = vunpack.c.l.b16 %v667
  %v797 = vunpack.c.l.b16 %v668
  %v798 = vunpack.c.l.b16 %v669
  %v799 = vunpack.c.l.b16 %v670
  %v800 = vunpack.c.l.b16 %v671
  %v801 = vunpack.c.l.b16 %v672
  %v802 = vunpack.c.l.b16 %v673
  %v803 = vunpack.c.l.b16 %v674
  %v804 = vunpack.c.l.b16 %v675
  %v805 = vunpack.c.l.b16 %v676
  %v806 = vunpack.c.l.b16 %v677
  %v807 = vunpack.c.l.b16 %v678
  %v808 = vunpack.c.l.b16 %v679
  %v809 = vunpack.c.l.b16 %v680
  %v810 = vunpack.c.l.b16 %v681
  %v811 = vunpack.c.l.b16 %v682
  %v812 = vunpack.c.l.b16 %v683
  %v813 = vunpack.c.l.b16 %v684
  %v814 = vunpack.c.l.b16 %v685
  %v815 = vunpack.c.l.b16 %v686
  %v816 = vunpack.c.l.b16 %v687
  %v817 = vunpack.c.l.b16 %v688
  %v818 = vunpack.c.l.b16 %v689
  %v819 = vunpack.c.l.b16 %v690
  %v820 = vunpack.c.l.b16 %v691
  %v821 = vunpack.c.l.b16 %v692
  %v822 = vunpack.c.l.b16 %v693
  %v823 = vunpack.c.l.b16 %v694
  %v824 = vunpack.c.l.b16 %v695
  %v825 = vunpack.c.l.b16 %v696
  %v826 = vunpack.c.l.b16 %v697
  %v827 = vunpack.c.l.b16 %v698
  %v828 = vunpack.c.l.b16 %v699
  %v829 = vunpack.c.l.b16 %v700
  %v830 = vunpack.c.l.b16 %v701
  %v831 = vunpack.c.l.b16 %v702
  %v832 = vunpack.c.l.b16 %v703
  %v833 = vunpack.c.l.b16 %v704
  %v834 = vpack.c.b16 %v771, %v770
  %v835 = vpack.c.b16 %v773, %v772
  %v836 = vpack.c.b16 %v775, %v774
  %v837 = vpack.c.b16 %v777, %v776
  %v838 = vpack.c.b16 %v779, %v778
  %v839 = vpack.c.b16 %v781, %v780
  %v840 = vpack.c.b16 %v783, %v782
  %v841 = vpack.c.b16 %v785, %v784
  %v842 = vpack.c.b16 %v787, %v786
  %v843 = vpack.c.b16 %v789, %v788
  %v844 = vpack.c.b16 %v791, %v790
  %v845 = vpack.c.b16 %v793, %v792
  %v846 = vpack.c.b16 %v795, %v794
  %v847 = vpack.c.b16 %v797, %v796
  %v848 = vpack.c.b16 %v799, %v798
  %v849 = vpack.c.b16 %v801, %v800
  %v850 = vpack.c.b16 %v803, %v802
  %v851 = vpack.c.b16 %v805, %v804
  %v852 = vpack.c.b16 %v807, %v806
  %v853 = vpack.c.b16 %v809, %v808
  %v854 = vpack.c.b16 %v811, %v810
  %v855 = vpack.c.b16 %v813, %v812
  %v856 = vpack.c.b16 %v815, %v814
  %v857 = vpack.c.b16 %v817, %v816
  %v858 = vpack.c.b16 %v819, %v818
  %v859 = vpack.c.b16 %v821, %v820
  %v860 = vpack.c.b16 %v823, %v822
  %v861 = vpack.c.b16 %v825, %v824
  %v862 = vpack.c.b16 %v827, %v826
  %v863 = vpack.c.b16 %v829, %v828
  %v864 = vpack.c.b16 %v831, %v830
  %v865 = vpack.c.b16 %v833, %v832
  %v867 = vsel %vm251, %v834, 0
  %v870 = vsel %vm251, %v835, 0
  %v873 = vsel %vm251, %v836, 0
  %v876 = vsel %vm251, %v837, 0
  %v879 = vsel %vm251, %v838, 0
  %v882 = vsel %vm251, %v839, 0
  %v885 = vsel %vm251, %v840, 0
  %v888 = vsel %vm251, %v841, 0
  %v891 = vsel %vm251, %v842, 0
  %v894 = vsel %vm251, %v843, 0
  %v897 = vsel %vm251, %v844, 0
  %v900 = vsel %vm251, %v845, 0
  %v903 = vsel %vm251, %v846, 0
  %v906 = vsel %vm251, %v847, 0
  %v909 = vsel %vm251, %v848, 0
  %v912 = vsel %vm251, %v849, 0
  %v915 = vsel %vm251, %v850, 0
  %v918 = vsel %vm251, %v851, 0
  %v921 = vsel %vm251, %v852, 0
  %v924 = vsel %vm251, %v853, 0
  %v927 = vsel %vm251, %v854, 0
  %v930 = vsel %vm251, %v855, 0
  %v933 = vsel %vm251, %v856, 0
  %v936 = vsel %vm251, %v857, 0
  %v939 = vsel %vm251, %v858, 0
  %v942 = vsel %vm251, %v859, 0
  %v945 = vsel %vm251, %v860, 0
  %v948 = vsel %vm251, %v861, 0
  %v951 = vsel %vm251, %v862, 0
  %v954 = vsel %vm251, %v863, 0
  %v957 = vsel %vm251, %v864, 0
  %v960 = vsel %vm251, %v865, 0
  %v963 = vsel %vm348, %v705, 0
  %965 = vmatprep.subr.bf16.mxu0 0
  %966 = vmatpush1.bf16.msra.mxu0 %v963
  %967 = vmatprep.subr.bf16.mxu0 0
  %968 = vmatpush1.bf16.msra.mxu0 0
  %969 = vmatprep.subr.bf16.mxu0 0
  %970 = vmatpush1.bf16.msra.mxu0 0
  %971 = vmatprep.subr.bf16.mxu0 0
  %972 = vmatpush1.bf16.msra.mxu0 0
  %973 = vmatprep.subr.bf16.mxu0 0
  %974 = vmatpush1.bf16.msra.mxu0 0
  %975 = vmatprep.subr.bf16.mxu0 0
  %976 = vmatpush1.bf16.msra.mxu0 0
  %977 = vmatprep.subr.bf16.mxu0 0
  %978 = vmatpush1.bf16.msra.mxu0 0
  %979 = vmatprep.subr.bf16.mxu0 0
  %980 = vmatpush1.bf16.msra.mxu0 0
  %981 = vmatprep.subr.bf16.mxu0 0
  %982 = vmatpush1.bf16.msra.mxu0 0
  %983 = vmatprep.subr.bf16.mxu0 0
  %984 = vmatpush1.bf16.msra.mxu0 0
  %985 = vmatprep.subr.bf16.mxu0 0
  %986 = vmatpush1.bf16.msra.mxu0 0
  %987 = vmatprep.subr.bf16.mxu0 0
  %988 = vmatpush1.bf16.msra.mxu0 0
  %989 = vmatprep.subr.bf16.mxu0 0
  %990 = vmatpush1.bf16.msra.mxu0 0
  %991 = vmatprep.subr.bf16.mxu0 0
  %992 = vmatpush1.bf16.msra.mxu0 0
  %993 = vmatprep.subr.bf16.mxu0 0
  %994 = vmatpush1.bf16.msra.mxu0 0
  %995 = vmatprep.subr.bf16.mxu0 0
  %996 = vmatpush1.bf16.msra.mxu0 0
  %997 = vmatprep.mubr.bf16.mxu0 0
  %998 = vmatmul.mubr.bf16.gmra.mrb[0].mxu0 %v867
  %v999 = vpop.f32.mrb[0].mxu0
  %v1000 = vadd.f32 0.0, %v999
  %v1001 = vpop.f32.mrb[0].mxu0
  %v1002 = vpop.f32.mrb[0].mxu0
  %v1003 = vadd.f32 0.0, %v1002
  %v1004 = vpop.f32.mrb[0].mxu0
  %1005 = vmatprep.mubr.bf16.mxu0 0
  %1006 = vmatmul.mubr.bf16.gmra.mrb[0].mxu0 %v870
  %v1007 = vpop.f32.mrb[0].mxu0
  %v1008 = vadd.f32 0.0, %v1007
  %v1009 = vpop.f32.mrb[0].mxu0
  %v1010 = vpop.f32.mrb[0].mxu0
  %v1011 = vadd.f32 0.0, %v1010
  %v1012 = vpop.f32.mrb[0].mxu0
  %1013 = vmatprep.mubr.bf16.mxu0 0
  %1014 = vmatmul.mubr.bf16.gmra.mrb[0].mxu0 %v873
  %v1015 = vpop.f32.mrb[0].mxu0
  %v1016 = vadd.f32 0.0, %v1015
  %v1017 = vpop.f32.mrb[0].mxu0
  %v1018 = vpop.f32.mrb[0].mxu0
  %v1019 = vadd.f32 0.0, %v1018
  %v1020 = vpop.f32.mrb[0].mxu0
  %1021 = vmatprep.mubr.bf16.mxu0 0
  %1022 = vmatmul.mubr.bf16.gmra.mrb[0].mxu0 %v876
  %v1023 = vpop.f32.mrb[0].mxu0
  %v1024 = vadd.f32 0.0, %v1023
  %v1025 = vpop.f32.mrb[0].mxu0
  %v1026 = vpop.f32.mrb[0].mxu0
  %v1027 = vadd.f32 0.0, %v1026
  %v1028 = vpop.f32.mrb[0].mxu0
  %1029 = vmatprep.mubr.bf16.mxu0 0
  %1030 = vmatmul.mubr.bf16.gmra.mrb[0].mxu0 %v879
  %v1031 = vpop.f32.mrb[0].mxu0
  %v1032 = vadd.f32 0.0, %v1031
  %v1033 = vpop.f32.mrb[0].mxu0
  %v1034 = vpop.f32.mrb[0].mxu0
  %v1035 = vadd.f32 0.0, %v1034
  %v1036 = vpop.f32.mrb[0].mxu0
  %1037 = vmatprep.mubr.bf16.mxu0 0
  %1038 = vmatmul.mubr.bf16.gmra.mrb[0].mxu0 %v882
  %v1039 = vpop.f32.mrb[0].mxu0
  %v1040 = vadd.f32 0.0, %v1039
  %v1041 = vpop.f32.mrb[0].mxu0
  %v1042 = vpop.f32.mrb[0].mxu0
  %v1043 = vadd.f32 0.0, %v1042
  %v1044 = vpop.f32.mrb[0].mxu0
  %1045 = vmatprep.mubr.bf16.mxu0 0
  %1046 = vmatmul.mubr.bf16.gmra.mrb[0].mxu0 %v885
  %v1047 = vpop.f32.mrb[0].mxu0
  %v1048 = vadd.f32 0.0, %v1047
  %v1049 = vpop.f32.mrb[0].mxu0
  %v1050 = vpop.f32.mrb[0].mxu0
  %v1051 = vadd.f32 0.0, %v1050
  %v1052 = vpop.f32.mrb[0].mxu0
  %1053 = vmatprep.mubr.bf16.mxu0 0
  %1054 = vmatmul.mubr.bf16.gmra.mrb[0].mxu0 %v888
  %v1055 = vpop.f32.mrb[0].mxu0
  %v1056 = vadd.f32 0.0, %v1055
  %v1057 = vpop.f32.mrb[0].mxu0
  %v1058 = vpop.f32.mrb[0].mxu0
  %v1059 = vadd.f32 0.0, %v1058
  %v1060 = vpop.f32.mrb[0].mxu0
  %1061 = vmatprep.mubr.bf16.mxu0 0
  %1062 = vmatmul.mubr.bf16.gmra.mrb[0].mxu0 %v891
  %v1063 = vpop.f32.mrb[0].mxu0
  %v1064 = vadd.f32 0.0, %v1063
  %v1065 = vpop.f32.mrb[0].mxu0
  %v1066 = vpop.f32.mrb[0].mxu0
  %v1067 = vadd.f32 0.0, %v1066
  %v1068 = vpop.f32.mrb[0].mxu0
  %1069 = vmatprep.mubr.bf16.mxu0 0
  %1070 = vmatmul.mubr.bf16.gmra.mrb[0].mxu0 %v894
  %v1071 = vpop.f32.mrb[0].mxu0
  %v1072 = vadd.f32 0.0, %v1071
  %v1073 = vpop.f32.mrb[0].mxu0
  %v1074 = vpop.f32.mrb[0].mxu0
  %v1075 = vadd.f32 0.0, %v1074
  %v1076 = vpop.f32.mrb[0].mxu0
  %1077 = vmatprep.mubr.bf16.mxu0 0
  %1078 = vmatmul.mubr.bf16.gmra.mrb[0].mxu0 %v897
  %v1079 = vpop.f32.mrb[0].mxu0
  %v1080 = vadd.f32 0.0, %v1079
  %v1081 = vpop.f32.mrb[0].mxu0
  %v1082 = vpop.f32.mrb[0].mxu0
  %v1083 = vadd.f32 0.0, %v1082
  %v1084 = vpop.f32.mrb[0].mxu0
  %1085 = vmatprep.mubr.bf16.mxu0 0
  %1086 = vmatmul.mubr.bf16.gmra.mrb[0].mxu0 %v900
  %v1087 = vpop.f32.mrb[0].mxu0
  %v1088 = vadd.f32 0.0, %v1087
  %v1089 = vpop.f32.mrb[0].mxu0
  %v1090 = vpop.f32.mrb[0].mxu0
  %v1091 = vadd.f32 0.0, %v1090
  %v1092 = vpop.f32.mrb[0].mxu0
  %1093 = vmatprep.mubr.bf16.mxu0 0
  %1094 = vmatmul.mubr.bf16.gmra.mrb[0].mxu0 %v903
  %v1095 = vpop.f32.mrb[0].mxu0
  %v1096 = vadd.f32 0.0, %v1095
  %v1097 = vpop.f32.mrb[0].mxu0
  %v1098 = vpop.f32.mrb[0].mxu0
  %v1099 = vadd.f32 0.0, %v1098
  %v1100 = vpop.f32.mrb[0].mxu0
  %1101 = vmatprep.mubr.bf16.mxu0 0
  %1102 = vmatmul.mubr.bf16.gmra.mrb[0].mxu0 %v906
  %v1103 = vpop.f32.mrb[0].mxu0
  %v1104 = vadd.f32 0.0, %v1103
  %v1105 = vpop.f32.mrb[0].mxu0
  %v1106 = vpop.f32.mrb[0].mxu0
  %v1107 = vadd.f32 0.0, %v1106
  %v1108 = vpop.f32.mrb[0].mxu0
  %1109 = vmatprep.mubr.bf16.mxu0 0
  %1110 = vmatmul.mubr.bf16.gmra.mrb[0].mxu0 %v909
  %v1111 = vpop.f32.mrb[0].mxu0
  %v1112 = vadd.f32 0.0, %v1111
  %v1113 = vpop.f32.mrb[0].mxu0
  %v1114 = vpop.f32.mrb[0].mxu0
  %v1115 = vadd.f32 0.0, %v1114
  %v1116 = vpop.f32.mrb[0].mxu0
  %1117 = vmatprep.mubr.bf16.mxu0 0
  %1118 = vmatmul.mubr.bf16.gmra.mrb[0].mxu0 %v912
  %v1119 = vpop.f32.mrb[0].mxu0
  %v1120 = vadd.f32 0.0, %v1119
  %v1121 = vpop.f32.mrb[0].mxu0
  %v1122 = vpop.f32.mrb[0].mxu0
  %v1123 = vadd.f32 0.0, %v1122
  %v1124 = vpop.f32.mrb[0].mxu0
  %1125 = vmatprep.mubr.bf16.mxu0 0
  %1126 = vmatmul.mubr.bf16.gmra.mrb[0].mxu0 %v915
  %v1127 = vpop.f32.mrb[0].mxu0
  %v1128 = vadd.f32 0.0, %v1127
  %v1129 = vpop.f32.mrb[0].mxu0
  %v1130 = vpop.f32.mrb[0].mxu0
  %v1131 = vadd.f32 0.0, %v1130
  %v1132 = vpop.f32.mrb[0].mxu0
  %1133 = vmatprep.mubr.bf16.mxu0 0
  %1134 = vmatmul.mubr.bf16.gmra.mrb[0].mxu0 %v918
  %v1135 = vpop.f32.mrb[0].mxu0
  %v1136 = vadd.f32 0.0, %v1135
  %v1137 = vpop.f32.mrb[0].mxu0
  %v1138 = vpop.f32.mrb[0].mxu0
  %v1139 = vadd.f32 0.0, %v1138
  %v1140 = vpop.f32.mrb[0].mxu0
  %1141 = vmatprep.mubr.bf16.mxu0 0
  %1142 = vmatmul.mubr.bf16.gmra.mrb[0].mxu0 %v921
  %v1143 = vpop.f32.mrb[0].mxu0
  %v1144 = vadd.f32 0.0, %v1143
  %v1145 = vpop.f32.mrb[0].mxu0
  %v1146 = vpop.f32.mrb[0].mxu0
  %v1147 = vadd.f32 0.0, %v1146
  %v1148 = vpop.f32.mrb[0].mxu0
  %1149 = vmatprep.mubr.bf16.mxu0 0
  %1150 = vmatmul.mubr.bf16.gmra.mrb[0].mxu0 %v924
  %v1151 = vpop.f32.mrb[0].mxu0
  %v1152 = vadd.f32 0.0, %v1151
  %v1153 = vpop.f32.mrb[0].mxu0
  %v1154 = vpop.f32.mrb[0].mxu0
  %v1155 = vadd.f32 0.0, %v1154
  %v1156 = vpop.f32.mrb[0].mxu0
  %1157 = vmatprep.mubr.bf16.mxu0 0
  %1158 = vmatmul.mubr.bf16.gmra.mrb[0].mxu0 %v927
  %v1159 = vpop.f32.mrb[0].mxu0
  %v1160 = vadd.f32 0.0, %v1159
  %v1161 = vpop.f32.mrb[0].mxu0
  %v1162 = vpop.f32.mrb[0].mxu0
  %v1163 = vadd.f32 0.0, %v1162
  %v1164 = vpop.f32.mrb[0].mxu0
  %1165 = vmatprep.mubr.bf16.mxu0 0
  %1166 = vmatmul.mubr.bf16.gmra.mrb[0].mxu0 %v930
  %v1167 = vpop.f32.mrb[0].mxu0
  %v1168 = vadd.f32 0.0, %v1167
  %v1169 = vpop.f32.mrb[0].mxu0
  %v1170 = vpop.f32.mrb[0].mxu0
  %v1171 = vadd.f32 0.0, %v1170
  %v1172 = vpop.f32.mrb[0].mxu0
  %1173 = vmatprep.mubr.bf16.mxu0 0
  %1174 = vmatmul.mubr.bf16.gmra.mrb[0].mxu0 %v933
  %v1175 = vpop.f32.mrb[0].mxu0
  %v1176 = vadd.f32 0.0, %v1175
  %v1177 = vpop.f32.mrb[0].mxu0
  %v1178 = vpop.f32.mrb[0].mxu0
  %v1179 = vadd.f32 0.0, %v1178
  %v1180 = vpop.f32.mrb[0].mxu0
  %1181 = vmatprep.mubr.bf16.mxu0 0
  %1182 = vmatmul.mubr.bf16.gmra.mrb[0].mxu0 %v936
  %v1183 = vpop.f32.mrb[0].mxu0
  %v1184 = vadd.f32 0.0, %v1183
  %v1185 = vpop.f32.mrb[0].mxu0
  %v1186 = vpop.f32.mrb[0].mxu0
  %v1187 = vadd.f32 0.0, %v1186
  %v1188 = vpop.f32.mrb[0].mxu0
  %1189 = vmatprep.mubr.bf16.mxu0 0
  %1190 = vmatmul.mubr.bf16.gmra.mrb[0].mxu0 %v939
  %v1191 = vpop.f32.mrb[0].mxu0
  %v1192 = vadd.f32 0.0, %v1191
  %v1193 = vpop.f32.mrb[0].mxu0
  %v1194 = vpop.f32.mrb[0].mxu0
  %v1195 = vadd.f32 0.0, %v1194
  %v1196 = vpop.f32.mrb[0].mxu0
  %1197 = vmatprep.mubr.bf16.mxu0 0
  %1198 = vmatmul.mubr.bf16.gmra.mrb[0].mxu0 %v942
  %v1199 = vpop.f32.mrb[0].mxu0
  %v1200 = vadd.f32 0.0, %v1199
  %v1201 = vpop.f32.mrb[0].mxu0
  %v1202 = vpop.f32.mrb[0].mxu0
  %v1203 = vadd.f32 0.0, %v1202
  %v1204 = vpop.f32.mrb[0].mxu0
  %1205 = vmatprep.mubr.bf16.mxu0 0
  %1206 = vmatmul.mubr.bf16.gmra.mrb[0].mxu0 %v945
  %v1207 = vpop.f32.mrb[0].mxu0
  %v1208 = vadd.f32 0.0, %v1207
  %v1209 = vpop.f32.mrb[0].mxu0
  %v1210 = vpop.f32.mrb[0].mxu0
  %v1211 = vadd.f32 0.0, %v1210
  %v1212 = vpop.f32.mrb[0].mxu0
  %1213 = vmatprep.mubr.bf16.mxu0 0
  %1214 = vmatmul.mubr.bf16.gmra.mrb[0].mxu0 %v948
  %v1215 = vpop.f32.mrb[0].mxu0
  %v1216 = vadd.f32 0.0, %v1215
  %v1217 = vpop.f32.mrb[0].mxu0
  %v1218 = vpop.f32.mrb[0].mxu0
  %v1219 = vadd.f32 0.0, %v1218
  %v1220 = vpop.f32.mrb[0].mxu0
  %1221 = vmatprep.mubr.bf16.mxu0 0
  %1222 = vmatmul.mubr.bf16.gmra.mrb[0].mxu0 %v951
  %v1223 = vpop.f32.mrb[0].mxu0
  %v1224 = vadd.f32 0.0, %v1223
  %v1225 = vpop.f32.mrb[0].mxu0
  %v1226 = vpop.f32.mrb[0].mxu0
  %v1227 = vadd.f32 0.0, %v1226
  %v1228 = vpop.f32.mrb[0].mxu0
  %1229 = vmatprep.mubr.bf16.mxu0 0
  %1230 = vmatmul.mubr.bf16.gmra.mrb[0].mxu0 %v954
  %v1231 = vpop.f32.mrb[0].mxu0
  %v1232 = vadd.f32 0.0, %v1231
  %v1233 = vpop.f32.mrb[0].mxu0
  %v1234 = vpop.f32.mrb[0].mxu0
  %v1235 = vadd.f32 0.0, %v1234
  %v1236 = vpop.f32.mrb[0].mxu0
  %1237 = vmatprep.mubr.bf16.mxu0 0
  %1238 = vmatmul.mubr.bf16.gmra.mrb[0].mxu0 %v957
  %v1239 = vpop.f32.mrb[0].mxu0
  %v1240 = vadd.f32 0.0, %v1239
  %v1241 = vpop.f32.mrb[0].mxu0
  %v1242 = vpop.f32.mrb[0].mxu0
  %v1243 = vadd.f32 0.0, %v1242
  %v1244 = vpop.f32.mrb[0].mxu0
  %1245 = vmatprep.mubr.bf16.mxu0 0
  %1246 = vmatmul.mubr.bf16.gmra.mrb[0].mxu0 %v960
  %v1247 = vpop.f32.mrb[0].mxu0
  %v1248 = vadd.f32 0.0, %v1247
  %v1249 = vpop.f32.mrb[0].mxu0
  %v1250 = vpop.f32.mrb[0].mxu0
  %v1251 = vadd.f32 0.0, %v1250
  %v1252 = vpop.f32.mrb[0].mxu0
  %1253 = vdwg.mxu0
  %v1254 = vld [vmem:[%s4] sm:$0xf]
  %v1255 = vlaneseq
  %v1256 = vshrl.u32 %v1255, 7
  %v1257 = vsub.s32 0, %v1256
  %v1258 = vrot.slane %v1254, %v1257
  %v1259 = vmul.f32 %v387, %v1258
  %v1260 = vmul.f32 %v390, %v1258
  %v1261 = vmul.f32 %v395, %v1258
  %v1262 = vmul.f32 %v398, %v1258
  %v1263 = vmul.f32 %v403, %v1258
  %v1264 = vmul.f32 %v406, %v1258
  %v1265 = vmul.f32 %v411, %v1258
  %v1266 = vmul.f32 %v414, %v1258
  %v1267 = vmul.f32 %v419, %v1258
  %v1268 = vmul.f32 %v422, %v1258
  %v1269 = vmul.f32 %v427, %v1258
  %v1270 = vmul.f32 %v430, %v1258
  %v1271 = vmul.f32 %v435, %v1258
  %v1272 = vmul.f32 %v438, %v1258
  %v1273 = vmul.f32 %v443, %v1258
  %v1274 = vmul.f32 %v446, %v1258
  %v1275 = vmul.f32 %v451, %v1258
  %v1276 = vmul.f32 %v454, %v1258
  %v1277 = vmul.f32 %v459, %v1258
  %v1278 = vmul.f32 %v462, %v1258
  %v1279 = vmul.f32 %v467, %v1258
  %v1280 = vmul.f32 %v470, %v1258
  %v1281 = vmul.f32 %v475, %v1258
  %v1282 = vmul.f32 %v478, %v1258
  %v1283 = vmul.f32 %v483, %v1258
  %v1284 = vmul.f32 %v486, %v1258
  %v1285 = vmul.f32 %v491, %v1258
  %v1286 = vmul.f32 %v494, %v1258
  %v1287 = vmul.f32 %v499, %v1258
  %v1288 = vmul.f32 %v502, %v1258
  %v1289 = vmul.f32 %v507, %v1258
  %v1290 = vmul.f32 %v510, %v1258
  %v1291 = vmul.f32 %v515, %v1258
  %v1292 = vmul.f32 %v518, %v1258
  %v1293 = vmul.f32 %v523, %v1258
  %v1294 = vmul.f32 %v526, %v1258
  %v1295 = vmul.f32 %v531, %v1258
  %v1296 = vmul.f32 %v534, %v1258
  %v1297 = vmul.f32 %v539, %v1258
  %v1298 = vmul.f32 %v542, %v1258
  %v1299 = vmul.f32 %v547, %v1258
  %v1300 = vmul.f32 %v550, %v1258
  %v1301 = vmul.f32 %v555, %v1258
  %v1302 = vmul.f32 %v558, %v1258
  %v1303 = vmul.f32 %v563, %v1258
  %v1304 = vmul.f32 %v566, %v1258
  %v1305 = vmul.f32 %v571, %v1258
  %v1306 = vmul.f32 %v574, %v1258
  %v1307 = vmul.f32 %v579, %v1258
  %v1308 = vmul.f32 %v582, %v1258
  %v1309 = vmul.f32 %v587, %v1258
  %v1310 = vmul.f32 %v590, %v1258
  %v1311 = vmul.f32 %v595, %v1258
  %v1312 = vmul.f32 %v598, %v1258
  %v1313 = vmul.f32 %v603, %v1258
  %v1314 = vmul.f32 %v606, %v1258
  %v1315 = vmul.f32 %v611, %v1258
  %v1316 = vmul.f32 %v614, %v1258
  %v1317 = vmul.f32 %v619, %v1258
  %v1318 = vmul.f32 %v622, %v1258
  %v1319 = vmul.f32 %v627, %v1258
  %v1320 = vmul.f32 %v630, %v1258
  %v1321 = vmul.f32 %v635, %v1258
  %v1322 = vmul.f32 %v638, %v1258
  %v1323 = vlaneseq
  %v1324 = vshrl.u32 %v1323, 7
  %v1325 = vsub.s32 1, %v1324
  %v1326 = vrot.slane %v1254, %v1325
  %v1327 = vadd.f32 %v1259, %v1326
  %v1328 = vadd.f32 %v1260, %v1326
  %v1329 = vadd.f32 %v1261, %v1326
  %v1330 = vadd.f32 %v1262, %v1326
  %v1331 = vadd.f32 %v1263, %v1326
  %v1332 = vadd.f32 %v1264, %v1326
  %v1333 = vadd.f32 %v1265, %v1326
  %v1334 = vadd.f32 %v1266, %v1326
  %v1335 = vadd.f32 %v1267, %v1326
  %v1336 = vadd.f32 %v1268, %v1326
  %v1337 = vadd.f32 %v1269, %v1326
  %v1338 = vadd.f32 %v1270, %v1326
  %v1339 = vadd.f32 %v1271, %v1326
  %v1340 = vadd.f32 %v1272, %v1326
  %v1341 = vadd.f32 %v1273, %v1326
  %v1342 = vadd.f32 %v1274, %v1326
  %v1343 = vadd.f32 %v1275, %v1326
  %v1344 = vadd.f32 %v1276, %v1326
  %v1345 = vadd.f32 %v1277, %v1326
  %v1346 = vadd.f32 %v1278, %v1326
  %v1347 = vadd.f32 %v1279, %v1326
  %v1348 = vadd.f32 %v1280, %v1326
  %v1349 = vadd.f32 %v1281, %v1326
  %v1350 = vadd.f32 %v1282, %v1326
  %v1351 = vadd.f32 %v1283, %v1326
  %v1352 = vadd.f32 %v1284, %v1326
  %v1353 = vadd.f32 %v1285, %v1326
  %v1354 = vadd.f32 %v1286, %v1326
  %v1355 = vadd.f32 %v1287, %v1326
  %v1356 = vadd.f32 %v1288, %v1326
  %v1357 = vadd.f32 %v1289, %v1326
  %v1358 = vadd.f32 %v1290, %v1326
  %v1359 = vadd.f32 %v1291, %v1326
  %v1360 = vadd.f32 %v1292, %v1326
  %v1361 = vadd.f32 %v1293, %v1326
  %v1362 = vadd.f32 %v1294, %v1326
  %v1363 = vadd.f32 %v1295, %v1326
  %v1364 = vadd.f32 %v1296, %v1326
  %v1365 = vadd.f32 %v1297, %v1326
  %v1366 = vadd.f32 %v1298, %v1326
  %v1367 = vadd.f32 %v1299, %v1326
  %v1368 = vadd.f32 %v1300, %v1326
  %v1369 = vadd.f32 %v1301, %v1326
  %v1370 = vadd.f32 %v1302, %v1326
  %v1371 = vadd.f32 %v1303, %v1326
  %v1372 = vadd.f32 %v1304, %v1326
  %v1373 = vadd.f32 %v1305, %v1326
  %v1374 = vadd.f32 %v1306, %v1326
  %v1375 = vadd.f32 %v1307, %v1326
  %v1376 = vadd.f32 %v1308, %v1326
  %v1377 = vadd.f32 %v1309, %v1326
  %v1378 = vadd.f32 %v1310, %v1326
  %v1379 = vadd.f32 %v1311, %v1326
  %v1380 = vadd.f32 %v1312, %v1326
  %v1381 = vadd.f32 %v1313, %v1326
  %v1382 = vadd.f32 %v1314, %v1326
  %v1383 = vadd.f32 %v1315, %v1326
  %v1384 = vadd.f32 %v1316, %v1326
  %v1385 = vadd.f32 %v1317, %v1326
  %v1386 = vadd.f32 %v1318, %v1326
  %v1387 = vadd.f32 %v1319, %v1326
  %v1388 = vadd.f32 %v1320, %v1326
  %v1389 = vadd.f32 %v1321, %v1326
  %v1390 = vadd.f32 %v1322, %v1326
  %v1391 = vlaneseq
  %v1392 = vshrl.u32 %v1391, 7
  %v1393 = vsub.s32 2, %v1392
  %v1394 = vrot.slane %v1254, %v1393
  %v1395 = vmul.f32 %v1000, %v1394
  %v1396 = vmul.f32 %v1003, %v1394
  %v1397 = vmul.f32 %v1008, %v1394
  %v1398 = vmul.f32 %v1011, %v1394
  %v1399 = vmul.f32 %v1016, %v1394
  %v1400 = vmul.f32 %v1019, %v1394
  %v1401 = vmul.f32 %v1024, %v1394
  %v1402 = vmul.f32 %v1027, %v1394
  %v1403 = vmul.f32 %v1032, %v1394
  %v1404 = vmul.f32 %v1035, %v1394
  %v1405 = vmul.f32 %v1040, %v1394
  %v1406 = vmul.f32 %v1043, %v1394
  %v1407 = vmul.f32 %v1048, %v1394
  %v1408 = vmul.f32 %v1051, %v1394
  %v1409 = vmul.f32 %v1056, %v1394
  %v1410 = vmul.f32 %v1059, %v1394
  %v1411 = vmul.f32 %v1064, %v1394
  %v1412 = vmul.f32 %v1067, %v1394
  %v1413 = vmul.f32 %v1072, %v1394
  %v1414 = vmul.f32 %v1075, %v1394
  %v1415 = vmul.f32 %v1080, %v1394
  %v1416 = vmul.f32 %v1083, %v1394
  %v1417 = vmul.f32 %v1088, %v1394
  %v1418 = vmul.f32 %v1091, %v1394
  %v1419 = vmul.f32 %v1096, %v1394
  %v1420 = vmul.f32 %v1099, %v1394
  %v1421 = vmul.f32 %v1104, %v1394
  %v1422 = vmul.f32 %v1107, %v1394
  %v1423 = vmul.f32 %v1112, %v1394
  %v1424 = vmul.f32 %v1115, %v1394
  %v1425 = vmul.f32 %v1120, %v1394
  %v1426 = vmul.f32 %v1123, %v1394
  %v1427 = vmul.f32 %v1128, %v1394
  %v1428 = vmul.f32 %v1131, %v1394
  %v1429 = vmul.f32 %v1136, %v1394
  %v1430 = vmul.f32 %v1139, %v1394
  %v1431 = vmul.f32 %v1144, %v1394
  %v1432 = vmul.f32 %v1147, %v1394
  %v1433 = vmul.f32 %v1152, %v1394
  %v1434 = vmul.f32 %v1155, %v1394
  %v1435 = vmul.f32 %v1160, %v1394
  %v1436 = vmul.f32 %v1163, %v1394
  %v1437 = vmul.f32 %v1168, %v1394
  %v1438 = vmul.f32 %v1171, %v1394
  %v1439 = vmul.f32 %v1176, %v1394
  %v1440 = vmul.f32 %v1179, %v1394
  %v1441 = vmul.f32 %v1184, %v1394
  %v1442 = vmul.f32 %v1187, %v1394
  %v1443 = vmul.f32 %v1192, %v1394
  %v1444 = vmul.f32 %v1195, %v1394
  %v1445 = vmul.f32 %v1200, %v1394
  %v1446 = vmul.f32 %v1203, %v1394
  %v1447 = vmul.f32 %v1208, %v1394
  %v1448 = vmul.f32 %v1211, %v1394
  %v1449 = vmul.f32 %v1216, %v1394
  %v1450 = vmul.f32 %v1219, %v1394
  %v1451 = vmul.f32 %v1224, %v1394
  %v1452 = vmul.f32 %v1227, %v1394
  %v1453 = vmul.f32 %v1232, %v1394
  %v1454 = vmul.f32 %v1235, %v1394
  %v1455 = vmul.f32 %v1240, %v1394
  %v1456 = vmul.f32 %v1243, %v1394
  %v1457 = vmul.f32 %v1248, %v1394
  %v1458 = vmul.f32 %v1251, %v1394
  %v1459 = vlaneseq
  %v1460 = vshrl.u32 %v1459, 7
  %v1461 = vsub.s32 3, %v1460
  %v1462 = vrot.slane %v1254, %v1461
  %v1463 = vadd.f32 %v1395, %v1462
  %v1464 = vadd.f32 %v1396, %v1462
  %v1465 = vadd.f32 %v1397, %v1462
  %v1466 = vadd.f32 %v1398, %v1462
  %v1467 = vadd.f32 %v1399, %v1462
  %v1468 = vadd.f32 %v1400, %v1462
  %v1469 = vadd.f32 %v1401, %v1462
  %v1470 = vadd.f32 %v1402, %v1462
  %v1471 = vadd.f32 %v1403, %v1462
  %v1472 = vadd.f32 %v1404, %v1462
  %v1473 = vadd.f32 %v1405, %v1462
  %v1474 = vadd.f32 %v1406, %v1462
  %v1475 = vadd.f32 %v1407, %v1462
  %v1476 = vadd.f32 %v1408, %v1462
  %v1477 = vadd.f32 %v1409, %v1462
  %v1478 = vadd.f32 %v1410, %v1462
  %v1479 = vadd.f32 %v1411, %v1462
  %v1480 = vadd.f32 %v1412, %v1462
  %v1481 = vadd.f32 %v1413, %v1462
  %v1482 = vadd.f32 %v1414, %v1462
  %v1483 = vadd.f32 %v1415, %v1462
  %v1484 = vadd.f32 %v1416, %v1462
  %v1485 = vadd.f32 %v1417, %v1462
  %v1486 = vadd.f32 %v1418, %v1462
  %v1487 = vadd.f32 %v1419, %v1462
  %v1488 = vadd.f32 %v1420, %v1462
  %v1489 = vadd.f32 %v1421, %v1462
  %v1490 = vadd.f32 %v1422, %v1462
  %v1491 = vadd.f32 %v1423, %v1462
  %v1492 = vadd.f32 %v1424, %v1462
  %v1493 = vadd.f32 %v1425, %v1462
  %v1494 = vadd.f32 %v1426, %v1462
  %v1495 = vadd.f32 %v1427, %v1462
  %v1496 = vadd.f32 %v1428, %v1462
  %v1497 = vadd.f32 %v1429, %v1462
  %v1498 = vadd.f32 %v1430, %v1462
  %v1499 = vadd.f32 %v1431, %v1462
  %v1500 = vadd.f32 %v1432, %v1462
  %v1501 = vadd.f32 %v1433, %v1462
  %v1502 = vadd.f32 %v1434, %v1462
  %v1503 = vadd.f32 %v1435, %v1462
  %v1504 = vadd.f32 %v1436, %v1462
  %v1505 = vadd.f32 %v1437, %v1462
  %v1506 = vadd.f32 %v1438, %v1462
  %v1507 = vadd.f32 %v1439, %v1462
  %v1508 = vadd.f32 %v1440, %v1462
  %v1509 = vadd.f32 %v1441, %v1462
  %v1510 = vadd.f32 %v1442, %v1462
  %v1511 = vadd.f32 %v1443, %v1462
  %v1512 = vadd.f32 %v1444, %v1462
  %v1513 = vadd.f32 %v1445, %v1462
  %v1514 = vadd.f32 %v1446, %v1462
  %v1515 = vadd.f32 %v1447, %v1462
  %v1516 = vadd.f32 %v1448, %v1462
  %v1517 = vadd.f32 %v1449, %v1462
  %v1518 = vadd.f32 %v1450, %v1462
  %v1519 = vadd.f32 %v1451, %v1462
  %v1520 = vadd.f32 %v1452, %v1462
  %v1521 = vadd.f32 %v1453, %v1462
  %v1522 = vadd.f32 %v1454, %v1462
  %v1523 = vadd.f32 %v1455, %v1462
  %v1524 = vadd.f32 %v1456, %v1462
  %v1525 = vadd.f32 %v1457, %v1462
  %v1526 = vadd.f32 %v1458, %v1462
  %v1527 = vadd.f32 %v1327, %v1463
  %v1528 = vadd.f32 %v1328, %v1464
  %v1529 = vadd.f32 %v1329, %v1465
  %v1530 = vadd.f32 %v1330, %v1466
  %v1531 = vadd.f32 %v1331, %v1467
  %v1532 = vadd.f32 %v1332, %v1468
  %v1533 = vadd.f32 %v1333, %v1469
  %v1534 = vadd.f32 %v1334, %v1470
  %v1535 = vadd.f32 %v1335, %v1471
  %v1536 = vadd.f32 %v1336, %v1472
  %v1537 = vadd.f32 %v1337, %v1473
  %v1538 = vadd.f32 %v1338, %v1474
  %v1539 = vadd.f32 %v1339, %v1475
  %v1540 = vadd.f32 %v1340, %v1476
  %v1541 = vadd.f32 %v1341, %v1477
  %v1542 = vadd.f32 %v1342, %v1478
  %v1543 = vadd.f32 %v1343, %v1479
  %v1544 = vadd.f32 %v1344, %v1480
  %v1545 = vadd.f32 %v1345, %v1481
  %v1546 = vadd.f32 %v1346, %v1482
  %v1547 = vadd.f32 %v1347, %v1483
  %v1548 = vadd.f32 %v1348, %v1484
  %v1549 = vadd.f32 %v1349, %v1485
  %v1550 = vadd.f32 %v1350, %v1486
  %v1551 = vadd.f32 %v1351, %v1487
  %v1552 = vadd.f32 %v1352, %v1488
  %v1553 = vadd.f32 %v1353, %v1489
  %v1554 = vadd.f32 %v1354, %v1490
  %v1555 = vadd.f32 %v1355, %v1491
  %v1556 = vadd.f32 %v1356, %v1492
  %v1557 = vadd.f32 %v1357, %v1493
  %v1558 = vadd.f32 %v1358, %v1494
  %v1559 = vadd.f32 %v1359, %v1495
  %v1560 = vadd.f32 %v1360, %v1496
  %v1561 = vadd.f32 %v1361, %v1497
  %v1562 = vadd.f32 %v1362, %v1498
  %v1563 = vadd.f32 %v1363, %v1499
  %v1564 = vadd.f32 %v1364, %v1500
  %v1565 = vadd.f32 %v1365, %v1501
  %v1566 = vadd.f32 %v1366, %v1502
  %v1567 = vadd.f32 %v1367, %v1503
  %v1568 = vadd.f32 %v1368, %v1504
  %v1569 = vadd.f32 %v1369, %v1505
  %v1570 = vadd.f32 %v1370, %v1506
  %v1571 = vadd.f32 %v1371, %v1507
  %v1572 = vadd.f32 %v1372, %v1508
  %v1573 = vadd.f32 %v1373, %v1509
  %v1574 = vadd.f32 %v1374, %v1510
  %v1575 = vadd.f32 %v1375, %v1511
  %v1576 = vadd.f32 %v1376, %v1512
  %v1577 = vadd.f32 %v1377, %v1513
  %v1578 = vadd.f32 %v1378, %v1514
  %v1579 = vadd.f32 %v1379, %v1515
  %v1580 = vadd.f32 %v1380, %v1516
  %v1581 = vadd.f32 %v1381, %v1517
  %v1582 = vadd.f32 %v1382, %v1518
  %v1583 = vadd.f32 %v1383, %v1519
  %v1584 = vadd.f32 %v1384, %v1520
  %v1585 = vadd.f32 %v1385, %v1521
  %v1586 = vadd.f32 %v1386, %v1522
  %v1587 = vadd.f32 %v1387, %v1523
  %v1588 = vadd.f32 %v1388, %v1524
  %v1589 = vadd.f32 %v1389, %v1525
  %v1590 = vadd.f32 %v1390, %v1526
  %v1591 = vmax.f32 %v1527, 0.0
  %v1592 = vmax.f32 %v1528, 0.0
  %v1593 = vmax.f32 %v1529, 0.0
  %v1594 = vmax.f32 %v1530, 0.0
  %v1595 = vmax.f32 %v1531, 0.0
  %v1596 = vmax.f32 %v1532, 0.0
  %v1597 = vmax.f32 %v1533, 0.0
  %v1598 = vmax.f32 %v1534, 0.0
  %v1599 = vmax.f32 %v1535, 0.0
  %v1600 = vmax.f32 %v1536, 0.0
  %v1601 = vmax.f32 %v1537, 0.0
  %v1602 = vmax.f32 %v1538, 0.0
  %v1603 = vmax.f32 %v1539, 0.0
  %v1604 = vmax.f32 %v1540, 0.0
  %v1605 = vmax.f32 %v1541, 0.0
  %v1606 = vmax.f32 %v1542, 0.0
  %v1607 = vmax.f32 %v1543, 0.0
  %v1608 = vmax.f32 %v1544, 0.0
  %v1609 = vmax.f32 %v1545, 0.0
  %v1610 = vmax.f32 %v1546, 0.0
  %v1611 = vmax.f32 %v1547, 0.0
  %v1612 = vmax.f32 %v1548, 0.0
  %v1613 = vmax.f32 %v1549, 0.0
  %v1614 = vmax.f32 %v1550, 0.0
  %v1615 = vmax.f32 %v1551, 0.0
  %v1616 = vmax.f32 %v1552, 0.0
  %v1617 = vmax.f32 %v1553, 0.0
  %v1618 = vmax.f32 %v1554, 0.0
  %v1619 = vmax.f32 %v1555, 0.0
  %v1620 = vmax.f32 %v1556, 0.0
  %v1621 = vmax.f32 %v1557, 0.0
  %v1622 = vmax.f32 %v1558, 0.0
  %v1623 = vmax.f32 %v1559, 0.0
  %v1624 = vmax.f32 %v1560, 0.0
  %v1625 = vmax.f32 %v1561, 0.0
  %v1626 = vmax.f32 %v1562, 0.0
  %v1627 = vmax.f32 %v1563, 0.0
  %v1628 = vmax.f32 %v1564, 0.0
  %v1629 = vmax.f32 %v1565, 0.0
  %v1630 = vmax.f32 %v1566, 0.0
  %v1631 = vmax.f32 %v1567, 0.0
  %v1632 = vmax.f32 %v1568, 0.0
  %v1633 = vmax.f32 %v1569, 0.0
  %v1634 = vmax.f32 %v1570, 0.0
  %v1635 = vmax.f32 %v1571, 0.0
  %v1636 = vmax.f32 %v1572, 0.0
  %v1637 = vmax.f32 %v1573, 0.0
  %v1638 = vmax.f32 %v1574, 0.0
  %v1639 = vmax.f32 %v1575, 0.0
  %v1640 = vmax.f32 %v1576, 0.0
  %v1641 = vmax.f32 %v1577, 0.0
  %v1642 = vmax.f32 %v1578, 0.0
  %v1643 = vmax.f32 %v1579, 0.0
  %v1644 = vmax.f32 %v1580, 0.0
  %v1645 = vmax.f32 %v1581, 0.0
  %v1646 = vmax.f32 %v1582, 0.0
  %v1647 = vmax.f32 %v1583, 0.0
  %v1648 = vmax.f32 %v1584, 0.0
  %v1649 = vmax.f32 %v1585, 0.0
  %v1650 = vmax.f32 %v1586, 0.0
  %v1651 = vmax.f32 %v1587, 0.0
  %v1652 = vmax.f32 %v1588, 0.0
  %v1653 = vmax.f32 %v1589, 0.0
  %v1654 = vmax.f32 %v1590, 0.0
  %v1655 = vld [vmem:[%s5] sm:$0x1]
  %v1657 = vlaneseq
  %v1658 = vshrl.u32 %v1657, 7
  %v1659 = vsub.s32 0, %v1658
  %v1660 = vrot.slane %v1655, %v1659
  %v1662 = vmul.f32 %v1591, %v1660
  %v1663 = vmul.f32 %v1592, %v1660
  %v1664 = vmul.f32 %v1593, %v1660
  %v1665 = vmul.f32 %v1594, %v1660
  %v1666 = vmul.f32 %v1595, %v1660
  %v1667 = vmul.f32 %v1596, %v1660
  %v1668 = vmul.f32 %v1597, %v1660
  %v1669 = vmul.f32 %v1598, %v1660
  %v1670 = vmul.f32 %v1599, %v1660
  %v1671 = vmul.f32 %v1600, %v1660
  %v1672 = vmul.f32 %v1601, %v1660
  %v1673 = vmul.f32 %v1602, %v1660
  %v1674 = vmul.f32 %v1603, %v1660
  %v1675 = vmul.f32 %v1604, %v1660
  %v1676 = vmul.f32 %v1605, %v1660
  %v1677 = vmul.f32 %v1606, %v1660
  %v1678 = vmul.f32 %v1607, %v1660
  %v1679 = vmul.f32 %v1608, %v1660
  %v1680 = vmul.f32 %v1609, %v1660
  %v1681 = vmul.f32 %v1610, %v1660
  %v1682 = vmul.f32 %v1611, %v1660
  %v1683 = vmul.f32 %v1612, %v1660
  %v1684 = vmul.f32 %v1613, %v1660
  %v1685 = vmul.f32 %v1614, %v1660
  %v1686 = vmul.f32 %v1615, %v1660
  %v1687 = vmul.f32 %v1616, %v1660
  %v1688 = vmul.f32 %v1617, %v1660
  %v1689 = vmul.f32 %v1618, %v1660
  %v1690 = vmul.f32 %v1619, %v1660
  %v1691 = vmul.f32 %v1620, %v1660
  %v1692 = vmul.f32 %v1621, %v1660
  %v1693 = vmul.f32 %v1622, %v1660
  %v1694 = vmul.f32 %v1623, %v1660
  %v1695 = vmul.f32 %v1624, %v1660
  %v1696 = vmul.f32 %v1625, %v1660
  %v1697 = vmul.f32 %v1626, %v1660
  %v1698 = vmul.f32 %v1627, %v1660
  %v1699 = vmul.f32 %v1628, %v1660
  %v1700 = vmul.f32 %v1629, %v1660
  %v1701 = vmul.f32 %v1630, %v1660
  %v1702 = vmul.f32 %v1631, %v1660
  %v1703 = vmul.f32 %v1632, %v1660
  %v1704 = vmul.f32 %v1633, %v1660
  %v1705 = vmul.f32 %v1634, %v1660
  %v1706 = vmul.f32 %v1635, %v1660
  %v1707 = vmul.f32 %v1636, %v1660
  %v1708 = vmul.f32 %v1637, %v1660
  %v1709 = vmul.f32 %v1638, %v1660
  %v1710 = vmul.f32 %v1639, %v1660
  %v1711 = vmul.f32 %v1640, %v1660
  %v1712 = vmul.f32 %v1641, %v1660
  %v1713 = vmul.f32 %v1642, %v1660
  %v1714 = vmul.f32 %v1643, %v1660
  %v1715 = vmul.f32 %v1644, %v1660
  %v1716 = vmul.f32 %v1645, %v1660
  %v1717 = vmul.f32 %v1646, %v1660
  %v1718 = vmul.f32 %v1647, %v1660
  %v1719 = vmul.f32 %v1648, %v1660
  %v1720 = vmul.f32 %v1649, %v1660
  %v1721 = vmul.f32 %v1650, %v1660
  %v1722 = vmul.f32 %v1651, %v1660
  %v1723 = vmul.f32 %v1652, %v1660
  %v1724 = vmul.f32 %v1653, %v1660
  %v1725 = vmul.f32 %v1654, %v1660
  %vm1726 = vcmask 31744
  %v1727 = vsel %vm1726, %v1662, 0.0
  %1728 = vadd.xlane.f32.xlu0 %v1727
  %v1729 = vpop.xlane.xlu0 %1728
  %v1730 = vsel %vm1726, %v1663, 0.0
  %1731 = vadd.xlane.f32.xlu0 %v1730
  %v1732 = vpop.xlane.xlu0 %1731
  %v1733 = vsel %vm1726, %v1664, 0.0
  %1734 = vadd.xlane.f32.xlu0 %v1733
  %v1735 = vpop.xlane.xlu0 %1734
  %v1736 = vsel %vm1726, %v1665, 0.0
  %1737 = vadd.xlane.f32.xlu0 %v1736
  %v1738 = vpop.xlane.xlu0 %1737
  %v1739 = vsel %vm1726, %v1666, 0.0
  %1740 = vadd.xlane.f32.xlu0 %v1739
  %v1741 = vpop.xlane.xlu0 %1740
  %v1742 = vsel %vm1726, %v1667, 0.0
  %1743 = vadd.xlane.f32.xlu0 %v1742
  %v1744 = vpop.xlane.xlu0 %1743
  %v1745 = vsel %vm1726, %v1668, 0.0
  %1746 = vadd.xlane.f32.xlu0 %v1745
  %v1747 = vpop.xlane.xlu0 %1746
  %v1748 = vsel %vm1726, %v1669, 0.0
  %1749 = vadd.xlane.f32.xlu0 %v1748
  %v1750 = vpop.xlane.xlu0 %1749
  %v1751 = vsel %vm1726, %v1670, 0.0
  %1752 = vadd.xlane.f32.xlu0 %v1751
  %v1753 = vpop.xlane.xlu0 %1752
  %v1754 = vsel %vm1726, %v1671, 0.0
  %1755 = vadd.xlane.f32.xlu0 %v1754
  %v1756 = vpop.xlane.xlu0 %1755
  %v1757 = vsel %vm1726, %v1672, 0.0
  %1758 = vadd.xlane.f32.xlu0 %v1757
  %v1759 = vpop.xlane.xlu0 %1758
  %v1760 = vsel %vm1726, %v1673, 0.0
  %1761 = vadd.xlane.f32.xlu0 %v1760
  %v1762 = vpop.xlane.xlu0 %1761
  %v1763 = vsel %vm1726, %v1674, 0.0
  %1764 = vadd.xlane.f32.xlu0 %v1763
  %v1765 = vpop.xlane.xlu0 %1764
  %v1766 = vsel %vm1726, %v1675, 0.0
  %1767 = vadd.xlane.f32.xlu0 %v1766
  %v1768 = vpop.xlane.xlu0 %1767
  %v1769 = vsel %vm1726, %v1676, 0.0
  %1770 = vadd.xlane.f32.xlu0 %v1769
  %v1771 = vpop.xlane.xlu0 %1770
  %v1772 = vsel %vm1726, %v1677, 0.0
  %1773 = vadd.xlane.f32.xlu0 %v1772
  %v1774 = vpop.xlane.xlu0 %1773
  %v1775 = vsel %vm1726, %v1678, 0.0
  %1776 = vadd.xlane.f32.xlu0 %v1775
  %v1777 = vpop.xlane.xlu0 %1776
  %v1778 = vsel %vm1726, %v1679, 0.0
  %1779 = vadd.xlane.f32.xlu0 %v1778
  %v1780 = vpop.xlane.xlu0 %1779
  %v1781 = vsel %vm1726, %v1680, 0.0
  %1782 = vadd.xlane.f32.xlu0 %v1781
  %v1783 = vpop.xlane.xlu0 %1782
  %v1784 = vsel %vm1726, %v1681, 0.0
  %1785 = vadd.xlane.f32.xlu0 %v1784
  %v1786 = vpop.xlane.xlu0 %1785
  %v1787 = vsel %vm1726, %v1682, 0.0
  %1788 = vadd.xlane.f32.xlu0 %v1787
  %v1789 = vpop.xlane.xlu0 %1788
  %v1790 = vsel %vm1726, %v1683, 0.0
  %1791 = vadd.xlane.f32.xlu0 %v1790
  %v1792 = vpop.xlane.xlu0 %1791
  %v1793 = vsel %vm1726, %v1684, 0.0
  %1794 = vadd.xlane.f32.xlu0 %v1793
  %v1795 = vpop.xlane.xlu0 %1794
  %v1796 = vsel %vm1726, %v1685, 0.0
  %1797 = vadd.xlane.f32.xlu0 %v1796
  %v1798 = vpop.xlane.xlu0 %1797
  %v1799 = vsel %vm1726, %v1686, 0.0
  %1800 = vadd.xlane.f32.xlu0 %v1799
  %v1801 = vpop.xlane.xlu0 %1800
  %v1802 = vsel %vm1726, %v1687, 0.0
  %1803 = vadd.xlane.f32.xlu0 %v1802
  %v1804 = vpop.xlane.xlu0 %1803
  %v1805 = vsel %vm1726, %v1688, 0.0
  %1806 = vadd.xlane.f32.xlu0 %v1805
  %v1807 = vpop.xlane.xlu0 %1806
  %v1808 = vsel %vm1726, %v1689, 0.0
  %1809 = vadd.xlane.f32.xlu0 %v1808
  %v1810 = vpop.xlane.xlu0 %1809
  %v1811 = vsel %vm1726, %v1690, 0.0
  %1812 = vadd.xlane.f32.xlu0 %v1811
  %v1813 = vpop.xlane.xlu0 %1812
  %v1814 = vsel %vm1726, %v1691, 0.0
  %1815 = vadd.xlane.f32.xlu0 %v1814
  %v1816 = vpop.xlane.xlu0 %1815
  %v1817 = vsel %vm1726, %v1692, 0.0
  %1818 = vadd.xlane.f32.xlu0 %v1817
  %v1819 = vpop.xlane.xlu0 %1818
  %v1820 = vsel %vm1726, %v1693, 0.0
  %1821 = vadd.xlane.f32.xlu0 %v1820
  %v1822 = vpop.xlane.xlu0 %1821
  %v1823 = vsel %vm1726, %v1694, 0.0
  %1824 = vadd.xlane.f32.xlu0 %v1823
  %v1825 = vpop.xlane.xlu0 %1824
  %v1826 = vsel %vm1726, %v1695, 0.0
  %1827 = vadd.xlane.f32.xlu0 %v1826
  %v1828 = vpop.xlane.xlu0 %1827
  %v1829 = vsel %vm1726, %v1696, 0.0
  %1830 = vadd.xlane.f32.xlu0 %v1829
  %v1831 = vpop.xlane.xlu0 %1830
  %v1832 = vsel %vm1726, %v1697, 0.0
  %1833 = vadd.xlane.f32.xlu0 %v1832
  %v1834 = vpop.xlane.xlu0 %1833
  %v1835 = vsel %vm1726, %v1698, 0.0
  %1836 = vadd.xlane.f32.xlu0 %v1835
  %v1837 = vpop.xlane.xlu0 %1836
  %v1838 = vsel %vm1726, %v1699, 0.0
  %1839 = vadd.xlane.f32.xlu0 %v1838
  %v1840 = vpop.xlane.xlu0 %1839
  %v1841 = vsel %vm1726, %v1700, 0.0
  %1842 = vadd.xlane.f32.xlu0 %v1841
  %v1843 = vpop.xlane.xlu0 %1842
  %v1844 = vsel %vm1726, %v1701, 0.0
  %1845 = vadd.xlane.f32.xlu0 %v1844
  %v1846 = vpop.xlane.xlu0 %1845
  %v1847 = vsel %vm1726, %v1702, 0.0
  %1848 = vadd.xlane.f32.xlu0 %v1847
  %v1849 = vpop.xlane.xlu0 %1848
  %v1850 = vsel %vm1726, %v1703, 0.0
  %1851 = vadd.xlane.f32.xlu0 %v1850
  %v1852 = vpop.xlane.xlu0 %1851
  %v1853 = vsel %vm1726, %v1704, 0.0
  %1854 = vadd.xlane.f32.xlu0 %v1853
  %v1855 = vpop.xlane.xlu0 %1854
  %v1856 = vsel %vm1726, %v1705, 0.0
  %1857 = vadd.xlane.f32.xlu0 %v1856
  %v1858 = vpop.xlane.xlu0 %1857
  %v1859 = vsel %vm1726, %v1706, 0.0
  %1860 = vadd.xlane.f32.xlu0 %v1859
  %v1861 = vpop.xlane.xlu0 %1860
  %v1862 = vsel %vm1726, %v1707, 0.0
  %1863 = vadd.xlane.f32.xlu0 %v1862
  %v1864 = vpop.xlane.xlu0 %1863
  %v1865 = vsel %vm1726, %v1708, 0.0
  %1866 = vadd.xlane.f32.xlu0 %v1865
  %v1867 = vpop.xlane.xlu0 %1866
  %v1868 = vsel %vm1726, %v1709, 0.0
  %1869 = vadd.xlane.f32.xlu0 %v1868
  %v1870 = vpop.xlane.xlu0 %1869
  %v1871 = vsel %vm1726, %v1710, 0.0
  %1872 = vadd.xlane.f32.xlu0 %v1871
  %v1873 = vpop.xlane.xlu0 %1872
  %v1874 = vsel %vm1726, %v1711, 0.0
  %1875 = vadd.xlane.f32.xlu0 %v1874
  %v1876 = vpop.xlane.xlu0 %1875
  %v1877 = vsel %vm1726, %v1712, 0.0
  %1878 = vadd.xlane.f32.xlu0 %v1877
  %v1879 = vpop.xlane.xlu0 %1878
  %v1880 = vsel %vm1726, %v1713, 0.0
  %1881 = vadd.xlane.f32.xlu0 %v1880
  %v1882 = vpop.xlane.xlu0 %1881
  %v1883 = vsel %vm1726, %v1714, 0.0
  %1884 = vadd.xlane.f32.xlu0 %v1883
  %v1885 = vpop.xlane.xlu0 %1884
  %v1886 = vsel %vm1726, %v1715, 0.0
  %1887 = vadd.xlane.f32.xlu0 %v1886
  %v1888 = vpop.xlane.xlu0 %1887
  %v1889 = vsel %vm1726, %v1716, 0.0
  %1890 = vadd.xlane.f32.xlu0 %v1889
  %v1891 = vpop.xlane.xlu0 %1890
  %v1892 = vsel %vm1726, %v1717, 0.0
  %1893 = vadd.xlane.f32.xlu0 %v1892
  %v1894 = vpop.xlane.xlu0 %1893
  %v1895 = vsel %vm1726, %v1718, 0.0
  %1896 = vadd.xlane.f32.xlu0 %v1895
  %v1897 = vpop.xlane.xlu0 %1896
  %v1898 = vsel %vm1726, %v1719, 0.0
  %1899 = vadd.xlane.f32.xlu0 %v1898
  %v1900 = vpop.xlane.xlu0 %1899
  %v1901 = vsel %vm1726, %v1720, 0.0
  %1902 = vadd.xlane.f32.xlu0 %v1901
  %v1903 = vpop.xlane.xlu0 %1902
  %v1904 = vsel %vm1726, %v1721, 0.0
  %1905 = vadd.xlane.f32.xlu0 %v1904
  %v1906 = vpop.xlane.xlu0 %1905
  %v1907 = vsel %vm1726, %v1722, 0.0
  %1908 = vadd.xlane.f32.xlu0 %v1907
  %v1909 = vpop.xlane.xlu0 %1908
  %v1910 = vsel %vm1726, %v1723, 0.0
  %1911 = vadd.xlane.f32.xlu0 %v1910
  %v1912 = vpop.xlane.xlu0 %1911
  %v1913 = vsel %vm1726, %v1724, 0.0
  %1914 = vadd.xlane.f32.xlu0 %v1913
  %v1915 = vpop.xlane.xlu0 %1914
  %v1916 = vsel %vm1726, %v1725, 0.0
  %1917 = vadd.xlane.f32.xlu0 %v1916
  %v1918 = vpop.xlane.xlu0 %1917
  %vm1919 = vcmask 7168
  %1920 = vst.msk [vmem:[%s6] sm:$0xff] %vm1919, %v1729
  %1921 = vst.msk [vmem:[%s6 + $0x8] sm:$0xff] %vm1919, %v1732
  %1922 = vst.msk [vmem:[%s6 + $0x10] sm:$0xff] %vm1919, %v1735
  %1923 = vst.msk [vmem:[%s6 + $0x18] sm:$0xff] %vm1919, %v1738
  %1924 = vst.msk [vmem:[%s6 + $0x20] sm:$0xff] %vm1919, %v1741
  %1925 = vst.msk [vmem:[%s6 + $0x28] sm:$0xff] %vm1919, %v1744
  %1926 = vst.msk [vmem:[%s6 + $0x30] sm:$0xff] %vm1919, %v1747
  %1927 = vst.msk [vmem:[%s6 + $0x38] sm:$0xff] %vm1919, %v1750
  %1928 = vst.msk [vmem:[%s6 + $0x40] sm:$0xff] %vm1919, %v1753
  %1929 = vst.msk [vmem:[%s6 + $0x48] sm:$0xff] %vm1919, %v1756
  %1930 = vst.msk [vmem:[%s6 + $0x50] sm:$0xff] %vm1919, %v1759
  %1931 = vst.msk [vmem:[%s6 + $0x58] sm:$0xff] %vm1919, %v1762
  %1932 = vst.msk [vmem:[%s6 + $0x60] sm:$0xff] %vm1919, %v1765
  %1933 = vst.msk [vmem:[%s6 + $0x68] sm:$0xff] %vm1919, %v1768
  %1934 = vst.msk [vmem:[%s6 + $0x70] sm:$0xff] %vm1919, %v1771
  %1935 = vst.msk [vmem:[%s6 + $0x78] sm:$0xff] %vm1919, %v1774
  %1936 = vst.msk [vmem:[%s6 + $0x80] sm:$0xff] %vm1919, %v1777
  %1937 = vst.msk [vmem:[%s6 + $0x88] sm:$0xff] %vm1919, %v1780
  %1938 = vst.msk [vmem:[%s6 + $0x90] sm:$0xff] %vm1919, %v1783
  %1939 = vst.msk [vmem:[%s6 + $0x98] sm:$0xff] %vm1919, %v1786
  %1940 = vst.msk [vmem:[%s6 + $0xa0] sm:$0xff] %vm1919, %v1789
  %1941 = vst.msk [vmem:[%s6 + $0xa8] sm:$0xff] %vm1919, %v1792
  %1942 = vst.msk [vmem:[%s6 + $0xb0] sm:$0xff] %vm1919, %v1795
  %1943 = vst.msk [vmem:[%s6 + $0xb8] sm:$0xff] %vm1919, %v1798
  %1944 = vst.msk [vmem:[%s6 + $0xc0] sm:$0xff] %vm1919, %v1801
  %1945 = vst.msk [vmem:[%s6 + $0xc8] sm:$0xff] %vm1919, %v1804
  %1946 = vst.msk [vmem:[%s6 + $0xd0] sm:$0xff] %vm1919, %v1807
  %1947 = vst.msk [vmem:[%s6 + $0xd8] sm:$0xff] %vm1919, %v1810
  %1948 = vst.msk [vmem:[%s6 + $0xe0] sm:$0xff] %vm1919, %v1813
  %1949 = vst.msk [vmem:[%s6 + $0xe8] sm:$0xff] %vm1919, %v1816
  %1950 = vst.msk [vmem:[%s6 + $0xf0] sm:$0xff] %vm1919, %v1819
  %1951 = vst.msk [vmem:[%s6 + $0xf8] sm:$0xff] %vm1919, %v1822
  %1952 = vst.msk [vmem:[%s6 + $0x100] sm:$0xff] %vm1919, %v1825
  %1953 = vst.msk [vmem:[%s6 + $0x108] sm:$0xff] %vm1919, %v1828
  %1954 = vst.msk [vmem:[%s6 + $0x110] sm:$0xff] %vm1919, %v1831
  %1955 = vst.msk [vmem:[%s6 + $0x118] sm:$0xff] %vm1919, %v1834
  %1956 = vst.msk [vmem:[%s6 + $0x120] sm:$0xff] %vm1919, %v1837
  %1957 = vst.msk [vmem:[%s6 + $0x128] sm:$0xff] %vm1919, %v1840
  %1958 = vst.msk [vmem:[%s6 + $0x130] sm:$0xff] %vm1919, %v1843
  %1959 = vst.msk [vmem:[%s6 + $0x138] sm:$0xff] %vm1919, %v1846
  %1960 = vst.msk [vmem:[%s6 + $0x140] sm:$0xff] %vm1919, %v1849
  %1961 = vst.msk [vmem:[%s6 + $0x148] sm:$0xff] %vm1919, %v1852
  %1962 = vst.msk [vmem:[%s6 + $0x150] sm:$0xff] %vm1919, %v1855
  %1963 = vst.msk [vmem:[%s6 + $0x158] sm:$0xff] %vm1919, %v1858
  %1964 = vst.msk [vmem:[%s6 + $0x160] sm:$0xff] %vm1919, %v1861
  %1965 = vst.msk [vmem:[%s6 + $0x168] sm:$0xff] %vm1919, %v1864
  %1966 = vst.msk [vmem:[%s6 + $0x170] sm:$0xff] %vm1919, %v1867
  %1967 = vst.msk [vmem:[%s6 + $0x178] sm:$0xff] %vm1919, %v1870
  %1968 = vst.msk [vmem:[%s6 + $0x180] sm:$0xff] %vm1919, %v1873
  %1969 = vst.msk [vmem:[%s6 + $0x188] sm:$0xff] %vm1919, %v1876
  %1970 = vst.msk [vmem:[%s6 + $0x190] sm:$0xff] %vm1919, %v1879
  %1971 = vst.msk [vmem:[%s6 + $0x198] sm:$0xff] %vm1919, %v1882
  %1972 = vst.msk [vmem:[%s6 + $0x1a0] sm:$0xff] %vm1919, %v1885
  %1973 = vst.msk [vmem:[%s6 + $0x1a8] sm:$0xff] %vm1919, %v1888
  %1974 = vst.msk [vmem:[%s6 + $0x1b0] sm:$0xff] %vm1919, %v1891
  %1975 = vst.msk [vmem:[%s6 + $0x1b8] sm:$0xff] %vm1919, %v1894
  %1976 = vst.msk [vmem:[%s6 + $0x1c0] sm:$0xff] %vm1919, %v1897
  %1977 = vst.msk [vmem:[%s6 + $0x1c8] sm:$0xff] %vm1919, %v1900
  %1978 = vst.msk [vmem:[%s6 + $0x1d0] sm:$0xff] %vm1919, %v1903
  %1979 = vst.msk [vmem:[%s6 + $0x1d8] sm:$0xff] %vm1919, %v1906
  %1980 = vst.msk [vmem:[%s6 + $0x1e0] sm:$0xff] %vm1919, %v1909
  %1981 = vst.msk [vmem:[%s6 + $0x1e8] sm:$0xff] %vm1919, %v1912
  %1982 = vst.msk [vmem:[%s6 + $0x1f0] sm:$0xff] %vm1919, %v1915
  %1983 = vst.msk [vmem:[%s6 + $0x1f8] sm:$0xff] %vm1919, %v1918
  %v1984 = vadd.f32 %v1729, %v1732
  %v1985 = vadd.f32 %v1984, %v1735
  %v1986 = vadd.f32 %v1985, %v1738
  %v1987 = vadd.f32 %v1986, %v1741
  %v1988 = vadd.f32 %v1987, %v1744
  %v1989 = vadd.f32 %v1988, %v1747
  %v1990 = vadd.f32 %v1989, %v1750
  %v1991 = vadd.f32 %v1990, %v1753
  %v1992 = vadd.f32 %v1991, %v1756
  %v1993 = vadd.f32 %v1992, %v1759
  %v1994 = vadd.f32 %v1993, %v1762
  %v1995 = vadd.f32 %v1994, %v1765
  %v1996 = vadd.f32 %v1995, %v1768
  %v1997 = vadd.f32 %v1996, %v1771
  %v1998 = vadd.f32 %v1997, %v1774
  %v1999 = vadd.f32 %v1998, %v1777
  %v2000 = vadd.f32 %v1999, %v1780
  %v2001 = vadd.f32 %v2000, %v1783
  %v2002 = vadd.f32 %v2001, %v1786
  %v2003 = vadd.f32 %v2002, %v1789
  %v2004 = vadd.f32 %v2003, %v1792
  %v2005 = vadd.f32 %v2004, %v1795
  %v2006 = vadd.f32 %v2005, %v1798
  %v2007 = vadd.f32 %v2006, %v1801
  %v2008 = vadd.f32 %v2007, %v1804
  %v2009 = vadd.f32 %v2008, %v1807
  %v2010 = vadd.f32 %v2009, %v1810
  %v2011 = vadd.f32 %v2010, %v1813
  %v2012 = vadd.f32 %v2011, %v1816
  %v2013 = vadd.f32 %v2012, %v1819
  %v2014 = vadd.f32 %v2013, %v1822
  %v2015 = vadd.f32 %v2014, %v1825
  %v2016 = vadd.f32 %v2015, %v1828
  %v2017 = vadd.f32 %v2016, %v1831
  %v2018 = vadd.f32 %v2017, %v1834
  %v2019 = vadd.f32 %v2018, %v1837
  %v2020 = vadd.f32 %v2019, %v1840
  %v2021 = vadd.f32 %v2020, %v1843
  %v2022 = vadd.f32 %v2021, %v1846
  %v2023 = vadd.f32 %v2022, %v1849
  %v2024 = vadd.f32 %v2023, %v1852
  %v2025 = vadd.f32 %v2024, %v1855
  %v2026 = vadd.f32 %v2025, %v1858
  %v2027 = vadd.f32 %v2026, %v1861
  %v2028 = vadd.f32 %v2027, %v1864
  %v2029 = vadd.f32 %v2028, %v1867
  %v2030 = vadd.f32 %v2029, %v1870
  %v2031 = vadd.f32 %v2030, %v1873
  %v2032 = vadd.f32 %v2031, %v1876
  %v2033 = vadd.f32 %v2032, %v1879
  %v2034 = vadd.f32 %v2033, %v1882
  %v2035 = vadd.f32 %v2034, %v1885
  %v2036 = vadd.f32 %v2035, %v1888
  %v2037 = vadd.f32 %v2036, %v1891
  %v2038 = vadd.f32 %v2037, %v1894
  %v2039 = vadd.f32 %v2038, %v1897
  %v2040 = vadd.f32 %v2039, %v1900
  %v2041 = vadd.f32 %v2040, %v1903
  %v2042 = vadd.f32 %v2041, %v1906
  %v2043 = vadd.f32 %v2042, %v1909
  %v2044 = vadd.f32 %v2043, %v1912
  %v2045 = vadd.f32 %v2044, %v1915
  %v2046 = vadd.f32 %v2045, %v1918
  %v2047 = vrot.slane %v2046, 4
  %v2048 = vadd.f32 %v2046, %v2047
  %v2049 = vrot.slane %v2048, 2
  %v2050 = vadd.f32 %v2048, %v2049
  %v2051 = vrot.slane %v2050, 1
  %v2052 = vadd.f32 %v2050, %v2051
  %vm2053 = vcmask 0
  %2054 = vst.msk [vmem:[%s7] sm:$0x1] %vm2053, %v2052
  %v2055 = vmul.f32 %v1729, %v1729
  %v2056 = vmul.f32 %v1732, %v1732
  %v2057 = vmul.f32 %v1735, %v1735
  %v2058 = vmul.f32 %v1738, %v1738
  %v2059 = vmul.f32 %v1741, %v1741
  %v2060 = vmul.f32 %v1744, %v1744
  %v2061 = vmul.f32 %v1747, %v1747
  %v2062 = vmul.f32 %v1750, %v1750
  %v2063 = vmul.f32 %v1753, %v1753
  %v2064 = vmul.f32 %v1756, %v1756
  %v2065 = vmul.f32 %v1759, %v1759
  %v2066 = vmul.f32 %v1762, %v1762
  %v2067 = vmul.f32 %v1765, %v1765
  %v2068 = vmul.f32 %v1768, %v1768
  %v2069 = vmul.f32 %v1771, %v1771
  %v2070 = vmul.f32 %v1774, %v1774
  %v2071 = vmul.f32 %v1777, %v1777
  %v2072 = vmul.f32 %v1780, %v1780
  %v2073 = vmul.f32 %v1783, %v1783
  %v2074 = vmul.f32 %v1786, %v1786
  %v2075 = vmul.f32 %v1789, %v1789
  %v2076 = vmul.f32 %v1792, %v1792
  %v2077 = vmul.f32 %v1795, %v1795
  %v2078 = vmul.f32 %v1798, %v1798
  %v2079 = vmul.f32 %v1801, %v1801
  %v2080 = vmul.f32 %v1804, %v1804
  %v2081 = vmul.f32 %v1807, %v1807
  %v2082 = vmul.f32 %v1810, %v1810
  %v2083 = vmul.f32 %v1813, %v1813
  %v2084 = vmul.f32 %v1816, %v1816
  %v2085 = vmul.f32 %v1819, %v1819
  %v2086 = vmul.f32 %v1822, %v1822
  %v2087 = vmul.f32 %v1825, %v1825
  %v2088 = vmul.f32 %v1828, %v1828
  %v2089 = vmul.f32 %v1831, %v1831
  %v2090 = vmul.f32 %v1834, %v1834
  %v2091 = vmul.f32 %v1837, %v1837
  %v2092 = vmul.f32 %v1840, %v1840
  %v2093 = vmul.f32 %v1843, %v1843
  %v2094 = vmul.f32 %v1846, %v1846
  %v2095 = vmul.f32 %v1849, %v1849
  %v2096 = vmul.f32 %v1852, %v1852
  %v2097 = vmul.f32 %v1855, %v1855
  %v2098 = vmul.f32 %v1858, %v1858
  %v2099 = vmul.f32 %v1861, %v1861
  %v2100 = vmul.f32 %v1864, %v1864
  %v2101 = vmul.f32 %v1867, %v1867
  %v2102 = vmul.f32 %v1870, %v1870
  %v2103 = vmul.f32 %v1873, %v1873
  %v2104 = vmul.f32 %v1876, %v1876
  %v2105 = vmul.f32 %v1879, %v1879
  %v2106 = vmul.f32 %v1882, %v1882
  %v2107 = vmul.f32 %v1885, %v1885
  %v2108 = vmul.f32 %v1888, %v1888
  %v2109 = vmul.f32 %v1891, %v1891
  %v2110 = vmul.f32 %v1894, %v1894
  %v2111 = vmul.f32 %v1897, %v1897
  %v2112 = vmul.f32 %v1900, %v1900
  %v2113 = vmul.f32 %v1903, %v1903
  %v2114 = vmul.f32 %v1906, %v1906
  %v2115 = vmul.f32 %v1909, %v1909
  %v2116 = vmul.f32 %v1912, %v1912
  %v2117 = vmul.f32 %v1915, %v1915
  %v2118 = vmul.f32 %v1918, %v1918
  %v2119 = vadd.f32 %v2055, %v2056
  %v2120 = vadd.f32 %v2119, %v2057
  %v2121 = vadd.f32 %v2120, %v2058
  %v2122 = vadd.f32 %v2121, %v2059
  %v2123 = vadd.f32 %v2122, %v2060
  %v2124 = vadd.f32 %v2123, %v2061
  %v2125 = vadd.f32 %v2124, %v2062
  %v2126 = vadd.f32 %v2125, %v2063
  %v2127 = vadd.f32 %v2126, %v2064
  %v2128 = vadd.f32 %v2127, %v2065
  %v2129 = vadd.f32 %v2128, %v2066
  %v2130 = vadd.f32 %v2129, %v2067
  %v2131 = vadd.f32 %v2130, %v2068
  %v2132 = vadd.f32 %v2131, %v2069
  %v2133 = vadd.f32 %v2132, %v2070
  %v2134 = vadd.f32 %v2133, %v2071
  %v2135 = vadd.f32 %v2134, %v2072
  %v2136 = vadd.f32 %v2135, %v2073
  %v2137 = vadd.f32 %v2136, %v2074
  %v2138 = vadd.f32 %v2137, %v2075
  %v2139 = vadd.f32 %v2138, %v2076
  %v2140 = vadd.f32 %v2139, %v2077
  %v2141 = vadd.f32 %v2140, %v2078
  %v2142 = vadd.f32 %v2141, %v2079
  %v2143 = vadd.f32 %v2142, %v2080
  %v2144 = vadd.f32 %v2143, %v2081
  %v2145 = vadd.f32 %v2144, %v2082
  %v2146 = vadd.f32 %v2145, %v2083
  %v2147 = vadd.f32 %v2146, %v2084
  %v2148 = vadd.f32 %v2147, %v2085
  %v2149 = vadd.f32 %v2148, %v2086
  %v2150 = vadd.f32 %v2149, %v2087
  %v2151 = vadd.f32 %v2150, %v2088
  %v2152 = vadd.f32 %v2151, %v2089
  %v2153 = vadd.f32 %v2152, %v2090
  %v2154 = vadd.f32 %v2153, %v2091
  %v2155 = vadd.f32 %v2154, %v2092
  %v2156 = vadd.f32 %v2155, %v2093
  %v2157 = vadd.f32 %v2156, %v2094
  %v2158 = vadd.f32 %v2157, %v2095
  %v2159 = vadd.f32 %v2158, %v2096
  %v2160 = vadd.f32 %v2159, %v2097
  %v2161 = vadd.f32 %v2160, %v2098
  %v2162 = vadd.f32 %v2161, %v2099
  %v2163 = vadd.f32 %v2162, %v2100
  %v2164 = vadd.f32 %v2163, %v2101
  %v2165 = vadd.f32 %v2164, %v2102
  %v2166 = vadd.f32 %v2165, %v2103
  %v2167 = vadd.f32 %v2166, %v2104
  %v2168 = vadd.f32 %v2167, %v2105
  %v2169 = vadd.f32 %v2168, %v2106
  %v2170 = vadd.f32 %v2169, %v2107
  %v2171 = vadd.f32 %v2170, %v2108
  %v2172 = vadd.f32 %v2171, %v2109
  %v2173 = vadd.f32 %v2172, %v2110
  %v2174 = vadd.f32 %v2173, %v2111
  %v2175 = vadd.f32 %v2174, %v2112
  %v2176 = vadd.f32 %v2175, %v2113
  %v2177 = vadd.f32 %v2176, %v2114
  %v2178 = vadd.f32 %v2177, %v2115
  %v2179 = vadd.f32 %v2178, %v2116
  %v2180 = vadd.f32 %v2179, %v2117
  %v2181 = vadd.f32 %v2180, %v2118
  %v2182 = vrot.slane %v2181, 4
  %v2183 = vadd.f32 %v2181, %v2182
  %v2184 = vrot.slane %v2183, 2
  %v2185 = vadd.f32 %v2183, %v2184
  %v2186 = vrot.slane %v2185, 1
  %v2187 = vadd.f32 %v2185, %v2186
  %2188 = vst.msk [vmem:[%s7 + $0x1] sm:$0x1] %vm2053, %v2187
  // Predicated region
  $region26: #{attention_block_forward.4} parent=0 // pred_check
    _
  $region27: #{attention_block_forward.4} parent=0 // pred_check_branch
    %2190 = sbr.rel (0) target = $region29
  $region28: #{attention_block_forward.4} parent=0 // pred_region
    _
  $region29: #{attention_block_forward.4} parent=0 // pred_fallthru
    _
  // Predicated region
  $region30: #{attention_block_forward.4} parent=0 // pred_check
    _
  $region31: #{attention_block_forward.4} parent=0 // pred_check_branch
    %2192 = sbr.rel (0) target = $region33
  $region32: #{attention_block_forward.4} parent=0 // pred_region
    _
  $region33: #{attention_block_forward.4} parent=0 // pred_fallthru
    _
  // Predicated region
  $region34: #{attention_block_forward.4} parent=0 // pred_check
    _
  $region35: #{attention_block_forward.4} parent=0 // pred_check_branch
    %2194 = sbr.rel (0) target = $region37
  $region36: #{attention_block_forward.4} parent=0 // pred_region
    _
  $region37: #{attention_block_forward.4} parent=0 // pred_fallthru
    _
  // Predicated region
  $region38: #{attention_block_forward.4} parent=0 // pred_check
    _
  $region39: #{attention_block_forward.4} parent=0 // pred_check_branch
    %2196 = sbr.rel (0) target = $region41
  $region40: #{attention_block_forward.4} parent=0 // pred_region
    _
  $region41: #{attention_block_forward.4} parent=0 // pred_fallthru
    _

</llo_original>
